<compile_context>
chip_gen: v5e
topology: v5e:2x2
jax: 0.10.0
libtpu: 0.0.40
codegen_flags: <defaults>
</compile_context>

<pallas_src>
import jax
import jax.numpy as jnp
from jax.experimental import pallas as pl
from jax.experimental.pallas import tpu as pltpu  # noqa: F401  (TPU backend)


# true / padded layer widths: layer l maps _DIMS[l] -> _DIMS[l+1]
_DIMS = [28 * 28, 500, 500, 200, 200, 100, 10]
_PAD = [896, 512, 512, 256, 256, 128, 128]
_BN_EPS = 1e-5
_NUM_LAYERS = 6


def _round_up(x, m):
    return (x + m - 1) // m * m


# ----------------------------- fused Pallas kernel ---------------------------

def _fc_fused_kernel(x_ref, w1_ref, w2_ref, w3_ref, w4_ref, w5_ref, w6_ref,
                     b_ref, o_ref):
    """6 matmuls unrolled in one kernel; activations stay in registers/VMEM."""
    w_refs = (w1_ref, w2_ref, w3_ref, w4_ref, w5_ref, w6_ref)
    h = x_ref[...]                                        # (M, 896) f32
    for l in range(_NUM_LAYERS):
        w = w_refs[l]
        n = w.shape[1]                                    # static padded width
        # bf16 operands into the MXU, f32 accumulate.
        z = jnp.dot(h.astype(jnp.bfloat16), w[...],
                    preferred_element_type=jnp.float32)
        z = z + b_ref[l:l + 1, :n]                        # (1, n) bcast, f32 VPU
        if l < _NUM_LAYERS - 1:
            h = jnp.maximum(z, 0.0)                       # ReLU (BN folded away)
        else:
            o_ref[...] = z                                # final linear


def _full_spec(shape):
    return pl.BlockSpec(shape, lambda i: (0,) * len(shape))


def fc_forward(x, weights, b_pack):
    """x: (N, 1, 28, 28) f32 -> logits (N, 10) f32."""
    n_batch = x.shape[0]
    h = x.reshape(n_batch, -1).astype(jnp.float32)        # flatten(start_dim=1)
    m_pad = _round_up(max(n_batch, 8), 8)
    x_p = jnp.zeros((m_pad, _PAD[0]), jnp.float32)
    x_p = x_p.at[:n_batch, :_DIMS[0]].set(h)

    flops = 2 * m_pad * sum(a * b for a, b in zip(_PAD[:-1], _PAD[1:]))
    bytes_accessed = (4 * x_p.size
                      + sum(2 * int(w.size) for w in weights)
                      + 4 * int(b_pack.size)
                      + 4 * m_pad * _PAD[-1])

    out = pl.pallas_call(
        _fc_fused_kernel,
        out_shape=jax.ShapeDtypeStruct((m_pad, _PAD[-1]), jnp.float32),
        grid=(1,),
        in_specs=[_full_spec(x_p.shape)]
                 + [_full_spec(w.shape) for w in weights]
                 + [_full_spec(b_pack.shape)],
        out_specs=_full_spec((m_pad, _PAD[-1])),
        cost_estimate=pl.CostEstimate(flops=flops, transcendentals=0,
                                      bytes_accessed=bytes_accessed),
    )(x_p, *weights, b_pack)
    return out[:n_batch, :_DIMS[-1]]


# --------------------------- parameter construction --------------------------

def init_params(key):
    """Build PyTorch-equivalent FC params, fold eval-mode BN into the next
    layer, zero-pad every dim to a multiple of 128, cast weights to bf16."""
    ws, bs = [], []
    for l in range(_NUM_LAYERS):
        fin, fout = _DIMS[l], _DIMS[l + 1]
        k = jax.random.fold_in(key, l)
        kw, kb = jax.random.split(k)
        bound = 1.0 / jnp.sqrt(fin)
        ws.append(jax.random.uniform(kw, (fin, fout), jnp.float32, -bound, bound))
        bs.append(jax.random.uniform(kb, (fout,), jnp.float32, -bound, bound))

    scales, shifts = [], []
    for l in range(_NUM_LAYERS - 1):                      # BN after layers 1..5
        fout = _DIMS[l + 1]
        k = jax.random.fold_in(key, 100 + l)
        kg, kbeta, km, kv = jax.random.split(k, 4)
        gamma = 1.0 + 0.1 * jax.random.normal(kg, (fout,), jnp.float32)
        beta = 0.1 * jax.random.normal(kbeta, (fout,), jnp.float32)
        mean = 0.1 * jax.random.normal(km, (fout,), jnp.float32)
        var = jax.random.uniform(kv, (fout,), jnp.float32, 0.5, 1.5)
        scale = gamma / jnp.sqrt(var + _BN_EPS)
        scales.append(scale)
        shifts.append(beta - mean * scale)

    # Fold BN(l) into Linear(l+1):  (relu(z)*s + t) @ W + b
    #                            == relu(z) @ (s[:,None]*W) + (t @ W + b)
    w_fold, b_fold = [ws[0]], [bs[0]]
    for l in range(1, _NUM_LAYERS):
        s, t = scales[l - 1], shifts[l - 1]
        w_fold.append(s[:, None] * ws[l])
        b_fold.append(bs[l] + t @ ws[l])

    # Pad to lane-dense shapes; weights -> bf16, biases packed into one array.
    weights = []
    b_pack = jnp.zeros((_NUM_LAYERS, max(_PAD[1:])), jnp.float32)   # (6, 512)
    for l in range(_NUM_LAYERS):
        fi, fo = _DIMS[l], _DIMS[l + 1]
        pi, po = _PAD[l], _PAD[l + 1]
        wp = jnp.zeros((pi, po), jnp.float32).at[:fi, :fo].set(w_fold[l])
        weights.append(wp.astype(jnp.bfloat16))
        b_pack = b_pack.at[l, :fo].set(b_fold[l])
    return tuple(weights), b_pack


# ------------------------------- pure-JAX reference --------------------------

def fc_forward_ref(x, weights, b_pack):
    """Reference using the SAME folded/padded bf16 weights (f32 accumulate)."""
    n_batch = x.shape[0]
    h = x.reshape(n_batch, -1).astype(jnp.float32)
    h = jnp.pad(h, ((0, 0), (0, _PAD[0] - _DIMS[0])))
    for l in range(_NUM_LAYERS):
        n = weights[l].shape[1]
        z = jnp.dot(h.astype(jnp.bfloat16), weights[l],
                    preferred_element_type=jnp.float32) + b_pack[l:l + 1, :n]
        h = jnp.maximum(z, 0.0) if l < _NUM_LAYERS - 1 else z
    return h[:, :_DIMS[-1]]


# ------------------------------------ main -----------------------------------

if __name__ == "__main__":
    key = jax.random.PRNGKey(0)
    kx, kp = jax.random.split(key)

    batch = 8
    x = jax.random.normal(kx, (batch, 1, 28, 28), jnp.float32)
    weights, b_pack = init_params(kp)

    fwd = jax.jit(fc_forward)
    out = jax.block_until_ready(fwd(x, weights, b_pack))
    assert out.shape == (batch, 10)

    ref = fc_forward_ref(x, weights, b_pack)
    assert jnp.allclose(out, ref, atol=2e-2, rtol=2e-2), "mismatch vs JAX reference"

    print("KERNEL_OK")
</pallas_src>

<mosaic_0001>
module attributes {stable_mosaic.version = 11 : i64} {
  func.func @_fc_fused_kernel(%arg0: i32, %arg1: memref<8x896xf32, #tpu.memory_space<vmem>>, %arg2: memref<896x512xbf16, #tpu.memory_space<vmem>>, %arg3: memref<512x512xbf16, #tpu.memory_space<vmem>>, %arg4: memref<512x256xbf16, #tpu.memory_space<vmem>>, %arg5: memref<256x256xbf16, #tpu.memory_space<vmem>>, %arg6: memref<256x128xbf16, #tpu.memory_space<vmem>>, %arg7: memref<128x128xbf16, #tpu.memory_space<vmem>>, %arg8: memref<6x512xf32, #tpu.memory_space<vmem>>, %arg9: memref<8x128xf32, #tpu.memory_space<vmem>>) attributes {dimension_semantics = [#tpu.dimension_semantics<arbitrary>], iteration_bounds = array<i64: 1>, scalar_prefetch = 0 : i64, scratch_operands = 0 : i64, tpu.core_type = #tpu.core_type<tc>, window_params = [{pipeline_mode = #tpu.pipeline_mode<synchronous>, transform_indices = @transform_0, window_bounds = array<i64: 8, 896>}, {pipeline_mode = #tpu.pipeline_mode<synchronous>, transform_indices = @transform_1, window_bounds = array<i64: 896, 512>}, {pipeline_mode = #tpu.pipeline_mode<synchronous>, transform_indices = @transform_2, window_bounds = array<i64: 512, 512>}, {pipeline_mode = #tpu.pipeline_mode<synchronous>, transform_indices = @transform_3, window_bounds = array<i64: 512, 256>}, {pipeline_mode = #tpu.pipeline_mode<synchronous>, transform_indices = @transform_4, window_bounds = array<i64: 256, 256>}, {pipeline_mode = #tpu.pipeline_mode<synchronous>, transform_indices = @transform_5, window_bounds = array<i64: 256, 128>}, {pipeline_mode = #tpu.pipeline_mode<synchronous>, transform_indices = @transform_6, window_bounds = array<i64: 128, 128>}, {pipeline_mode = #tpu.pipeline_mode<synchronous>, transform_indices = @transform_7, window_bounds = array<i64: 6, 512>}, {pipeline_mode = #tpu.pipeline_mode<synchronous>, transform_indices = @transform_8, window_bounds = array<i64: 8, 128>}]} {
    %c0 = arith.constant 0 : index
    %c0_0 = arith.constant 0 : index
    %0 = vector.load %arg1[%c0, %c0_0] : memref<8x896xf32, #tpu.memory_space<vmem>>, vector<8x896xf32>
    %1 = arith.truncf %0 : vector<8x896xf32> to vector<8x896xbf16>
    %c0_1 = arith.constant 0 : index
    %c0_2 = arith.constant 0 : index
    %2 = vector.load %arg2[%c0_1, %c0_2] : memref<896x512xbf16, #tpu.memory_space<vmem>>, vector<896x512xbf16>
    %cst = arith.constant dense<0.000000e+00> : vector<8x512xf32>
    %3 = tpu.matmul %1, %2, %cst {dimension_numbers = #tpu.dot_dimension_numbers<[1], [0], [0], [1], [0, 0, 1, 1], [], []>} : vector<8x896xbf16>, vector<896x512xbf16>, vector<8x512xf32> -> vector<8x512xf32>
    %c0_3 = arith.constant 0 : index
    %c0_4 = arith.constant 0 : index
    %4 = vector.load %arg8[%c0_3, %c0_4] : memref<6x512xf32, #tpu.memory_space<vmem>>, vector<1x512xf32>
    %5 = vector.broadcast %4 : vector<1x512xf32> to vector<8x512xf32>
    %6 = arith.addf %3, %5 : vector<8x512xf32>
    %cst_5 = arith.constant 0.000000e+00 : f32
    %7 = vector.broadcast %cst_5 : f32 to vector<8x512xf32>
    %8 = arith.maximumf %6, %7 : vector<8x512xf32>
    %9 = arith.truncf %8 : vector<8x512xf32> to vector<8x512xbf16>
    %c0_6 = arith.constant 0 : index
    %c0_7 = arith.constant 0 : index
    %10 = vector.load %arg3[%c0_6, %c0_7] : memref<512x512xbf16, #tpu.memory_space<vmem>>, vector<512x512xbf16>
    %cst_8 = arith.constant dense<0.000000e+00> : vector<8x512xf32>
    %11 = tpu.matmul %9, %10, %cst_8 {dimension_numbers = #tpu.dot_dimension_numbers<[1], [0], [0], [1], [0, 0, 1, 1], [], []>} : vector<8x512xbf16>, vector<512x512xbf16>, vector<8x512xf32> -> vector<8x512xf32>
    %c1 = arith.constant 1 : index
    %c0_9 = arith.constant 0 : index
    %12 = vector.load %arg8[%c1, %c0_9] : memref<6x512xf32, #tpu.memory_space<vmem>>, vector<1x512xf32>
    %13 = vector.broadcast %12 : vector<1x512xf32> to vector<8x512xf32>
    %14 = arith.addf %11, %13 : vector<8x512xf32>
    %cst_10 = arith.constant 0.000000e+00 : f32
    %15 = vector.broadcast %cst_10 : f32 to vector<8x512xf32>
    %16 = arith.maximumf %14, %15 : vector<8x512xf32>
    %17 = arith.truncf %16 : vector<8x512xf32> to vector<8x512xbf16>
    %c0_11 = arith.constant 0 : index
    %c0_12 = arith.constant 0 : index
    %18 = vector.load %arg4[%c0_11, %c0_12] : memref<512x256xbf16, #tpu.memory_space<vmem>>, vector<512x256xbf16>
    %cst_13 = arith.constant dense<0.000000e+00> : vector<8x256xf32>
    %19 = tpu.matmul %17, %18, %cst_13 {dimension_numbers = #tpu.dot_dimension_numbers<[1], [0], [0], [1], [0, 0, 1, 1], [], []>} : vector<8x512xbf16>, vector<512x256xbf16>, vector<8x256xf32> -> vector<8x256xf32>
    %c2 = arith.constant 2 : index
    %c0_14 = arith.constant 0 : index
    %20 = vector.load %arg8[%c2, %c0_14] : memref<6x512xf32, #tpu.memory_space<vmem>>, vector<1x256xf32>
    %21 = vector.broadcast %20 : vector<1x256xf32> to vector<8x256xf32>
    %22 = arith.addf %19, %21 : vector<8x256xf32>
    %cst_15 = arith.constant 0.000000e+00 : f32
    %23 = vector.broadcast %cst_15 : f32 to vector<8x256xf32>
    %24 = arith.maximumf %22, %23 : vector<8x256xf32>
    %25 = arith.truncf %24 : vector<8x256xf32> to vector<8x256xbf16>
    %c0_16 = arith.constant 0 : index
    %c0_17 = arith.constant 0 : index
    %26 = vector.load %arg5[%c0_16, %c0_17] : memref<256x256xbf16, #tpu.memory_space<vmem>>, vector<256x256xbf16>
    %cst_18 = arith.constant dense<0.000000e+00> : vector<8x256xf32>
    %27 = tpu.matmul %25, %26, %cst_18 {dimension_numbers = #tpu.dot_dimension_numbers<[1], [0], [0], [1], [0, 0, 1, 1], [], []>} : vector<8x256xbf16>, vector<256x256xbf16>, vector<8x256xf32> -> vector<8x256xf32>
    %c3 = arith.constant 3 : index
    %c0_19 = arith.constant 0 : index
    %28 = vector.load %arg8[%c3, %c0_19] : memref<6x512xf32, #tpu.memory_space<vmem>>, vector<1x256xf32>
    %29 = vector.broadcast %28 : vector<1x256xf32> to vector<8x256xf32>
    %30 = arith.addf %27, %29 : vector<8x256xf32>
    %cst_20 = arith.constant 0.000000e+00 : f32
    %31 = vector.broadcast %cst_20 : f32 to vector<8x256xf32>
    %32 = arith.maximumf %30, %31 : vector<8x256xf32>
    %33 = arith.truncf %32 : vector<8x256xf32> to vector<8x256xbf16>
    %c0_21 = arith.constant 0 : index
    %c0_22 = arith.constant 0 : index
    %34 = vector.load %arg6[%c0_21, %c0_22] : memref<256x128xbf16, #tpu.memory_space<vmem>>, vector<256x128xbf16>
    %cst_23 = arith.constant dense<0.000000e+00> : vector<8x128xf32>
    %35 = tpu.matmul %33, %34, %cst_23 {dimension_numbers = #tpu.dot_dimension_numbers<[1], [0], [0], [1], [0, 0, 1, 1], [], []>} : vector<8x256xbf16>, vector<256x128xbf16>, vector<8x128xf32> -> vector<8x128xf32>
    %c4 = arith.constant 4 : index
    %c0_24 = arith.constant 0 : index
    %36 = vector.load %arg8[%c4, %c0_24] : memref<6x512xf32, #tpu.memory_space<vmem>>, vector<1x128xf32>
    %37 = vector.broadcast %36 : vector<1x128xf32> to vector<8x128xf32>
    %38 = arith.addf %35, %37 : vector<8x128xf32>
    %cst_25 = arith.constant 0.000000e+00 : f32
    %39 = vector.broadcast %cst_25 : f32 to vector<8x128xf32>
    %40 = arith.maximumf %38, %39 : vector<8x128xf32>
    %41 = arith.truncf %40 : vector<8x128xf32> to vector<8x128xbf16>
    %c0_26 = arith.constant 0 : index
    %c0_27 = arith.constant 0 : index
    %42 = vector.load %arg7[%c0_26, %c0_27] : memref<128x128xbf16, #tpu.memory_space<vmem>>, vector<128x128xbf16>
    %cst_28 = arith.constant dense<0.000000e+00> : vector<8x128xf32>
    %43 = tpu.matmul %41, %42, %cst_28 {dimension_numbers = #tpu.dot_dimension_numbers<[1], [0], [0], [1], [0, 0, 1, 1], [], []>} : vector<8x128xbf16>, vector<128x128xbf16>, vector<8x128xf32> -> vector<8x128xf32>
    %c5 = arith.constant 5 : index
    %c0_29 = arith.constant 0 : index
    %44 = vector.load %arg8[%c5, %c0_29] : memref<6x512xf32, #tpu.memory_space<vmem>>, vector<1x128xf32>
    %45 = vector.broadcast %44 : vector<1x128xf32> to vector<8x128xf32>
    %46 = arith.addf %43, %45 : vector<8x128xf32>
    %c0_30 = arith.constant 0 : index
    %c0_31 = arith.constant 0 : index
    %47 = vector.load %arg9[%c0_30, %c0_31] : memref<8x128xf32, #tpu.memory_space<vmem>>, vector<8x128xf32>
    tpu.vector_store %arg9[%c0_30, %c0_31], %46 {strides = array<i32>} : memref<8x128xf32, #tpu.memory_space<vmem>>, vector<8x128xf32>,
    return
  }
  func.func @transform_0(%arg0: i32) -> (i32, i32) {
    %c0_i32 = arith.constant 0 : i32
    %c0_i32_0 = arith.constant 0 : i32
    %c0_i32_1 = arith.constant 0 : i32
    return %c0_i32, %c0_i32_0 : i32, i32
  }
  func.func @transform_1(%arg0: i32) -> (i32, i32) {
    %c0_i32 = arith.constant 0 : i32
    %c0_i32_0 = arith.constant 0 : i32
    %c0_i32_1 = arith.constant 0 : i32
    return %c0_i32, %c0_i32_0 : i32, i32
  }
  func.func @transform_2(%arg0: i32) -> (i32, i32) {
    %c0_i32 = arith.constant 0 : i32
    %c0_i32_0 = arith.constant 0 : i32
    %c0_i32_1 = arith.constant 0 : i32
    return %c0_i32, %c0_i32_0 : i32, i32
  }
  func.func @transform_3(%arg0: i32) -> (i32, i32) {
    %c0_i32 = arith.constant 0 : i32
    %c0_i32_0 = arith.constant 0 : i32
    %c0_i32_1 = arith.constant 0 : i32
    return %c0_i32, %c0_i32_0 : i32, i32
  }
  func.func @transform_4(%arg0: i32) -> (i32, i32) {
    %c0_i32 = arith.constant 0 : i32
    %c0_i32_0 = arith.constant 0 : i32
    %c0_i32_1 = arith.constant 0 : i32
    return %c0_i32, %c0_i32_0 : i32, i32
  }
  func.func @transform_5(%arg0: i32) -> (i32, i32) {
    %c0_i32 = arith.constant 0 : i32
    %c0_i32_0 = arith.constant 0 : i32
    %c0_i32_1 = arith.constant 0 : i32
    return %c0_i32, %c0_i32_0 : i32, i32
  }
  func.func @transform_6(%arg0: i32) -> (i32, i32) {
    %c0_i32 = arith.constant 0 : i32
    %c0_i32_0 = arith.constant 0 : i32
    %c0_i32_1 = arith.constant 0 : i32
    return %c0_i32, %c0_i32_0 : i32, i32
  }
  func.func @transform_7(%arg0: i32) -> (i32, i32) {
    %c0_i32 = arith.constant 0 : i32
    %c0_i32_0 = arith.constant 0 : i32
    %c0_i32_1 = arith.constant 0 : i32
    return %c0_i32, %c0_i32_0 : i32, i32
  }
  func.func @transform_8(%arg0: i32) -> (i32, i32) {
    %c0_i32 = arith.constant 0 : i32
    %c0_i32_0 = arith.constant 0 : i32
    %c0_i32_1 = arith.constant 0 : i32
    return %c0_i32, %c0_i32_0 : i32, i32
  }
}

</mosaic_0001>

<llo_original>
// kernel: fc_forward.1
$region0: #{fc_forward.1}
  #allocation0 [shape = 'u32[]', space=smem, size = 0x4, offset = 0x4, fixed_abs, tag = 'smem constant byte address 0x4 - core index']
  #allocation1 [shape = 'u32[72,128]{1,0:T(1,128)}', space=vmem, size = 0x9000, scoped, tag = 'internal scratch']
  %s0 = inlined_call_operand.vmem [shape: f32[8,896], index: 0, kind: input, shape index: {}]
  %s1 = inlined_call_operand.hbm [shape: bf16[896,512], index: 1, kind: input, shape index: {}]
  %s2 = inlined_call_operand.hbm [shape: bf16[512,512], index: 2, kind: input, shape index: {}]
  %s3 = inlined_call_operand.vmem [shape: bf16[512,256], index: 3, kind: input, shape index: {}]
  %s4 = inlined_call_operand.vmem [shape: bf16[256,256], index: 4, kind: input, shape index: {}]
  %s5 = inlined_call_operand.vmem [shape: bf16[256,128], index: 5, kind: input, shape index: {}]
  %s6 = inlined_call_operand.hbm [shape: bf16[128,128], index: 6, kind: input, shape index: {}]
  %s7 = inlined_call_operand.hbm [shape: f32[6,512], index: 7, kind: input, shape index: {}]
  %s8 = inlined_call_operand.hbm [shape: f32[8,128], index: 8, kind: output, shape index: {}]
  %s9 = sld [smem:[#allocation0]]
  $region58: #{fc_forward.1} parent=0
    _
  %s11 = ssub.s32 1, %s9
  %s12 = scalar_select 0, %s11, %s9
  $region1: #{fc_forward.1} parent=0
    #allocation2 [shape = 'u8[917504]{0}', space=vmem, size = 0xe0000, scoped, tag = 'input window, operand 1, single buffered']
    #allocation3 [shape = 's32[1]{0}', space=sflag, size = 0x4, scoped, tag = 'scoped memory for fc_forward.1']
    #allocation4 [shape = 's32[1]{0}', space=sflag, size = 0x4, scoped, tag = 'scoped memory for fc_forward.1']
    #allocation5 [shape = 'u8[524288]{0}', space=vmem, size = 0x80000, scoped, tag = 'input window, operand 2, single buffered']
    #allocation6 [shape = 's32[1]{0}', space=sflag, size = 0x4, scoped, tag = 'scoped memory for fc_forward.1']
    #allocation7 [shape = 'u8[32768]{0}', space=vmem, size = 0x8000, scoped, tag = 'input window, operand 6, single buffered']
    #allocation8 [shape = 'u8[16384]{0}', space=vmem, size = 0x4000, scoped, tag = 'input window, operand 7, single buffered']
    #allocation9 [shape = 's32[1]{0}', space=sflag, size = 0x4, scoped, tag = 'scoped memory for fc_forward.1']
    #allocation10 [shape = 'u8[4096]{0}', space=vmem, size = 0x1000, scoped, tag = 'output window, operand 0, single buffered']
    %13 = vsyncpa [#allocation3], 0
    %14 = vsyncpa [#allocation6], 0
    %15 = vsyncpa [#allocation9], 0
    %16 = vsyncpa [#allocation4], 0
    // Predicated region
    $region2: #{fc_forward.1} parent=1 // pred_check
      _
    $region3: #{fc_forward.1} parent=1 // pred_check_branch
      %18 = sbr.rel (0) target = $region5
    $region4: #{fc_forward.1} parent=1 // pred_region
      _
    $region5: #{fc_forward.1} parent=1 // pred_fallthru
      _
    // Predicated region
    $region6: #{fc_forward.1} parent=1 // pred_check
      _
    $region7: #{fc_forward.1} parent=1 // pred_check_branch
      %20 = sbr.rel (0) target = $region9
    $region8: #{fc_forward.1} parent=1 // pred_region
      %22 = vsyncadd [#allocation3], 0
      %s23 = sshll.u32 %s1, 4
      %s24 = int_to_ptr.hbm [resolvable:$true] %s23
      %s25 = sshll.u32 [#allocation2], 4
      %s26 = int_to_ptr.vmem [resolvable:$true] %s25
      %31 = dma.hbm_to_vmem [thread:$0]  %s24, 28672, %s26, [#allocation3], 256, 256, 16
    $region9: #{fc_forward.1} parent=1 // pred_fallthru
      _
    // Predicated region
    $region10: #{fc_forward.1} parent=1 // pred_check
      _
    $region11: #{fc_forward.1} parent=1 // pred_check_branch
      %33 = sbr.rel (0) target = $region13
    $region12: #{fc_forward.1} parent=1 // pred_region
      %35 = vsyncadd [#allocation6], 0
      %s36 = sshll.u32 %s2, 4
      %s37 = int_to_ptr.hbm [resolvable:$true] %s36
      %s38 = sshll.u32 [#allocation5], 4
      %s39 = int_to_ptr.vmem [resolvable:$true] %s38
      %44 = dma.hbm_to_vmem [thread:$0]  %s37, 16384, %s39, [#allocation6], 256, 256, 16
    $region13: #{fc_forward.1} parent=1 // pred_fallthru
      _
    // Predicated region
    $region14: #{fc_forward.1} parent=1 // pred_check
      _
    $region15: #{fc_forward.1} parent=1 // pred_check_branch
      %46 = sbr.rel (0) target = $region17
    $region16: #{fc_forward.1} parent=1 // pred_region
      _
    $region17: #{fc_forward.1} parent=1 // pred_fallthru
      _
    // Predicated region
    $region18: #{fc_forward.1} parent=1 // pred_check
      _
    $region19: #{fc_forward.1} parent=1 // pred_check_branch
      %48 = sbr.rel (0) target = $region21
    $region20: #{fc_forward.1} parent=1 // pred_region
      _
    $region21: #{fc_forward.1} parent=1 // pred_fallthru
      _
    // Predicated region
    $region22: #{fc_forward.1} parent=1 // pred_check
      _
    $region23: #{fc_forward.1} parent=1 // pred_check_branch
      %50 = sbr.rel (0) target = $region25
    $region24: #{fc_forward.1} parent=1 // pred_region
      _
    $region25: #{fc_forward.1} parent=1 // pred_fallthru
      _
    // Predicated region
    $region26: #{fc_forward.1} parent=1 // pred_check
      _
    $region27: #{fc_forward.1} parent=1 // pred_check_branch
      %52 = sbr.rel (0) target = $region29
    $region28: #{fc_forward.1} parent=1 // pred_region
      %54 = vsyncadd [#allocation6], 0
      %s55 = sshll.u32 %s6, 4
      %s56 = int_to_ptr.hbm [resolvable:$true] %s55
      %s57 = sshll.u32 [#allocation7], 4
      %s58 = int_to_ptr.vmem [resolvable:$true] %s57
      %63 = dma.hbm_to_vmem [thread:$0]  %s56, 1024, %s58, [#allocation6], 64, 64, 4
    $region29: #{fc_forward.1} parent=1 // pred_fallthru
      _
    // Predicated region
    $region30: #{fc_forward.1} parent=1 // pred_check
      _
    $region31: #{fc_forward.1} parent=1 // pred_check_branch
      %65 = sbr.rel (0) target = $region33
    $region32: #{fc_forward.1} parent=1 // pred_region
      %67 = vsyncadd [#allocation9], 0
      %s69 = sshll.u32 %s7, 4
      %s70 = int_to_ptr.hbm [resolvable:$true] %s69
      %s71 = sshll.u32 [#allocation8], 4
      %s72 = int_to_ptr.vmem [resolvable:$true] %s71
      %74 = dma.hbm_to_vmem [thread:$0]  %s70, 512, %s72, [#allocation9]
    $region33: #{fc_forward.1} parent=1 // pred_fallthru
      _
    // Predicated region
    $region34: #{fc_forward.1} parent=1 // pred_check
      _
    $region35: #{fc_forward.1} parent=1 // pred_check_branch
      %76 = sbr.rel (0) target = $region37
    $region36: #{fc_forward.1} parent=1 // pred_region
      %78 = dma.done [#allocation3], 28672
    $region37: #{fc_forward.1} parent=1 // pred_fallthru
      _
    // Predicated region
    $region38: #{fc_forward.1} parent=1 // pred_check
      _
    $region39: #{fc_forward.1} parent=1 // pred_check_branch
      %80 = sbr.rel (0) target = $region41
    $region40: #{fc_forward.1} parent=1 // pred_region
      %82 = dma.done [#allocation6], 16384
    $region41: #{fc_forward.1} parent=1 // pred_fallthru
      _
    // Predicated region
    $region42: #{fc_forward.1} parent=1 // pred_check
      _
    $region43: #{fc_forward.1} parent=1 // pred_check_branch
      %84 = sbr.rel (0) target = $region45
    $region44: #{fc_forward.1} parent=1 // pred_region
      %86 = dma.done [#allocation6], 1024
    $region45: #{fc_forward.1} parent=1 // pred_fallthru
      _
    // Predicated region
    $region46: #{fc_forward.1} parent=1 // pred_check
      _
    $region47: #{fc_forward.1} parent=1 // pred_check_branch
      %88 = sbr.rel (0) target = $region49
    $region48: #{fc_forward.1} parent=1 // pred_region
      %90 = dma.done [#allocation9], 512
    $region49: #{fc_forward.1} parent=1 // pred_fallthru
      _
    %v91 = vld [vmem:[%s0] sm:$0xff]
    %v92 = vld [vmem:[%s0 + $0x8] sm:$0xff]
    %v93 = vld [vmem:[%s0 + $0x10] sm:$0xff]
    %v94 = vld [vmem:[%s0 + $0x18] sm:$0xff]
    %v95 = vld [vmem:[%s0 + $0x20] sm:$0xff]
    %v96 = vld [vmem:[%s0 + $0x28] sm:$0xff]
    %v97 = vld [vmem:[%s0 + $0x30] sm:$0xff]
    %v98 = vpack.c.bf16 %v91, %v91
    %v99 = vpack.c.bf16 %v92, %v92
    %v100 = vpack.c.bf16 %v93, %v93
    %v101 = vpack.c.bf16 %v94, %v94
    %v102 = vpack.c.bf16 %v95, %v95
    %v103 = vpack.c.bf16 %v96, %v96
    %v104 = vpack.c.bf16 %v97, %v97
    %v105 = vld [vmem:[#allocation2] sm:$0xff]
    %v106 = vld [vmem:[#allocation2 + $0x8] sm:$0xff]
    %v107 = vld [vmem:[#allocation2 + $0x10] sm:$0xff]
    %v108 = vld [vmem:[#allocation2 + $0x18] sm:$0xff]
    %v109 = vld [vmem:[#allocation2 + $0x20] sm:$0xff]
    %v110 = vld [vmem:[#allocation2 + $0x28] sm:$0xff]
    %v111 = vld [vmem:[#allocation2 + $0x30] sm:$0xff]
    %v112 = vld [vmem:[#allocation2 + $0x38] sm:$0xff]
    %v113 = vld [vmem:[#allocation2 + $0x40] sm:$0xff]
    %v114 = vld [vmem:[#allocation2 + $0x48] sm:$0xff]
    %v115 = vld [vmem:[#allocation2 + $0x50] sm:$0xff]
    %v116 = vld [vmem:[#allocation2 + $0x58] sm:$0xff]
    %v117 = vld [vmem:[#allocation2 + $0x60] sm:$0xff]
    %v118 = vld [vmem:[#allocation2 + $0x68] sm:$0xff]
    %v119 = vld [vmem:[#allocation2 + $0x70] sm:$0xff]
    %v120 = vld [vmem:[#allocation2 + $0x78] sm:$0xff]
    %v121 = vld [vmem:[#allocation2 + $0x80] sm:$0xff]
    %v122 = vld [vmem:[#allocation2 + $0x88] sm:$0xff]
    %v123 = vld [vmem:[#allocation2 + $0x90] sm:$0xff]
    %v124 = vld [vmem:[#allocation2 + $0x98] sm:$0xff]
    %v125 = vld [vmem:[#allocation2 + $0xa0] sm:$0xff]
    %v126 = vld [vmem:[#allocation2 + $0xa8] sm:$0xff]
    %v127 = vld [vmem:[#allocation2 + $0xb0] sm:$0xff]
    %v128 = vld [vmem:[#allocation2 + $0xb8] sm:$0xff]
    %v129 = vld [vmem:[#allocation2 + $0xc0] sm:$0xff]
    %v130 = vld [vmem:[#allocation2 + $0xc8] sm:$0xff]
    %v131 = vld [vmem:[#allocation2 + $0xd0] sm:$0xff]
    %v132 = vld [vmem:[#allocation2 + $0xd8] sm:$0xff]
    %v133 = vld [vmem:[#allocation2 + $0xe0] sm:$0xff]
    %v134 = vld [vmem:[#allocation2 + $0xe8] sm:$0xff]
    %v135 = vld [vmem:[#allocation2 + $0xf0] sm:$0xff]
    %v136 = vld [vmem:[#allocation2 + $0xf8] sm:$0xff]
    %v137 = vld [vmem:[#allocation2 + $0x100] sm:$0xff]
    %v138 = vld [vmem:[#allocation2 + $0x108] sm:$0xff]
    %v139 = vld [vmem:[#allocation2 + $0x110] sm:$0xff]
    %v140 = vld [vmem:[#allocation2 + $0x118] sm:$0xff]
    %v141 = vld [vmem:[#allocation2 + $0x120] sm:$0xff]
    %v142 = vld [vmem:[#allocation2 + $0x128] sm:$0xff]
    %v143 = vld [vmem:[#allocation2 + $0x130] sm:$0xff]
    %v144 = vld [vmem:[#allocation2 + $0x138] sm:$0xff]
    %v145 = vld [vmem:[#allocation2 + $0x140] sm:$0xff]
    %v146 = vld [vmem:[#allocation2 + $0x148] sm:$0xff]
    %v147 = vld [vmem:[#allocation2 + $0x150] sm:$0xff]
    %v148 = vld [vmem:[#allocation2 + $0x158] sm:$0xff]
    %v149 = vld [vmem:[#allocation2 + $0x160] sm:$0xff]
    %v150 = vld [vmem:[#allocation2 + $0x168] sm:$0xff]
    %v151 = vld [vmem:[#allocation2 + $0x170] sm:$0xff]
    %v152 = vld [vmem:[#allocation2 + $0x178] sm:$0xff]
    %v153 = vld [vmem:[#allocation2 + $0x180] sm:$0xff]
    %v154 = vld [vmem:[#allocation2 + $0x188] sm:$0xff]
    %v155 = vld [vmem:[#allocation2 + $0x190] sm:$0xff]
    %v156 = vld [vmem:[#allocation2 + $0x198] sm:$0xff]
    %v157 = vld [vmem:[#allocation2 + $0x1a0] sm:$0xff]
    %v158 = vld [vmem:[#allocation2 + $0x1a8] sm:$0xff]
    %v159 = vld [vmem:[#allocation2 + $0x1b0] sm:$0xff]
    %v160 = vld [vmem:[#allocation2 + $0x1b8] sm:$0xff]
    %v161 = vld [vmem:[#allocation2 + $0x1c0] sm:$0xff]
    %v162 = vld [vmem:[#allocation2 + $0x1c8] sm:$0xff]
    %v163 = vld [vmem:[#allocation2 + $0x1d0] sm:$0xff]
    %v164 = vld [vmem:[#allocation2 + $0x1d8] sm:$0xff]
    %v165 = vld [vmem:[#allocation2 + $0x1e0] sm:$0xff]
    %v166 = vld [vmem:[#allocation2 + $0x1e8] sm:$0xff]
    %v167 = vld [vmem:[#allocation2 + $0x1f0] sm:$0xff]
    %v168 = vld [vmem:[#allocation2 + $0x1f8] sm:$0xff]
    %v169 = vld [vmem:[#allocation2 + $0x200] sm:$0xff]
    %v170 = vld [vmem:[#allocation2 + $0x208] sm:$0xff]
    %v171 = vld [vmem:[#allocation2 + $0x210] sm:$0xff]
    %v172 = vld [vmem:[#allocation2 + $0x218] sm:$0xff]
    %v173 = vld [vmem:[#allocation2 + $0x220] sm:$0xff]
    %v174 = vld [vmem:[#allocation2 + $0x228] sm:$0xff]
    %v175 = vld [vmem:[#allocation2 + $0x230] sm:$0xff]
    %v176 = vld [vmem:[#allocation2 + $0x238] sm:$0xff]
    %v177 = vld [vmem:[#allocation2 + $0x240] sm:$0xff]
    %v178 = vld [vmem:[#allocation2 + $0x248] sm:$0xff]
    %v179 = vld [vmem:[#allocation2 + $0x250] sm:$0xff]
    %v180 = vld [vmem:[#allocation2 + $0x258] sm:$0xff]
    %v181 = vld [vmem:[#allocation2 + $0x260] sm:$0xff]
    %v182 = vld [vmem:[#allocation2 + $0x268] sm:$0xff]
    %v183 = vld [vmem:[#allocation2 + $0x270] sm:$0xff]
    %v184 = vld [vmem:[#allocation2 + $0x278] sm:$0xff]
    %v185 = vld [vmem:[#allocation2 + $0x280] sm:$0xff]
    %v186 = vld [vmem:[#allocation2 + $0x288] sm:$0xff]
    %v187 = vld [vmem:[#allocation2 + $0x290] sm:$0xff]
    %v188 = vld [vmem:[#allocation2 + $0x298] sm:$0xff]
    %v189 = vld [vmem:[#allocation2 + $0x2a0] sm:$0xff]
    %v190 = vld [vmem:[#allocation2 + $0x2a8] sm:$0xff]
    %v191 = vld [vmem:[#allocation2 + $0x2b0] sm:$0xff]
    %v192 = vld [vmem:[#allocation2 + $0x2b8] sm:$0xff]
    %v193 = vld [vmem:[#allocation2 + $0x2c0] sm:$0xff]
    %v194 = vld [vmem:[#allocation2 + $0x2c8] sm:$0xff]
    %v195 = vld [vmem:[#allocation2 + $0x2d0] sm:$0xff]
    %v196 = vld [vmem:[#allocation2 + $0x2d8] sm:$0xff]
    %v197 = vld [vmem:[#allocation2 + $0x2e0] sm:$0xff]
    %v198 = vld [vmem:[#allocation2 + $0x2e8] sm:$0xff]
    %v199 = vld [vmem:[#allocation2 + $0x2f0] sm:$0xff]
    %v200 = vld [vmem:[#allocation2 + $0x2f8] sm:$0xff]
    %v201 = vld [vmem:[#allocation2 + $0x300] sm:$0xff]
    %v202 = vld [vmem:[#allocation2 + $0x308] sm:$0xff]
    %v203 = vld [vmem:[#allocation2 + $0x310] sm:$0xff]
    %v204 = vld [vmem:[#allocation2 + $0x318] sm:$0xff]
    %v205 = vld [vmem:[#allocation2 + $0x320] sm:$0xff]
    %v206 = vld [vmem:[#allocation2 + $0x328] sm:$0xff]
    %v207 = vld [vmem:[#allocation2 + $0x330] sm:$0xff]
    %v208 = vld [vmem:[#allocation2 + $0x338] sm:$0xff]
    %v209 = vld [vmem:[#allocation2 + $0x340] sm:$0xff]
    %v210 = vld [vmem:[#allocation2 + $0x348] sm:$0xff]
    %v211 = vld [vmem:[#allocation2 + $0x350] sm:$0xff]
    %v212 = vld [vmem:[#allocation2 + $0x358] sm:$0xff]
    %v213 = vld [vmem:[#allocation2 + $0x360] sm:$0xff]
    %v214 = vld [vmem:[#allocation2 + $0x368] sm:$0xff]
    %v215 = vld [vmem:[#allocation2 + $0x370] sm:$0xff]
    %v216 = vld [vmem:[#allocation2 + $0x378] sm:$0xff]
    %v217 = vld [vmem:[#allocation2 + $0x380] sm:$0xff]
    %v218 = vld [vmem:[#allocation2 + $0x388] sm:$0xff]
    %v219 = vld [vmem:[#allocation2 + $0x390] sm:$0xff]
    %v220 = vld [vmem:[#allocation2 + $0x398] sm:$0xff]
    %v221 = vld [vmem:[#allocation2 + $0x3a0] sm:$0xff]
    %v222 = vld [vmem:[#allocation2 + $0x3a8] sm:$0xff]
    %v223 = vld [vmem:[#allocation2 + $0x3b0] sm:$0xff]
    %v224 = vld [vmem:[#allocation2 + $0x3b8] sm:$0xff]
    %v225 = vld [vmem:[#allocation2 + $0x3c0] sm:$0xff]
    %v226 = vld [vmem:[#allocation2 + $0x3c8] sm:$0xff]
    %v227 = vld [vmem:[#allocation2 + $0x3d0] sm:$0xff]
    %v228 = vld [vmem:[#allocation2 + $0x3d8] sm:$0xff]
    %v229 = vld [vmem:[#allocation2 + $0x3e0] sm:$0xff]
    %v230 = vld [vmem:[#allocation2 + $0x3e8] sm:$0xff]
    %v231 = vld [vmem:[#allocation2 + $0x3f0] sm:$0xff]
    %v232 = vld [vmem:[#allocation2 + $0x3f8] sm:$0xff]
    %v233 = vld [vmem:[#allocation2 + $0x400] sm:$0xff]
    %v234 = vld [vmem:[#allocation2 + $0x408] sm:$0xff]
    %v235 = vld [vmem:[#allocation2 + $0x410] sm:$0xff]
    %v236 = vld [vmem:[#allocation2 + $0x418] sm:$0xff]
    %v237 = vld [vmem:[#allocation2 + $0x420] sm:$0xff]
    %v238 = vld [vmem:[#allocation2 + $0x428] sm:$0xff]
    %v239 = vld [vmem:[#allocation2 + $0x430] sm:$0xff]
    %v240 = vld [vmem:[#allocation2 + $0x438] sm:$0xff]
    %v241 = vld [vmem:[#allocation2 + $0x440] sm:$0xff]
    %v242 = vld [vmem:[#allocation2 + $0x448] sm:$0xff]
    %v243 = vld [vmem:[#allocation2 + $0x450] sm:$0xff]
    %v244 = vld [vmem:[#allocation2 + $0x458] sm:$0xff]
    %v245 = vld [vmem:[#allocation2 + $0x460] sm:$0xff]
    %v246 = vld [vmem:[#allocation2 + $0x468] sm:$0xff]
    %v247 = vld [vmem:[#allocation2 + $0x470] sm:$0xff]
    %v248 = vld [vmem:[#allocation2 + $0x478] sm:$0xff]
    %v249 = vld [vmem:[#allocation2 + $0x480] sm:$0xff]
    %v250 = vld [vmem:[#allocation2 + $0x488] sm:$0xff]
    %v251 = vld [vmem:[#allocation2 + $0x490] sm:$0xff]
    %v252 = vld [vmem:[#allocation2 + $0x498] sm:$0xff]
    %v253 = vld [vmem:[#allocation2 + $0x4a0] sm:$0xff]
    %v254 = vld [vmem:[#allocation2 + $0x4a8] sm:$0xff]
    %v255 = vld [vmem:[#allocation2 + $0x4b0] sm:$0xff]
    %v256 = vld [vmem:[#allocation2 + $0x4b8] sm:$0xff]
    %v257 = vld [vmem:[#allocation2 + $0x4c0] sm:$0xff]
    %v258 = vld [vmem:[#allocation2 + $0x4c8] sm:$0xff]
    %v259 = vld [vmem:[#allocation2 + $0x4d0] sm:$0xff]
    %v260 = vld [vmem:[#allocation2 + $0x4d8] sm:$0xff]
    %v261 = vld [vmem:[#allocation2 + $0x4e0] sm:$0xff]
    %v262 = vld [vmem:[#allocation2 + $0x4e8] sm:$0xff]
    %v263 = vld [vmem:[#allocation2 + $0x4f0] sm:$0xff]
    %v264 = vld [vmem:[#allocation2 + $0x4f8] sm:$0xff]
    %v265 = vld [vmem:[#allocation2 + $0x500] sm:$0xff]
    %v266 = vld [vmem:[#allocation2 + $0x508] sm:$0xff]
    %v267 = vld [vmem:[#allocation2 + $0x510] sm:$0xff]
    %v268 = vld [vmem:[#allocation2 + $0x518] sm:$0xff]
    %v269 = vld [vmem:[#allocation2 + $0x520] sm:$0xff]
    %v270 = vld [vmem:[#allocation2 + $0x528] sm:$0xff]
    %v271 = vld [vmem:[#allocation2 + $0x530] sm:$0xff]
    %v272 = vld [vmem:[#allocation2 + $0x538] sm:$0xff]
    %v273 = vld [vmem:[#allocation2 + $0x540] sm:$0xff]
    %v274 = vld [vmem:[#allocation2 + $0x548] sm:$0xff]
    %v275 = vld [vmem:[#allocation2 + $0x550] sm:$0xff]
    %v276 = vld [vmem:[#allocation2 + $0x558] sm:$0xff]
    %v277 = vld [vmem:[#allocation2 + $0x560] sm:$0xff]
    %v278 = vld [vmem:[#allocation2 + $0x568] sm:$0xff]
    %v279 = vld [vmem:[#allocation2 + $0x570] sm:$0xff]
    %v280 = vld [vmem:[#allocation2 + $0x578] sm:$0xff]
    %v281 = vld [vmem:[#allocation2 + $0x580] sm:$0xff]
    %v282 = vld [vmem:[#allocation2 + $0x588] sm:$0xff]
    %v283 = vld [vmem:[#allocation2 + $0x590] sm:$0xff]
    %v284 = vld [vmem:[#allocation2 + $0x598] sm:$0xff]
    %v285 = vld [vmem:[#allocation2 + $0x5a0] sm:$0xff]
    %v286 = vld [vmem:[#allocation2 + $0x5a8] sm:$0xff]
    %v287 = vld [vmem:[#allocation2 + $0x5b0] sm:$0xff]
    %v288 = vld [vmem:[#allocation2 + $0x5b8] sm:$0xff]
    %v289 = vld [vmem:[#allocation2 + $0x5c0] sm:$0xff]
    %v290 = vld [vmem:[#allocation2 + $0x5c8] sm:$0xff]
    %v291 = vld [vmem:[#allocation2 + $0x5d0] sm:$0xff]
    %v292 = vld [vmem:[#allocation2 + $0x5d8] sm:$0xff]
    %v293 = vld [vmem:[#allocation2 + $0x5e0] sm:$0xff]
    %v294 = vld [vmem:[#allocation2 + $0x5e8] sm:$0xff]
    %v295 = vld [vmem:[#allocation2 + $0x5f0] sm:$0xff]
    %v296 = vld [vmem:[#allocation2 + $0x5f8] sm:$0xff]
    %v297 = vld [vmem:[#allocation2 + $0x600] sm:$0xff]
    %v298 = vld [vmem:[#allocation2 + $0x608] sm:$0xff]
    %v299 = vld [vmem:[#allocation2 + $0x610] sm:$0xff]
    %v300 = vld [vmem:[#allocation2 + $0x618] sm:$0xff]
    %v301 = vld [vmem:[#allocation2 + $0x620] sm:$0xff]
    %v302 = vld [vmem:[#allocation2 + $0x628] sm:$0xff]
    %v303 = vld [vmem:[#allocation2 + $0x630] sm:$0xff]
    %v304 = vld [vmem:[#allocation2 + $0x638] sm:$0xff]
    %v305 = vld [vmem:[#allocation2 + $0x640] sm:$0xff]
    %v306 = vld [vmem:[#allocation2 + $0x648] sm:$0xff]
    %v307 = vld [vmem:[#allocation2 + $0x650] sm:$0xff]
    %v308 = vld [vmem:[#allocation2 + $0x658] sm:$0xff]
    %v309 = vld [vmem:[#allocation2 + $0x660] sm:$0xff]
    %v310 = vld [vmem:[#allocation2 + $0x668] sm:$0xff]
    %v311 = vld [vmem:[#allocation2 + $0x670] sm:$0xff]
    %v312 = vld [vmem:[#allocation2 + $0x678] sm:$0xff]
    %v313 = vld [vmem:[#allocation2 + $0x680] sm:$0xff]
    %v314 = vld [vmem:[#allocation2 + $0x688] sm:$0xff]
    %v315 = vld [vmem:[#allocation2 + $0x690] sm:$0xff]
    %v316 = vld [vmem:[#allocation2 + $0x698] sm:$0xff]
    %v317 = vld [vmem:[#allocation2 + $0x6a0] sm:$0xff]
    %v318 = vld [vmem:[#allocation2 + $0x6a8] sm:$0xff]
    %v319 = vld [vmem:[#allocation2 + $0x6b0] sm:$0xff]
    %v320 = vld [vmem:[#allocation2 + $0x6b8] sm:$0xff]
    %v321 = vld [vmem:[#allocation2 + $0x6c0] sm:$0xff]
    %v322 = vld [vmem:[#allocation2 + $0x6c8] sm:$0xff]
    %v323 = vld [vmem:[#allocation2 + $0x6d0] sm:$0xff]
    %v324 = vld [vmem:[#allocation2 + $0x6d8] sm:$0xff]
    %v325 = vld [vmem:[#allocation2 + $0x6e0] sm:$0xff]
    %v326 = vld [vmem:[#allocation2 + $0x6e8] sm:$0xff]
    %v327 = vld [vmem:[#allocation2 + $0x6f0] sm:$0xff]
    %v328 = vld [vmem:[#allocation2 + $0x6f8] sm:$0xff]
    %v329 = vld [vmem:[#allocation8] ss:$8 sm:$0xf]
    %v331 = vperm.slane %v329, 0
    %v332 = vperm.slane %v329, 1
    %v333 = vperm.slane %v329, 2
    %v334 = vperm.slane %v329, 3
    %v563 = vunpack.c.l.b16 %v105
    %v564 = vunpack.c.h.b16 %v105
    %v565 = vunpack.c.l.b16 %v106
    %v566 = vunpack.c.h.b16 %v106
    %v567 = vunpack.c.l.b16 %v107
    %v568 = vunpack.c.h.b16 %v107
    %v569 = vunpack.c.l.b16 %v108
    %v570 = vunpack.c.h.b16 %v108
    %v571 = vunpack.c.l.b16 %v109
    %v572 = vunpack.c.h.b16 %v109
    %v573 = vunpack.c.l.b16 %v110
    %v574 = vunpack.c.h.b16 %v110
    %v575 = vunpack.c.l.b16 %v111
    %v576 = vunpack.c.h.b16 %v111
    %v577 = vunpack.c.l.b16 %v112
    %v578 = vunpack.c.h.b16 %v112
    %v579 = vunpack.c.l.b16 %v113
    %v580 = vunpack.c.h.b16 %v113
    %v581 = vunpack.c.l.b16 %v114
    %v582 = vunpack.c.h.b16 %v114
    %v583 = vunpack.c.l.b16 %v115
    %v584 = vunpack.c.h.b16 %v115
    %v585 = vunpack.c.l.b16 %v116
    %v586 = vunpack.c.h.b16 %v116
    %v587 = vunpack.c.l.b16 %v117
    %v588 = vunpack.c.h.b16 %v117
    %v589 = vunpack.c.l.b16 %v118
    %v590 = vunpack.c.h.b16 %v118
    %v591 = vunpack.c.l.b16 %v119
    %v592 = vunpack.c.h.b16 %v119
    %v593 = vunpack.c.l.b16 %v120
    %v594 = vunpack.c.h.b16 %v120
    %v595 = vunpack.c.l.b16 %v121
    %v596 = vunpack.c.h.b16 %v121
    %v597 = vunpack.c.l.b16 %v122
    %v598 = vunpack.c.h.b16 %v122
    %v599 = vunpack.c.l.b16 %v123
    %v600 = vunpack.c.h.b16 %v123
    %v601 = vunpack.c.l.b16 %v124
    %v602 = vunpack.c.h.b16 %v124
    %v603 = vunpack.c.l.b16 %v125
    %v604 = vunpack.c.h.b16 %v125
    %v605 = vunpack.c.l.b16 %v126
    %v606 = vunpack.c.h.b16 %v126
    %v607 = vunpack.c.l.b16 %v127
    %v608 = vunpack.c.h.b16 %v127
    %v609 = vunpack.c.l.b16 %v128
    %v610 = vunpack.c.h.b16 %v128
    %v611 = vunpack.c.l.b16 %v129
    %v612 = vunpack.c.h.b16 %v129
    %v613 = vunpack.c.l.b16 %v130
    %v614 = vunpack.c.h.b16 %v130
    %v615 = vunpack.c.l.b16 %v131
    %v616 = vunpack.c.h.b16 %v131
    %v617 = vunpack.c.l.b16 %v132
    %v618 = vunpack.c.h.b16 %v132
    %v619 = vunpack.c.l.b16 %v133
    %v620 = vunpack.c.h.b16 %v133
    %v621 = vunpack.c.l.b16 %v134
    %v622 = vunpack.c.h.b16 %v134
    %v623 = vunpack.c.l.b16 %v135
    %v624 = vunpack.c.h.b16 %v135
    %v625 = vunpack.c.l.b16 %v136
    %v626 = vunpack.c.h.b16 %v136
    %v627 = vunpack.c.l.b16 %v137
    %v628 = vunpack.c.h.b16 %v137
    %v629 = vunpack.c.l.b16 %v138
    %v630 = vunpack.c.h.b16 %v138
    %v631 = vunpack.c.l.b16 %v139
    %v632 = vunpack.c.h.b16 %v139
    %v633 = vunpack.c.l.b16 %v140
    %v634 = vunpack.c.h.b16 %v140
    %v635 = vunpack.c.l.b16 %v141
    %v636 = vunpack.c.h.b16 %v141
    %v637 = vunpack.c.l.b16 %v142
    %v638 = vunpack.c.h.b16 %v142
    %v639 = vunpack.c.l.b16 %v143
    %v640 = vunpack.c.h.b16 %v143
    %v641 = vunpack.c.l.b16 %v144
    %v642 = vunpack.c.h.b16 %v144
    %v643 = vunpack.c.l.b16 %v145
    %v644 = vunpack.c.h.b16 %v145
    %v645 = vunpack.c.l.b16 %v146
    %v646 = vunpack.c.h.b16 %v146
    %v647 = vunpack.c.l.b16 %v147
    %v648 = vunpack.c.h.b16 %v147
    %v649 = vunpack.c.l.b16 %v148
    %v650 = vunpack.c.h.b16 %v148
    %v651 = vunpack.c.l.b16 %v149
    %v652 = vunpack.c.h.b16 %v149
    %v653 = vunpack.c.l.b16 %v150
    %v654 = vunpack.c.h.b16 %v150
    %v655 = vunpack.c.l.b16 %v151
    %v656 = vunpack.c.h.b16 %v151
    %v657 = vunpack.c.l.b16 %v152
    %v658 = vunpack.c.h.b16 %v152
    %v659 = vunpack.c.l.b16 %v153
    %v660 = vunpack.c.h.b16 %v153
    %v661 = vunpack.c.l.b16 %v154
    %v662 = vunpack.c.h.b16 %v154
    %v663 = vunpack.c.l.b16 %v155
    %v664 = vunpack.c.h.b16 %v155
    %v665 = vunpack.c.l.b16 %v156
    %v666 = vunpack.c.h.b16 %v156
    %v667 = vunpack.c.l.b16 %v157
    %v668 = vunpack.c.h.b16 %v157
    %v669 = vunpack.c.l.b16 %v158
    %v670 = vunpack.c.h.b16 %v158
    %v671 = vunpack.c.l.b16 %v159
    %v672 = vunpack.c.h.b16 %v159
    %v673 = vunpack.c.l.b16 %v160
    %v674 = vunpack.c.h.b16 %v160
    %v675 = vunpack.c.l.b16 %v161
    %v676 = vunpack.c.h.b16 %v161
    %v677 = vunpack.c.l.b16 %v162
    %v678 = vunpack.c.h.b16 %v162
    %v679 = vunpack.c.l.b16 %v163
    %v680 = vunpack.c.h.b16 %v163
    %v681 = vunpack.c.l.b16 %v164
    %v682 = vunpack.c.h.b16 %v164
    %v683 = vunpack.c.l.b16 %v165
    %v684 = vunpack.c.h.b16 %v165
    %v685 = vunpack.c.l.b16 %v166
    %v686 = vunpack.c.h.b16 %v166
    %v687 = vunpack.c.l.b16 %v167
    %v688 = vunpack.c.h.b16 %v167
    %v689 = vunpack.c.l.b16 %v168
    %v690 = vunpack.c.h.b16 %v168
    %v691 = vunpack.c.l.b16 %v169
    %v692 = vunpack.c.h.b16 %v169
    %v693 = vunpack.c.l.b16 %v170
    %v694 = vunpack.c.h.b16 %v170
    %v695 = vunpack.c.l.b16 %v171
    %v696 = vunpack.c.h.b16 %v171
    %v697 = vunpack.c.l.b16 %v172
    %v698 = vunpack.c.h.b16 %v172
    %v699 = vunpack.c.l.b16 %v173
    %v700 = vunpack.c.h.b16 %v173
    %v701 = vunpack.c.l.b16 %v174
    %v702 = vunpack.c.h.b16 %v174
    %v703 = vunpack.c.l.b16 %v175
    %v704 = vunpack.c.h.b16 %v175
    %v705 = vunpack.c.l.b16 %v176
    %v706 = vunpack.c.h.b16 %v176
    %v707 = vunpack.c.l.b16 %v177
    %v708 = vunpack.c.h.b16 %v177
    %v709 = vunpack.c.l.b16 %v178
    %v710 = vunpack.c.h.b16 %v178
    %v711 = vunpack.c.l.b16 %v179
    %v712 = vunpack.c.h.b16 %v179
    %v713 = vunpack.c.l.b16 %v180
    %v714 = vunpack.c.h.b16 %v180
    %v715 = vunpack.c.l.b16 %v181
    %v716 = vunpack.c.h.b16 %v181
    %v717 = vunpack.c.l.b16 %v182
    %v718 = vunpack.c.h.b16 %v182
    %v719 = vunpack.c.l.b16 %v183
    %v720 = vunpack.c.h.b16 %v183
    %v721 = vunpack.c.l.b16 %v184
    %v722 = vunpack.c.h.b16 %v184
    %v723 = vunpack.c.l.b16 %v185
    %v724 = vunpack.c.h.b16 %v185
    %v725 = vunpack.c.l.b16 %v186
    %v726 = vunpack.c.h.b16 %v186
    %v727 = vunpack.c.l.b16 %v187
    %v728 = vunpack.c.h.b16 %v187
    %v729 = vunpack.c.l.b16 %v188
    %v730 = vunpack.c.h.b16 %v188
    %v731 = vunpack.c.l.b16 %v189
    %v732 = vunpack.c.h.b16 %v189
    %v733 = vunpack.c.l.b16 %v190
    %v734 = vunpack.c.h.b16 %v190
    %v735 = vunpack.c.l.b16 %v191
    %v736 = vunpack.c.h.b16 %v191
    %v737 = vunpack.c.l.b16 %v192
    %v738 = vunpack.c.h.b16 %v192
    %v739 = vunpack.c.l.b16 %v193
    %v740 = vunpack.c.h.b16 %v193
    %v741 = vunpack.c.l.b16 %v194
    %v742 = vunpack.c.h.b16 %v194
    %v743 = vunpack.c.l.b16 %v195
    %v744 = vunpack.c.h.b16 %v195
    %v745 = vunpack.c.l.b16 %v196
    %v746 = vunpack.c.h.b16 %v196
    %v747 = vunpack.c.l.b16 %v197
    %v748 = vunpack.c.h.b16 %v197
    %v749 = vunpack.c.l.b16 %v198
    %v750 = vunpack.c.h.b16 %v198
    %v751 = vunpack.c.l.b16 %v199
    %v752 = vunpack.c.h.b16 %v199
    %v753 = vunpack.c.l.b16 %v200
    %v754 = vunpack.c.h.b16 %v200
    %v755 = vunpack.c.l.b16 %v201
    %v756 = vunpack.c.h.b16 %v201
    %v757 = vunpack.c.l.b16 %v202
    %v758 = vunpack.c.h.b16 %v202
    %v759 = vunpack.c.l.b16 %v203
    %v760 = vunpack.c.h.b16 %v203
    %v761 = vunpack.c.l.b16 %v204
    %v762 = vunpack.c.h.b16 %v204
    %v763 = vunpack.c.l.b16 %v205
    %v764 = vunpack.c.h.b16 %v205
    %v765 = vunpack.c.l.b16 %v206
    %v766 = vunpack.c.h.b16 %v206
    %v767 = vunpack.c.l.b16 %v207
    %v768 = vunpack.c.h.b16 %v207
    %v769 = vunpack.c.l.b16 %v208
    %v770 = vunpack.c.h.b16 %v208
    %v771 = vunpack.c.l.b16 %v209
    %v772 = vunpack.c.h.b16 %v209
    %v773 = vunpack.c.l.b16 %v210
    %v774 = vunpack.c.h.b16 %v210
    %v775 = vunpack.c.l.b16 %v211
    %v776 = vunpack.c.h.b16 %v211
    %v777 = vunpack.c.l.b16 %v212
    %v778 = vunpack.c.h.b16 %v212
    %v779 = vunpack.c.l.b16 %v213
    %v780 = vunpack.c.h.b16 %v213
    %v781 = vunpack.c.l.b16 %v214
    %v782 = vunpack.c.h.b16 %v214
    %v783 = vunpack.c.l.b16 %v215
    %v784 = vunpack.c.h.b16 %v215
    %v785 = vunpack.c.l.b16 %v216
    %v786 = vunpack.c.h.b16 %v216
    %v787 = vunpack.c.l.b16 %v217
    %v788 = vunpack.c.h.b16 %v217
    %v789 = vunpack.c.l.b16 %v218
    %v790 = vunpack.c.h.b16 %v218
    %v791 = vunpack.c.l.b16 %v219
    %v792 = vunpack.c.h.b16 %v219
    %v793 = vunpack.c.l.b16 %v220
    %v794 = vunpack.c.h.b16 %v220
    %v795 = vunpack.c.l.b16 %v221
    %v796 = vunpack.c.h.b16 %v221
    %v797 = vunpack.c.l.b16 %v222
    %v798 = vunpack.c.h.b16 %v222
    %v799 = vunpack.c.l.b16 %v223
    %v800 = vunpack.c.h.b16 %v223
    %v801 = vunpack.c.l.b16 %v224
    %v802 = vunpack.c.h.b16 %v224
    %v803 = vunpack.c.l.b16 %v225
    %v804 = vunpack.c.h.b16 %v225
    %v805 = vunpack.c.l.b16 %v226
    %v806 = vunpack.c.h.b16 %v226
    %v807 = vunpack.c.l.b16 %v227
    %v808 = vunpack.c.h.b16 %v227
    %v809 = vunpack.c.l.b16 %v228
    %v810 = vunpack.c.h.b16 %v228
    %v811 = vunpack.c.l.b16 %v229
    %v812 = vunpack.c.h.b16 %v229
    %v813 = vunpack.c.l.b16 %v230
    %v814 = vunpack.c.h.b16 %v230
    %v815 = vunpack.c.l.b16 %v231
    %v816 = vunpack.c.h.b16 %v231
    %v817 = vunpack.c.l.b16 %v232
    %v818 = vunpack.c.h.b16 %v232
    %v819 = vunpack.c.l.b16 %v233
    %v820 = vunpack.c.h.b16 %v233
    %v821 = vunpack.c.l.b16 %v234
    %v822 = vunpack.c.h.b16 %v234
    %v823 = vunpack.c.l.b16 %v235
    %v824 = vunpack.c.h.b16 %v235
    %v825 = vunpack.c.l.b16 %v236
    %v826 = vunpack.c.h.b16 %v236
    %v827 = vunpack.c.l.b16 %v237
    %v828 = vunpack.c.h.b16 %v237
    %v829 = vunpack.c.l.b16 %v238
    %v830 = vunpack.c.h.b16 %v238
    %v831 = vunpack.c.l.b16 %v239
    %v832 = vunpack.c.h.b16 %v239
    %v833 = vunpack.c.l.b16 %v240
    %v834 = vunpack.c.h.b16 %v240
    %v835 = vunpack.c.l.b16 %v241
    %v836 = vunpack.c.h.b16 %v241
    %v837 = vunpack.c.l.b16 %v242
    %v838 = vunpack.c.h.b16 %v242
    %v839 = vunpack.c.l.b16 %v243
    %v840 = vunpack.c.h.b16 %v243
    %v841 = vunpack.c.l.b16 %v244
    %v842 = vunpack.c.h.b16 %v244
    %v843 = vunpack.c.l.b16 %v245
    %v844 = vunpack.c.h.b16 %v245
    %v845 = vunpack.c.l.b16 %v246
    %v846 = vunpack.c.h.b16 %v246
    %v847 = vunpack.c.l.b16 %v247
    %v848 = vunpack.c.h.b16 %v247
    %v849 = vunpack.c.l.b16 %v248
    %v850 = vunpack.c.h.b16 %v248
    %v851 = vunpack.c.l.b16 %v249
    %v852 = vunpack.c.h.b16 %v249
    %v853 = vunpack.c.l.b16 %v250
    %v854 = vunpack.c.h.b16 %v250
    %v855 = vunpack.c.l.b16 %v251
    %v856 = vunpack.c.h.b16 %v251
    %v857 = vunpack.c.l.b16 %v252
    %v858 = vunpack.c.h.b16 %v252
    %v859 = vunpack.c.l.b16 %v253
    %v860 = vunpack.c.h.b16 %v253
    %v861 = vunpack.c.l.b16 %v254
    %v862 = vunpack.c.h.b16 %v254
    %v863 = vunpack.c.l.b16 %v255
    %v864 = vunpack.c.h.b16 %v255
    %v865 = vunpack.c.l.b16 %v256
    %v866 = vunpack.c.h.b16 %v256
    %v867 = vunpack.c.l.b16 %v257
    %v868 = vunpack.c.h.b16 %v257
    %v869 = vunpack.c.l.b16 %v258
    %v870 = vunpack.c.h.b16 %v258
    %v871 = vunpack.c.l.b16 %v259
    %v872 = vunpack.c.h.b16 %v259
    %v873 = vunpack.c.l.b16 %v260
    %v874 = vunpack.c.h.b16 %v260
    %v875 = vunpack.c.l.b16 %v261
    %v876 = vunpack.c.h.b16 %v261
    %v877 = vunpack.c.l.b16 %v262
    %v878 = vunpack.c.h.b16 %v262
    %v879 = vunpack.c.l.b16 %v263
    %v880 = vunpack.c.h.b16 %v263
    %v881 = vunpack.c.l.b16 %v264
    %v882 = vunpack.c.h.b16 %v264
    %v883 = vunpack.c.l.b16 %v265
    %v884 = vunpack.c.h.b16 %v265
    %v885 = vunpack.c.l.b16 %v266
    %v886 = vunpack.c.h.b16 %v266
    %v887 = vunpack.c.l.b16 %v267
    %v888 = vunpack.c.h.b16 %v267
    %v889 = vunpack.c.l.b16 %v268
    %v890 = vunpack.c.h.b16 %v268
    %v891 = vunpack.c.l.b16 %v269
    %v892 = vunpack.c.h.b16 %v269
    %v893 = vunpack.c.l.b16 %v270
    %v894 = vunpack.c.h.b16 %v270
    %v895 = vunpack.c.l.b16 %v271
    %v896 = vunpack.c.h.b16 %v271
    %v897 = vunpack.c.l.b16 %v272
    %v898 = vunpack.c.h.b16 %v272
    %v899 = vunpack.c.l.b16 %v273
    %v900 = vunpack.c.h.b16 %v273
    %v901 = vunpack.c.l.b16 %v274
    %v902 = vunpack.c.h.b16 %v274
    %v903 = vunpack.c.l.b16 %v275
    %v904 = vunpack.c.h.b16 %v275
    %v905 = vunpack.c.l.b16 %v276
    %v906 = vunpack.c.h.b16 %v276
    %v907 = vunpack.c.l.b16 %v277
    %v908 = vunpack.c.h.b16 %v277
    %v909 = vunpack.c.l.b16 %v278
    %v910 = vunpack.c.h.b16 %v278
    %v911 = vunpack.c.l.b16 %v279
    %v912 = vunpack.c.h.b16 %v279
    %v913 = vunpack.c.l.b16 %v280
    %v914 = vunpack.c.h.b16 %v280
    %v915 = vunpack.c.l.b16 %v281
    %v916 = vunpack.c.h.b16 %v281
    %v917 = vunpack.c.l.b16 %v282
    %v918 = vunpack.c.h.b16 %v282
    %v919 = vunpack.c.l.b16 %v283
    %v920 = vunpack.c.h.b16 %v283
    %v921 = vunpack.c.l.b16 %v284
    %v922 = vunpack.c.h.b16 %v284
    %v923 = vunpack.c.l.b16 %v285
    %v924 = vunpack.c.h.b16 %v285
    %v925 = vunpack.c.l.b16 %v286
    %v926 = vunpack.c.h.b16 %v286
    %v927 = vunpack.c.l.b16 %v287
    %v928 = vunpack.c.h.b16 %v287
    %v929 = vunpack.c.l.b16 %v288
    %v930 = vunpack.c.h.b16 %v288
    %v931 = vunpack.c.l.b16 %v289
    %v932 = vunpack.c.h.b16 %v289
    %v933 = vunpack.c.l.b16 %v290
    %v934 = vunpack.c.h.b16 %v290
    %v935 = vunpack.c.l.b16 %v291
    %v936 = vunpack.c.h.b16 %v291
    %v937 = vunpack.c.l.b16 %v292
    %v938 = vunpack.c.h.b16 %v292
    %v939 = vunpack.c.l.b16 %v293
    %v940 = vunpack.c.h.b16 %v293
    %v941 = vunpack.c.l.b16 %v294
    %v942 = vunpack.c.h.b16 %v294
    %v943 = vunpack.c.l.b16 %v295
    %v944 = vunpack.c.h.b16 %v295
    %v945 = vunpack.c.l.b16 %v296
    %v946 = vunpack.c.h.b16 %v296
    %v947 = vunpack.c.l.b16 %v297
    %v948 = vunpack.c.h.b16 %v297
    %v949 = vunpack.c.l.b16 %v298
    %v950 = vunpack.c.h.b16 %v298
    %v951 = vunpack.c.l.b16 %v299
    %v952 = vunpack.c.h.b16 %v299
    %v953 = vunpack.c.l.b16 %v300
    %v954 = vunpack.c.h.b16 %v300
    %v955 = vunpack.c.l.b16 %v301
    %v956 = vunpack.c.h.b16 %v301
    %v957 = vunpack.c.l.b16 %v302
    %v958 = vunpack.c.h.b16 %v302
    %v959 = vunpack.c.l.b16 %v303
    %v960 = vunpack.c.h.b16 %v303
    %v961 = vunpack.c.l.b16 %v304
    %v962 = vunpack.c.h.b16 %v304
    %v963 = vunpack.c.l.b16 %v305
    %v964 = vunpack.c.h.b16 %v305
    %v965 = vunpack.c.l.b16 %v306
    %v966 = vunpack.c.h.b16 %v306
    %v967 = vunpack.c.l.b16 %v307
    %v968 = vunpack.c.h.b16 %v307
    %v969 = vunpack.c.l.b16 %v308
    %v970 = vunpack.c.h.b16 %v308
    %v971 = vunpack.c.l.b16 %v309
    %v972 = vunpack.c.h.b16 %v309
    %v973 = vunpack.c.l.b16 %v310
    %v974 = vunpack.c.h.b16 %v310
    %v975 = vunpack.c.l.b16 %v311
    %v976 = vunpack.c.h.b16 %v311
    %v977 = vunpack.c.l.b16 %v312
    %v978 = vunpack.c.h.b16 %v312
    %v979 = vunpack.c.l.b16 %v313
    %v980 = vunpack.c.h.b16 %v313
    %v981 = vunpack.c.l.b16 %v314
    %v982 = vunpack.c.h.b16 %v314
    %v983 = vunpack.c.l.b16 %v315
    %v984 = vunpack.c.h.b16 %v315
    %v985 = vunpack.c.l.b16 %v316
    %v986 = vunpack.c.h.b16 %v316
    %v987 = vunpack.c.l.b16 %v317
    %v988 = vunpack.c.h.b16 %v317
    %v989 = vunpack.c.l.b16 %v318
    %v990 = vunpack.c.h.b16 %v318
    %v991 = vunpack.c.l.b16 %v319
    %v992 = vunpack.c.h.b16 %v319
    %v993 = vunpack.c.l.b16 %v320
    %v994 = vunpack.c.h.b16 %v320
    %v995 = vunpack.c.l.b16 %v321
    %v996 = vunpack.c.h.b16 %v321
    %v997 = vunpack.c.l.b16 %v322
    %v998 = vunpack.c.h.b16 %v322
    %v999 = vunpack.c.l.b16 %v323
    %v1000 = vunpack.c.h.b16 %v323
    %v1001 = vunpack.c.l.b16 %v324
    %v1002 = vunpack.c.h.b16 %v324
    %v1003 = vunpack.c.l.b16 %v325
    %v1004 = vunpack.c.h.b16 %v325
    %v1005 = vunpack.c.l.b16 %v326
    %v1006 = vunpack.c.h.b16 %v326
    %v1007 = vunpack.c.l.b16 %v327
    %v1008 = vunpack.c.h.b16 %v327
    %v1009 = vunpack.c.l.b16 %v328
    %v1010 = vunpack.c.h.b16 %v328
    %v1011 = vpack.c.b16 %v567, %v563
    %v1012 = vpack.c.b16 %v568, %v564
    %v1013 = vpack.c.b16 %v569, %v565
    %v1014 = vpack.c.b16 %v570, %v566
    %v1015 = vpack.c.b16 %v575, %v571
    %v1016 = vpack.c.b16 %v576, %v572
    %v1017 = vpack.c.b16 %v577, %v573
    %v1018 = vpack.c.b16 %v578, %v574
    %v1019 = vpack.c.b16 %v583, %v579
    %v1020 = vpack.c.b16 %v584, %v580
    %v1021 = vpack.c.b16 %v585, %v581
    %v1022 = vpack.c.b16 %v586, %v582
    %v1023 = vpack.c.b16 %v591, %v587
    %v1024 = vpack.c.b16 %v592, %v588
    %v1025 = vpack.c.b16 %v593, %v589
    %v1026 = vpack.c.b16 %v594, %v590
    %v1027 = vpack.c.b16 %v599, %v595
    %v1028 = vpack.c.b16 %v600, %v596
    %v1029 = vpack.c.b16 %v601, %v597
    %v1030 = vpack.c.b16 %v602, %v598
    %v1031 = vpack.c.b16 %v607, %v603
    %v1032 = vpack.c.b16 %v608, %v604
    %v1033 = vpack.c.b16 %v609, %v605
    %v1034 = vpack.c.b16 %v610, %v606
    %v1035 = vpack.c.b16 %v615, %v611
    %v1036 = vpack.c.b16 %v616, %v612
    %v1037 = vpack.c.b16 %v617, %v613
    %v1038 = vpack.c.b16 %v618, %v614
    %v1039 = vpack.c.b16 %v623, %v619
    %v1040 = vpack.c.b16 %v624, %v620
    %v1041 = vpack.c.b16 %v625, %v621
    %v1042 = vpack.c.b16 %v626, %v622
    %v1043 = vpack.c.b16 %v631, %v627
    %v1044 = vpack.c.b16 %v632, %v628
    %v1045 = vpack.c.b16 %v633, %v629
    %v1046 = vpack.c.b16 %v634, %v630
    %v1047 = vpack.c.b16 %v639, %v635
    %v1048 = vpack.c.b16 %v640, %v636
    %v1049 = vpack.c.b16 %v641, %v637
    %v1050 = vpack.c.b16 %v642, %v638
    %v1051 = vpack.c.b16 %v647, %v643
    %v1052 = vpack.c.b16 %v648, %v644
    %v1053 = vpack.c.b16 %v649, %v645
    %v1054 = vpack.c.b16 %v650, %v646
    %v1055 = vpack.c.b16 %v655, %v651
    %v1056 = vpack.c.b16 %v656, %v652
    %v1057 = vpack.c.b16 %v657, %v653
    %v1058 = vpack.c.b16 %v658, %v654
    %v1059 = vpack.c.b16 %v663, %v659
    %v1060 = vpack.c.b16 %v664, %v660
    %v1061 = vpack.c.b16 %v665, %v661
    %v1062 = vpack.c.b16 %v666, %v662
    %v1063 = vpack.c.b16 %v671, %v667
    %v1064 = vpack.c.b16 %v672, %v668
    %v1065 = vpack.c.b16 %v673, %v669
    %v1066 = vpack.c.b16 %v674, %v670
    %v1067 = vpack.c.b16 %v679, %v675
    %v1068 = vpack.c.b16 %v680, %v676
    %v1069 = vpack.c.b16 %v681, %v677
    %v1070 = vpack.c.b16 %v682, %v678
    %v1071 = vpack.c.b16 %v687, %v683
    %v1072 = vpack.c.b16 %v688, %v684
    %v1073 = vpack.c.b16 %v689, %v685
    %v1074 = vpack.c.b16 %v690, %v686
    %v1075 = vpack.c.b16 %v695, %v691
    %v1076 = vpack.c.b16 %v696, %v692
    %v1077 = vpack.c.b16 %v697, %v693
    %v1078 = vpack.c.b16 %v698, %v694
    %v1079 = vpack.c.b16 %v703, %v699
    %v1080 = vpack.c.b16 %v704, %v700
    %v1081 = vpack.c.b16 %v705, %v701
    %v1082 = vpack.c.b16 %v706, %v702
    %v1083 = vpack.c.b16 %v711, %v707
    %v1084 = vpack.c.b16 %v712, %v708
    %v1085 = vpack.c.b16 %v713, %v709
    %v1086 = vpack.c.b16 %v714, %v710
    %v1087 = vpack.c.b16 %v719, %v715
    %v1088 = vpack.c.b16 %v720, %v716
    %v1089 = vpack.c.b16 %v721, %v717
    %v1090 = vpack.c.b16 %v722, %v718
    %v1091 = vpack.c.b16 %v727, %v723
    %v1092 = vpack.c.b16 %v728, %v724
    %v1093 = vpack.c.b16 %v729, %v725
    %v1094 = vpack.c.b16 %v730, %v726
    %v1095 = vpack.c.b16 %v735, %v731
    %v1096 = vpack.c.b16 %v736, %v732
    %v1097 = vpack.c.b16 %v737, %v733
    %v1098 = vpack.c.b16 %v738, %v734
    %v1099 = vpack.c.b16 %v743, %v739
    %v1100 = vpack.c.b16 %v744, %v740
    %v1101 = vpack.c.b16 %v745, %v741
    %v1102 = vpack.c.b16 %v746, %v742
    %v1103 = vpack.c.b16 %v751, %v747
    %v1104 = vpack.c.b16 %v752, %v748
    %v1105 = vpack.c.b16 %v753, %v749
    %v1106 = vpack.c.b16 %v754, %v750
    %v1107 = vpack.c.b16 %v759, %v755
    %v1108 = vpack.c.b16 %v760, %v756
    %v1109 = vpack.c.b16 %v761, %v757
    %v1110 = vpack.c.b16 %v762, %v758
    %v1111 = vpack.c.b16 %v767, %v763
    %v1112 = vpack.c.b16 %v768, %v764
    %v1113 = vpack.c.b16 %v769, %v765
    %v1114 = vpack.c.b16 %v770, %v766
    %v1115 = vpack.c.b16 %v775, %v771
    %v1116 = vpack.c.b16 %v776, %v772
    %v1117 = vpack.c.b16 %v777, %v773
    %v1118 = vpack.c.b16 %v778, %v774
    %v1119 = vpack.c.b16 %v783, %v779
    %v1120 = vpack.c.b16 %v784, %v780
    %v1121 = vpack.c.b16 %v785, %v781
    %v1122 = vpack.c.b16 %v786, %v782
    %v1123 = vpack.c.b16 %v791, %v787
    %v1124 = vpack.c.b16 %v792, %v788
    %v1125 = vpack.c.b16 %v793, %v789
    %v1126 = vpack.c.b16 %v794, %v790
    %v1127 = vpack.c.b16 %v799, %v795
    %v1128 = vpack.c.b16 %v800, %v796
    %v1129 = vpack.c.b16 %v801, %v797
    %v1130 = vpack.c.b16 %v802, %v798
    %v1131 = vpack.c.b16 %v807, %v803
    %v1132 = vpack.c.b16 %v808, %v804
    %v1133 = vpack.c.b16 %v809, %v805
    %v1134 = vpack.c.b16 %v810, %v806
    %v1135 = vpack.c.b16 %v815, %v811
    %v1136 = vpack.c.b16 %v816, %v812
    %v1137 = vpack.c.b16 %v817, %v813
    %v1138 = vpack.c.b16 %v818, %v814
    %v1139 = vpack.c.b16 %v823, %v819
    %v1140 = vpack.c.b16 %v824, %v820
    %v1141 = vpack.c.b16 %v825, %v821
    %v1142 = vpack.c.b16 %v826, %v822
    %v1143 = vpack.c.b16 %v831, %v827
    %v1144 = vpack.c.b16 %v832, %v828
    %v1145 = vpack.c.b16 %v833, %v829
    %v1146 = vpack.c.b16 %v834, %v830
    %v1147 = vpack.c.b16 %v839, %v835
    %v1148 = vpack.c.b16 %v840, %v836
    %v1149 = vpack.c.b16 %v841, %v837
    %v1150 = vpack.c.b16 %v842, %v838
    %v1151 = vpack.c.b16 %v847, %v843
    %v1152 = vpack.c.b16 %v848, %v844
    %v1153 = vpack.c.b16 %v849, %v845
    %v1154 = vpack.c.b16 %v850, %v846
    %v1155 = vpack.c.b16 %v855, %v851
    %v1156 = vpack.c.b16 %v856, %v852
    %v1157 = vpack.c.b16 %v857, %v853
    %v1158 = vpack.c.b16 %v858, %v854
    %v1159 = vpack.c.b16 %v863, %v859
    %v1160 = vpack.c.b16 %v864, %v860
    %v1161 = vpack.c.b16 %v865, %v861
    %v1162 = vpack.c.b16 %v866, %v862
    %v1163 = vpack.c.b16 %v871, %v867
    %v1164 = vpack.c.b16 %v872, %v868
    %v1165 = vpack.c.b16 %v873, %v869
    %v1166 = vpack.c.b16 %v874, %v870
    %v1167 = vpack.c.b16 %v879, %v875
    %v1168 = vpack.c.b16 %v880, %v876
    %v1169 = vpack.c.b16 %v881, %v877
    %v1170 = vpack.c.b16 %v882, %v878
    %v1171 = vpack.c.b16 %v887, %v883
    %v1172 = vpack.c.b16 %v888, %v884
    %v1173 = vpack.c.b16 %v889, %v885
    %v1174 = vpack.c.b16 %v890, %v886
    %v1175 = vpack.c.b16 %v895, %v891
    %v1176 = vpack.c.b16 %v896, %v892
    %v1177 = vpack.c.b16 %v897, %v893
    %v1178 = vpack.c.b16 %v898, %v894
    %v1179 = vpack.c.b16 %v903, %v899
    %v1180 = vpack.c.b16 %v904, %v900
    %v1181 = vpack.c.b16 %v905, %v901
    %v1182 = vpack.c.b16 %v906, %v902
    %v1183 = vpack.c.b16 %v911, %v907
    %v1184 = vpack.c.b16 %v912, %v908
    %v1185 = vpack.c.b16 %v913, %v909
    %v1186 = vpack.c.b16 %v914, %v910
    %v1187 = vpack.c.b16 %v919, %v915
    %v1188 = vpack.c.b16 %v920, %v916
    %v1189 = vpack.c.b16 %v921, %v917
    %v1190 = vpack.c.b16 %v922, %v918
    %v1191 = vpack.c.b16 %v927, %v923
    %v1192 = vpack.c.b16 %v928, %v924
    %v1193 = vpack.c.b16 %v929, %v925
    %v1194 = vpack.c.b16 %v930, %v926
    %v1195 = vpack.c.b16 %v935, %v931
    %v1196 = vpack.c.b16 %v936, %v932
    %v1197 = vpack.c.b16 %v937, %v933
    %v1198 = vpack.c.b16 %v938, %v934
    %v1199 = vpack.c.b16 %v943, %v939
    %v1200 = vpack.c.b16 %v944, %v940
    %v1201 = vpack.c.b16 %v945, %v941
    %v1202 = vpack.c.b16 %v946, %v942
    %v1203 = vpack.c.b16 %v951, %v947
    %v1204 = vpack.c.b16 %v952, %v948
    %v1205 = vpack.c.b16 %v953, %v949
    %v1206 = vpack.c.b16 %v954, %v950
    %v1207 = vpack.c.b16 %v959, %v955
    %v1208 = vpack.c.b16 %v960, %v956
    %v1209 = vpack.c.b16 %v961, %v957
    %v1210 = vpack.c.b16 %v962, %v958
    %v1211 = vpack.c.b16 %v967, %v963
    %v1212 = vpack.c.b16 %v968, %v964
    %v1213 = vpack.c.b16 %v969, %v965
    %v1214 = vpack.c.b16 %v970, %v966
    %v1215 = vpack.c.b16 %v975, %v971
    %v1216 = vpack.c.b16 %v976, %v972
    %v1217 = vpack.c.b16 %v977, %v973
    %v1218 = vpack.c.b16 %v978, %v974
    %v1219 = vpack.c.b16 %v983, %v979
    %v1220 = vpack.c.b16 %v984, %v980
    %v1221 = vpack.c.b16 %v985, %v981
    %v1222 = vpack.c.b16 %v986, %v982
    %v1223 = vpack.c.b16 %v991, %v987
    %v1224 = vpack.c.b16 %v992, %v988
    %v1225 = vpack.c.b16 %v993, %v989
    %v1226 = vpack.c.b16 %v994, %v990
    %v1227 = vpack.c.b16 %v999, %v995
    %v1228 = vpack.c.b16 %v1000, %v996
    %v1229 = vpack.c.b16 %v1001, %v997
    %v1230 = vpack.c.b16 %v1002, %v998
    %v1231 = vpack.c.b16 %v1007, %v1003
    %v1232 = vpack.c.b16 %v1008, %v1004
    %v1233 = vpack.c.b16 %v1009, %v1005
    %v1234 = vpack.c.b16 %v1010, %v1006
    %1459 = vmatpush.bf16.msra.mxu0 %v1039
    %1460 = vmatpush.bf16.msra.mxu0 %v1035
    %1461 = vmatpush.bf16.msra.mxu0 %v1031
    %1462 = vmatpush.bf16.msra.mxu0 %v1027
    %1463 = vmatpush.bf16.msra.mxu0 %v1023
    %1464 = vmatpush.bf16.msra.mxu0 %v1019
    %1465 = vmatpush.bf16.msra.mxu0 %v1015
    %1466 = vmatpush.bf16.msra.mxu0 %v1011
    %1467 = vmatmul.bf16.gmra.mxu0 %v98
    %v1468 = vpop.f32.mrf.mxu0
    %v1469 = vadd.f32 %v331, %v1468
    %v1470 = vpop.f32.mrf.mxu0
    %1471 = vdwg.mxu0
    %1472 = vmatpush.bf16.msra.mxu0 %v1071
    %1473 = vmatpush.bf16.msra.mxu0 %v1067
    %1474 = vmatpush.bf16.msra.mxu0 %v1063
    %1475 = vmatpush.bf16.msra.mxu0 %v1059
    %1476 = vmatpush.bf16.msra.mxu0 %v1055
    %1477 = vmatpush.bf16.msra.mxu0 %v1051
    %1478 = vmatpush.bf16.msra.mxu0 %v1047
    %1479 = vmatpush.bf16.msra.mxu0 %v1043
    %1480 = vmatmul.bf16.gmra.mxu0 %v99
    %v1481 = vpop.f32.mrf.mxu0
    %v1482 = vadd.f32 %v1469, %v1481
    %v1483 = vpop.f32.mrf.mxu0
    %1484 = vdwg.mxu0
    %1485 = vmatpush.bf16.msra.mxu0 %v1103
    %1486 = vmatpush.bf16.msra.mxu0 %v1099
    %1487 = vmatpush.bf16.msra.mxu0 %v1095
    %1488 = vmatpush.bf16.msra.mxu0 %v1091
    %1489 = vmatpush.bf16.msra.mxu0 %v1087
    %1490 = vmatpush.bf16.msra.mxu0 %v1083
    %1491 = vmatpush.bf16.msra.mxu0 %v1079
    %1492 = vmatpush.bf16.msra.mxu0 %v1075
    %1493 = vmatmul.bf16.gmra.mxu0 %v100
    %v1494 = vpop.f32.mrf.mxu0
    %v1495 = vadd.f32 %v1482, %v1494
    %v1496 = vpop.f32.mrf.mxu0
    %1497 = vdwg.mxu0
    %1498 = vmatpush.bf16.msra.mxu0 %v1135
    %1499 = vmatpush.bf16.msra.mxu0 %v1131
    %1500 = vmatpush.bf16.msra.mxu0 %v1127
    %1501 = vmatpush.bf16.msra.mxu0 %v1123
    %1502 = vmatpush.bf16.msra.mxu0 %v1119
    %1503 = vmatpush.bf16.msra.mxu0 %v1115
    %1504 = vmatpush.bf16.msra.mxu0 %v1111
    %1505 = vmatpush.bf16.msra.mxu0 %v1107
    %1506 = vmatmul.bf16.gmra.mxu0 %v101
    %v1507 = vpop.f32.mrf.mxu0
    %v1508 = vadd.f32 %v1495, %v1507
    %v1509 = vpop.f32.mrf.mxu0
    %1510 = vdwg.mxu0
    %1511 = vmatpush.bf16.msra.mxu0 %v1167
    %1512 = vmatpush.bf16.msra.mxu0 %v1163
    %1513 = vmatpush.bf16.msra.mxu0 %v1159
    %1514 = vmatpush.bf16.msra.mxu0 %v1155
    %1515 = vmatpush.bf16.msra.mxu0 %v1151
    %1516 = vmatpush.bf16.msra.mxu0 %v1147
    %1517 = vmatpush.bf16.msra.mxu0 %v1143
    %1518 = vmatpush.bf16.msra.mxu0 %v1139
    %1519 = vmatmul.bf16.gmra.mxu0 %v102
    %v1520 = vpop.f32.mrf.mxu0
    %v1521 = vadd.f32 %v1508, %v1520
    %v1522 = vpop.f32.mrf.mxu0
    %1523 = vdwg.mxu0
    %1524 = vmatpush.bf16.msra.mxu0 %v1199
    %1525 = vmatpush.bf16.msra.mxu0 %v1195
    %1526 = vmatpush.bf16.msra.mxu0 %v1191
    %1527 = vmatpush.bf16.msra.mxu0 %v1187
    %1528 = vmatpush.bf16.msra.mxu0 %v1183
    %1529 = vmatpush.bf16.msra.mxu0 %v1179
    %1530 = vmatpush.bf16.msra.mxu0 %v1175
    %1531 = vmatpush.bf16.msra.mxu0 %v1171
    %1532 = vmatmul.bf16.gmra.mxu0 %v103
    %v1533 = vpop.f32.mrf.mxu0
    %v1534 = vadd.f32 %v1521, %v1533
    %v1535 = vpop.f32.mrf.mxu0
    %1536 = vdwg.mxu0
    %1537 = vmatpush.bf16.msra.mxu0 %v1231
    %1538 = vmatpush.bf16.msra.mxu0 %v1227
    %1539 = vmatpush.bf16.msra.mxu0 %v1223
    %1540 = vmatpush.bf16.msra.mxu0 %v1219
    %1541 = vmatpush.bf16.msra.mxu0 %v1215
    %1542 = vmatpush.bf16.msra.mxu0 %v1211
    %1543 = vmatpush.bf16.msra.mxu0 %v1207
    %1544 = vmatpush.bf16.msra.mxu0 %v1203
    %1545 = vmatmul.bf16.gmra.mxu0 %v104
    %v1546 = vpop.f32.mrf.mxu0
    %v1547 = vadd.f32 %v1534, %v1546
    %v1548 = vpop.f32.mrf.mxu0
    %1549 = vdwg.mxu0
    %1550 = vmatpush.bf16.msra.mxu0 %v1040
    %1551 = vmatpush.bf16.msra.mxu0 %v1036
    %1552 = vmatpush.bf16.msra.mxu0 %v1032
    %1553 = vmatpush.bf16.msra.mxu0 %v1028
    %1554 = vmatpush.bf16.msra.mxu0 %v1024
    %1555 = vmatpush.bf16.msra.mxu0 %v1020
    %1556 = vmatpush.bf16.msra.mxu0 %v1016
    %1557 = vmatpush.bf16.msra.mxu0 %v1012
    %1558 = vmatmul.bf16.gmra.mxu0 %v98
    %v1559 = vpop.f32.mrf.mxu0
    %v1560 = vadd.f32 %v332, %v1559
    %v1561 = vpop.f32.mrf.mxu0
    %1562 = vdwg.mxu0
    %1563 = vmatpush.bf16.msra.mxu0 %v1072
    %1564 = vmatpush.bf16.msra.mxu0 %v1068
    %1565 = vmatpush.bf16.msra.mxu0 %v1064
    %1566 = vmatpush.bf16.msra.mxu0 %v1060
    %1567 = vmatpush.bf16.msra.mxu0 %v1056
    %1568 = vmatpush.bf16.msra.mxu0 %v1052
    %1569 = vmatpush.bf16.msra.mxu0 %v1048
    %1570 = vmatpush.bf16.msra.mxu0 %v1044
    %1571 = vmatmul.bf16.gmra.mxu0 %v99
    %v1572 = vpop.f32.mrf.mxu0
    %v1573 = vadd.f32 %v1560, %v1572
    %v1574 = vpop.f32.mrf.mxu0
    %1575 = vdwg.mxu0
    %1576 = vmatpush.bf16.msra.mxu0 %v1104
    %1577 = vmatpush.bf16.msra.mxu0 %v1100
    %1578 = vmatpush.bf16.msra.mxu0 %v1096
    %1579 = vmatpush.bf16.msra.mxu0 %v1092
    %1580 = vmatpush.bf16.msra.mxu0 %v1088
    %1581 = vmatpush.bf16.msra.mxu0 %v1084
    %1582 = vmatpush.bf16.msra.mxu0 %v1080
    %1583 = vmatpush.bf16.msra.mxu0 %v1076
    %1584 = vmatmul.bf16.gmra.mxu0 %v100
    %v1585 = vpop.f32.mrf.mxu0
    %v1586 = vadd.f32 %v1573, %v1585
    %v1587 = vpop.f32.mrf.mxu0
    %1588 = vdwg.mxu0
    %1589 = vmatpush.bf16.msra.mxu0 %v1136
    %1590 = vmatpush.bf16.msra.mxu0 %v1132
    %1591 = vmatpush.bf16.msra.mxu0 %v1128
    %1592 = vmatpush.bf16.msra.mxu0 %v1124
    %1593 = vmatpush.bf16.msra.mxu0 %v1120
    %1594 = vmatpush.bf16.msra.mxu0 %v1116
    %1595 = vmatpush.bf16.msra.mxu0 %v1112
    %1596 = vmatpush.bf16.msra.mxu0 %v1108
    %1597 = vmatmul.bf16.gmra.mxu0 %v101
    %v1598 = vpop.f32.mrf.mxu0
    %v1599 = vadd.f32 %v1586, %v1598
    %v1600 = vpop.f32.mrf.mxu0
    %1601 = vdwg.mxu0
    %1602 = vmatpush.bf16.msra.mxu0 %v1168
    %1603 = vmatpush.bf16.msra.mxu0 %v1164
    %1604 = vmatpush.bf16.msra.mxu0 %v1160
    %1605 = vmatpush.bf16.msra.mxu0 %v1156
    %1606 = vmatpush.bf16.msra.mxu0 %v1152
    %1607 = vmatpush.bf16.msra.mxu0 %v1148
    %1608 = vmatpush.bf16.msra.mxu0 %v1144
    %1609 = vmatpush.bf16.msra.mxu0 %v1140
    %1610 = vmatmul.bf16.gmra.mxu0 %v102
    %v1611 = vpop.f32.mrf.mxu0
    %v1612 = vadd.f32 %v1599, %v1611
    %v1613 = vpop.f32.mrf.mxu0
    %1614 = vdwg.mxu0
    %1615 = vmatpush.bf16.msra.mxu0 %v1200
    %1616 = vmatpush.bf16.msra.mxu0 %v1196
    %1617 = vmatpush.bf16.msra.mxu0 %v1192
    %1618 = vmatpush.bf16.msra.mxu0 %v1188
    %1619 = vmatpush.bf16.msra.mxu0 %v1184
    %1620 = vmatpush.bf16.msra.mxu0 %v1180
    %1621 = vmatpush.bf16.msra.mxu0 %v1176
    %1622 = vmatpush.bf16.msra.mxu0 %v1172
    %1623 = vmatmul.bf16.gmra.mxu0 %v103
    %v1624 = vpop.f32.mrf.mxu0
    %v1625 = vadd.f32 %v1612, %v1624
    %v1626 = vpop.f32.mrf.mxu0
    %1627 = vdwg.mxu0
    %1628 = vmatpush.bf16.msra.mxu0 %v1232
    %1629 = vmatpush.bf16.msra.mxu0 %v1228
    %1630 = vmatpush.bf16.msra.mxu0 %v1224
    %1631 = vmatpush.bf16.msra.mxu0 %v1220
    %1632 = vmatpush.bf16.msra.mxu0 %v1216
    %1633 = vmatpush.bf16.msra.mxu0 %v1212
    %1634 = vmatpush.bf16.msra.mxu0 %v1208
    %1635 = vmatpush.bf16.msra.mxu0 %v1204
    %1636 = vmatmul.bf16.gmra.mxu0 %v104
    %v1637 = vpop.f32.mrf.mxu0
    %v1638 = vadd.f32 %v1625, %v1637
    %v1639 = vpop.f32.mrf.mxu0
    %1640 = vdwg.mxu0
    %1641 = vmatpush.bf16.msra.mxu0 %v1041
    %1642 = vmatpush.bf16.msra.mxu0 %v1037
    %1643 = vmatpush.bf16.msra.mxu0 %v1033
    %1644 = vmatpush.bf16.msra.mxu0 %v1029
    %1645 = vmatpush.bf16.msra.mxu0 %v1025
    %1646 = vmatpush.bf16.msra.mxu0 %v1021
    %1647 = vmatpush.bf16.msra.mxu0 %v1017
    %1648 = vmatpush.bf16.msra.mxu0 %v1013
    %1649 = vmatmul.bf16.gmra.mxu0 %v98
    %v1650 = vpop.f32.mrf.mxu0
    %v1651 = vadd.f32 %v333, %v1650
    %v1652 = vpop.f32.mrf.mxu0
    %1653 = vdwg.mxu0
    %1654 = vmatpush.bf16.msra.mxu0 %v1073
    %1655 = vmatpush.bf16.msra.mxu0 %v1069
    %1656 = vmatpush.bf16.msra.mxu0 %v1065
    %1657 = vmatpush.bf16.msra.mxu0 %v1061
    %1658 = vmatpush.bf16.msra.mxu0 %v1057
    %1659 = vmatpush.bf16.msra.mxu0 %v1053
    %1660 = vmatpush.bf16.msra.mxu0 %v1049
    %1661 = vmatpush.bf16.msra.mxu0 %v1045
    %1662 = vmatmul.bf16.gmra.mxu0 %v99
    %v1663 = vpop.f32.mrf.mxu0
    %v1664 = vadd.f32 %v1651, %v1663
    %v1665 = vpop.f32.mrf.mxu0
    %1666 = vdwg.mxu0
    %1667 = vmatpush.bf16.msra.mxu0 %v1105
    %1668 = vmatpush.bf16.msra.mxu0 %v1101
    %1669 = vmatpush.bf16.msra.mxu0 %v1097
    %1670 = vmatpush.bf16.msra.mxu0 %v1093
    %1671 = vmatpush.bf16.msra.mxu0 %v1089
    %1672 = vmatpush.bf16.msra.mxu0 %v1085
    %1673 = vmatpush.bf16.msra.mxu0 %v1081
    %1674 = vmatpush.bf16.msra.mxu0 %v1077
    %1675 = vmatmul.bf16.gmra.mxu0 %v100
    %v1676 = vpop.f32.mrf.mxu0
    %v1677 = vadd.f32 %v1664, %v1676
    %v1678 = vpop.f32.mrf.mxu0
    %1679 = vdwg.mxu0
    %1680 = vmatpush.bf16.msra.mxu0 %v1137
    %1681 = vmatpush.bf16.msra.mxu0 %v1133
    %1682 = vmatpush.bf16.msra.mxu0 %v1129
    %1683 = vmatpush.bf16.msra.mxu0 %v1125
    %1684 = vmatpush.bf16.msra.mxu0 %v1121
    %1685 = vmatpush.bf16.msra.mxu0 %v1117
    %1686 = vmatpush.bf16.msra.mxu0 %v1113
    %1687 = vmatpush.bf16.msra.mxu0 %v1109
    %1688 = vmatmul.bf16.gmra.mxu0 %v101
    %v1689 = vpop.f32.mrf.mxu0
    %v1690 = vadd.f32 %v1677, %v1689
    %v1691 = vpop.f32.mrf.mxu0
    %1692 = vdwg.mxu0
    %1693 = vmatpush.bf16.msra.mxu0 %v1169
    %1694 = vmatpush.bf16.msra.mxu0 %v1165
    %1695 = vmatpush.bf16.msra.mxu0 %v1161
    %1696 = vmatpush.bf16.msra.mxu0 %v1157
    %1697 = vmatpush.bf16.msra.mxu0 %v1153
    %1698 = vmatpush.bf16.msra.mxu0 %v1149
    %1699 = vmatpush.bf16.msra.mxu0 %v1145
    %1700 = vmatpush.bf16.msra.mxu0 %v1141
    %1701 = vmatmul.bf16.gmra.mxu0 %v102
    %v1702 = vpop.f32.mrf.mxu0
    %v1703 = vadd.f32 %v1690, %v1702
    %v1704 = vpop.f32.mrf.mxu0
    %1705 = vdwg.mxu0
    %1706 = vmatpush.bf16.msra.mxu0 %v1201
    %1707 = vmatpush.bf16.msra.mxu0 %v1197
    %1708 = vmatpush.bf16.msra.mxu0 %v1193
    %1709 = vmatpush.bf16.msra.mxu0 %v1189
    %1710 = vmatpush.bf16.msra.mxu0 %v1185
    %1711 = vmatpush.bf16.msra.mxu0 %v1181
    %1712 = vmatpush.bf16.msra.mxu0 %v1177
    %1713 = vmatpush.bf16.msra.mxu0 %v1173
    %1714 = vmatmul.bf16.gmra.mxu0 %v103
    %v1715 = vpop.f32.mrf.mxu0
    %v1716 = vadd.f32 %v1703, %v1715
    %v1717 = vpop.f32.mrf.mxu0
    %1718 = vdwg.mxu0
    %1719 = vmatpush.bf16.msra.mxu0 %v1233
    %1720 = vmatpush.bf16.msra.mxu0 %v1229
    %1721 = vmatpush.bf16.msra.mxu0 %v1225
    %1722 = vmatpush.bf16.msra.mxu0 %v1221
    %1723 = vmatpush.bf16.msra.mxu0 %v1217
    %1724 = vmatpush.bf16.msra.mxu0 %v1213
    %1725 = vmatpush.bf16.msra.mxu0 %v1209
    %1726 = vmatpush.bf16.msra.mxu0 %v1205
    %1727 = vmatmul.bf16.gmra.mxu0 %v104
    %v1728 = vpop.f32.mrf.mxu0
    %v1729 = vadd.f32 %v1716, %v1728
    %v1730 = vpop.f32.mrf.mxu0
    %1731 = vdwg.mxu0
    %1732 = vmatpush.bf16.msra.mxu0 %v1042
    %1733 = vmatpush.bf16.msra.mxu0 %v1038
    %1734 = vmatpush.bf16.msra.mxu0 %v1034
    %1735 = vmatpush.bf16.msra.mxu0 %v1030
    %1736 = vmatpush.bf16.msra.mxu0 %v1026
    %1737 = vmatpush.bf16.msra.mxu0 %v1022
    %1738 = vmatpush.bf16.msra.mxu0 %v1018
    %1739 = vmatpush.bf16.msra.mxu0 %v1014
    %1740 = vmatmul.bf16.gmra.mxu0 %v98
    %v1741 = vpop.f32.mrf.mxu0
    %v1742 = vadd.f32 %v334, %v1741
    %v1743 = vpop.f32.mrf.mxu0
    %1744 = vdwg.mxu0
    %1745 = vmatpush.bf16.msra.mxu0 %v1074
    %1746 = vmatpush.bf16.msra.mxu0 %v1070
    %1747 = vmatpush.bf16.msra.mxu0 %v1066
    %1748 = vmatpush.bf16.msra.mxu0 %v1062
    %1749 = vmatpush.bf16.msra.mxu0 %v1058
    %1750 = vmatpush.bf16.msra.mxu0 %v1054
    %1751 = vmatpush.bf16.msra.mxu0 %v1050
    %1752 = vmatpush.bf16.msra.mxu0 %v1046
    %1753 = vmatmul.bf16.gmra.mxu0 %v99
    %v1754 = vpop.f32.mrf.mxu0
    %v1755 = vadd.f32 %v1742, %v1754
    %v1756 = vpop.f32.mrf.mxu0
    %1757 = vdwg.mxu0
    %1758 = vmatpush.bf16.msra.mxu0 %v1106
    %1759 = vmatpush.bf16.msra.mxu0 %v1102
    %1760 = vmatpush.bf16.msra.mxu0 %v1098
    %1761 = vmatpush.bf16.msra.mxu0 %v1094
    %1762 = vmatpush.bf16.msra.mxu0 %v1090
    %1763 = vmatpush.bf16.msra.mxu0 %v1086
    %1764 = vmatpush.bf16.msra.mxu0 %v1082
    %1765 = vmatpush.bf16.msra.mxu0 %v1078
    %1766 = vmatmul.bf16.gmra.mxu0 %v100
    %v1767 = vpop.f32.mrf.mxu0
    %v1768 = vadd.f32 %v1755, %v1767
    %v1769 = vpop.f32.mrf.mxu0
    %1770 = vdwg.mxu0
    %1771 = vmatpush.bf16.msra.mxu0 %v1138
    %1772 = vmatpush.bf16.msra.mxu0 %v1134
    %1773 = vmatpush.bf16.msra.mxu0 %v1130
    %1774 = vmatpush.bf16.msra.mxu0 %v1126
    %1775 = vmatpush.bf16.msra.mxu0 %v1122
    %1776 = vmatpush.bf16.msra.mxu0 %v1118
    %1777 = vmatpush.bf16.msra.mxu0 %v1114
    %1778 = vmatpush.bf16.msra.mxu0 %v1110
    %1779 = vmatmul.bf16.gmra.mxu0 %v101
    %v1780 = vpop.f32.mrf.mxu0
    %v1781 = vadd.f32 %v1768, %v1780
    %v1782 = vpop.f32.mrf.mxu0
    %1783 = vdwg.mxu0
    %1784 = vmatpush.bf16.msra.mxu0 %v1170
    %1785 = vmatpush.bf16.msra.mxu0 %v1166
    %1786 = vmatpush.bf16.msra.mxu0 %v1162
    %1787 = vmatpush.bf16.msra.mxu0 %v1158
    %1788 = vmatpush.bf16.msra.mxu0 %v1154
    %1789 = vmatpush.bf16.msra.mxu0 %v1150
    %1790 = vmatpush.bf16.msra.mxu0 %v1146
    %1791 = vmatpush.bf16.msra.mxu0 %v1142
    %1792 = vmatmul.bf16.gmra.mxu0 %v102
    %v1793 = vpop.f32.mrf.mxu0
    %v1794 = vadd.f32 %v1781, %v1793
    %v1795 = vpop.f32.mrf.mxu0
    %1796 = vdwg.mxu0
    %1797 = vmatpush.bf16.msra.mxu0 %v1202
    %1798 = vmatpush.bf16.msra.mxu0 %v1198
    %1799 = vmatpush.bf16.msra.mxu0 %v1194
    %1800 = vmatpush.bf16.msra.mxu0 %v1190
    %1801 = vmatpush.bf16.msra.mxu0 %v1186
    %1802 = vmatpush.bf16.msra.mxu0 %v1182
    %1803 = vmatpush.bf16.msra.mxu0 %v1178
    %1804 = vmatpush.bf16.msra.mxu0 %v1174
    %1805 = vmatmul.bf16.gmra.mxu0 %v103
    %v1806 = vpop.f32.mrf.mxu0
    %v1807 = vadd.f32 %v1794, %v1806
    %v1808 = vpop.f32.mrf.mxu0
    %1809 = vdwg.mxu0
    %1810 = vmatpush.bf16.msra.mxu0 %v1234
    %1811 = vmatpush.bf16.msra.mxu0 %v1230
    %1812 = vmatpush.bf16.msra.mxu0 %v1226
    %1813 = vmatpush.bf16.msra.mxu0 %v1222
    %1814 = vmatpush.bf16.msra.mxu0 %v1218
    %1815 = vmatpush.bf16.msra.mxu0 %v1214
    %1816 = vmatpush.bf16.msra.mxu0 %v1210
    %1817 = vmatpush.bf16.msra.mxu0 %v1206
    %1818 = vmatmul.bf16.gmra.mxu0 %v104
    %v1819 = vpop.f32.mrf.mxu0
    %v1820 = vadd.f32 %v1807, %v1819
    %v1821 = vpop.f32.mrf.mxu0
    %1822 = vdwg.mxu0
    %v1823 = vmax.f32 %v1547, 0.0
    %v1824 = vmax.f32 %v1638, 0.0
    %v1825 = vmax.f32 %v1729, 0.0
    %v1826 = vmax.f32 %v1820, 0.0
    %v1827 = vpack.c.bf16 %v1823, %v1823
    %v1828 = vpack.c.bf16 %v1824, %v1824
    %v1829 = vpack.c.bf16 %v1825, %v1825
    %v1830 = vpack.c.bf16 %v1826, %v1826
    %v1831 = vld [vmem:[#allocation5] sm:$0xff]
    %v1832 = vld [vmem:[#allocation5 + $0x8] sm:$0xff]
    %v1833 = vld [vmem:[#allocation5 + $0x10] sm:$0xff]
    %v1834 = vld [vmem:[#allocation5 + $0x18] sm:$0xff]
    %v1835 = vld [vmem:[#allocation5 + $0x20] sm:$0xff]
    %v1836 = vld [vmem:[#allocation5 + $0x28] sm:$0xff]
    %v1837 = vld [vmem:[#allocation5 + $0x30] sm:$0xff]
    %v1838 = vld [vmem:[#allocation5 + $0x38] sm:$0xff]
    %v1839 = vld [vmem:[#allocation5 + $0x40] sm:$0xff]
    %v1840 = vld [vmem:[#allocation5 + $0x48] sm:$0xff]
    %v1841 = vld [vmem:[#allocation5 + $0x50] sm:$0xff]
    %v1842 = vld [vmem:[#allocation5 + $0x58] sm:$0xff]
    %v1843 = vld [vmem:[#allocation5 + $0x60] sm:$0xff]
    %v1844 = vld [vmem:[#allocation5 + $0x68] sm:$0xff]
    %v1845 = vld [vmem:[#allocation5 + $0x70] sm:$0xff]
    %v1846 = vld [vmem:[#allocation5 + $0x78] sm:$0xff]
    %v1847 = vld [vmem:[#allocation5 + $0x80] sm:$0xff]
    %v1848 = vld [vmem:[#allocation5 + $0x88] sm:$0xff]
    %v1849 = vld [vmem:[#allocation5 + $0x90] sm:$0xff]
    %v1850 = vld [vmem:[#allocation5 + $0x98] sm:$0xff]
    %v1851 = vld [vmem:[#allocation5 + $0xa0] sm:$0xff]
    %v1852 = vld [vmem:[#allocation5 + $0xa8] sm:$0xff]
    %v1853 = vld [vmem:[#allocation5 + $0xb0] sm:$0xff]
    %v1854 = vld [vmem:[#allocation5 + $0xb8] sm:$0xff]
    %v1855 = vld [vmem:[#allocation5 + $0xc0] sm:$0xff]
    %v1856 = vld [vmem:[#allocation5 + $0xc8] sm:$0xff]
    %v1857 = vld [vmem:[#allocation5 + $0xd0] sm:$0xff]
    %v1858 = vld [vmem:[#allocation5 + $0xd8] sm:$0xff]
    %v1859 = vld [vmem:[#allocation5 + $0xe0] sm:$0xff]
    %v1860 = vld [vmem:[#allocation5 + $0xe8] sm:$0xff]
    %v1861 = vld [vmem:[#allocation5 + $0xf0] sm:$0xff]
    %v1862 = vld [vmem:[#allocation5 + $0xf8] sm:$0xff]
    %v1863 = vld [vmem:[#allocation5 + $0x100] sm:$0xff]
    %v1864 = vld [vmem:[#allocation5 + $0x108] sm:$0xff]
    %v1865 = vld [vmem:[#allocation5 + $0x110] sm:$0xff]
    %v1866 = vld [vmem:[#allocation5 + $0x118] sm:$0xff]
    %v1867 = vld [vmem:[#allocation5 + $0x120] sm:$0xff]
    %v1868 = vld [vmem:[#allocation5 + $0x128] sm:$0xff]
    %v1869 = vld [vmem:[#allocation5 + $0x130] sm:$0xff]
    %v1870 = vld [vmem:[#allocation5 + $0x138] sm:$0xff]
    %v1871 = vld [vmem:[#allocation5 + $0x140] sm:$0xff]
    %v1872 = vld [vmem:[#allocation5 + $0x148] sm:$0xff]
    %v1873 = vld [vmem:[#allocation5 + $0x150] sm:$0xff]
    %v1874 = vld [vmem:[#allocation5 + $0x158] sm:$0xff]
    %v1875 = vld [vmem:[#allocation5 + $0x160] sm:$0xff]
    %v1876 = vld [vmem:[#allocation5 + $0x168] sm:$0xff]
    %v1877 = vld [vmem:[#allocation5 + $0x170] sm:$0xff]
    %v1878 = vld [vmem:[#allocation5 + $0x178] sm:$0xff]
    %v1879 = vld [vmem:[#allocation5 + $0x180] sm:$0xff]
    %v1880 = vld [vmem:[#allocation5 + $0x188] sm:$0xff]
    %v1881 = vld [vmem:[#allocation5 + $0x190] sm:$0xff]
    %v1882 = vld [vmem:[#allocation5 + $0x198] sm:$0xff]
    %v1883 = vld [vmem:[#allocation5 + $0x1a0] sm:$0xff]
    %v1884 = vld [vmem:[#allocation5 + $0x1a8] sm:$0xff]
    %v1885 = vld [vmem:[#allocation5 + $0x1b0] sm:$0xff]
    %v1886 = vld [vmem:[#allocation5 + $0x1b8] sm:$0xff]
    %v1887 = vld [vmem:[#allocation5 + $0x1c0] sm:$0xff]
    %v1888 = vld [vmem:[#allocation5 + $0x1c8] sm:$0xff]
    %v1889 = vld [vmem:[#allocation5 + $0x1d0] sm:$0xff]
    %v1890 = vld [vmem:[#allocation5 + $0x1d8] sm:$0xff]
    %v1891 = vld [vmem:[#allocation5 + $0x1e0] sm:$0xff]
    %v1892 = vld [vmem:[#allocation5 + $0x1e8] sm:$0xff]
    %v1893 = vld [vmem:[#allocation5 + $0x1f0] sm:$0xff]
    %v1894 = vld [vmem:[#allocation5 + $0x1f8] sm:$0xff]
    %v1895 = vld [vmem:[#allocation5 + $0x200] sm:$0xff]
    %v1896 = vld [vmem:[#allocation5 + $0x208] sm:$0xff]
    %v1897 = vld [vmem:[#allocation5 + $0x210] sm:$0xff]
    %v1898 = vld [vmem:[#allocation5 + $0x218] sm:$0xff]
    %v1899 = vld [vmem:[#allocation5 + $0x220] sm:$0xff]
    %v1900 = vld [vmem:[#allocation5 + $0x228] sm:$0xff]
    %v1901 = vld [vmem:[#allocation5 + $0x230] sm:$0xff]
    %v1902 = vld [vmem:[#allocation5 + $0x238] sm:$0xff]
    %v1903 = vld [vmem:[#allocation5 + $0x240] sm:$0xff]
    %v1904 = vld [vmem:[#allocation5 + $0x248] sm:$0xff]
    %v1905 = vld [vmem:[#allocation5 + $0x250] sm:$0xff]
    %v1906 = vld [vmem:[#allocation5 + $0x258] sm:$0xff]
    %v1907 = vld [vmem:[#allocation5 + $0x260] sm:$0xff]
    %v1908 = vld [vmem:[#allocation5 + $0x268] sm:$0xff]
    %v1909 = vld [vmem:[#allocation5 + $0x270] sm:$0xff]
    %v1910 = vld [vmem:[#allocation5 + $0x278] sm:$0xff]
    %v1911 = vld [vmem:[#allocation5 + $0x280] sm:$0xff]
    %v1912 = vld [vmem:[#allocation5 + $0x288] sm:$0xff]
    %v1913 = vld [vmem:[#allocation5 + $0x290] sm:$0xff]
    %v1914 = vld [vmem:[#allocation5 + $0x298] sm:$0xff]
    %v1915 = vld [vmem:[#allocation5 + $0x2a0] sm:$0xff]
    %v1916 = vld [vmem:[#allocation5 + $0x2a8] sm:$0xff]
    %v1917 = vld [vmem:[#allocation5 + $0x2b0] sm:$0xff]
    %v1918 = vld [vmem:[#allocation5 + $0x2b8] sm:$0xff]
    %v1919 = vld [vmem:[#allocation5 + $0x2c0] sm:$0xff]
    %v1920 = vld [vmem:[#allocation5 + $0x2c8] sm:$0xff]
    %v1921 = vld [vmem:[#allocation5 + $0x2d0] sm:$0xff]
    %v1922 = vld [vmem:[#allocation5 + $0x2d8] sm:$0xff]
    %v1923 = vld [vmem:[#allocation5 + $0x2e0] sm:$0xff]
    %v1924 = vld [vmem:[#allocation5 + $0x2e8] sm:$0xff]
    %v1925 = vld [vmem:[#allocation5 + $0x2f0] sm:$0xff]
    %v1926 = vld [vmem:[#allocation5 + $0x2f8] sm:$0xff]
    %v1927 = vld [vmem:[#allocation5 + $0x300] sm:$0xff]
    %v1928 = vld [vmem:[#allocation5 + $0x308] sm:$0xff]
    %v1929 = vld [vmem:[#allocation5 + $0x310] sm:$0xff]
    %v1930 = vld [vmem:[#allocation5 + $0x318] sm:$0xff]
    %v1931 = vld [vmem:[#allocation5 + $0x320] sm:$0xff]
    %v1932 = vld [vmem:[#allocation5 + $0x328] sm:$0xff]
    %v1933 = vld [vmem:[#allocation5 + $0x330] sm:$0xff]
    %v1934 = vld [vmem:[#allocation5 + $0x338] sm:$0xff]
    %v1935 = vld [vmem:[#allocation5 + $0x340] sm:$0xff]
    %v1936 = vld [vmem:[#allocation5 + $0x348] sm:$0xff]
    %v1937 = vld [vmem:[#allocation5 + $0x350] sm:$0xff]
    %v1938 = vld [vmem:[#allocation5 + $0x358] sm:$0xff]
    %v1939 = vld [vmem:[#allocation5 + $0x360] sm:$0xff]
    %v1940 = vld [vmem:[#allocation5 + $0x368] sm:$0xff]
    %v1941 = vld [vmem:[#allocation5 + $0x370] sm:$0xff]
    %v1942 = vld [vmem:[#allocation5 + $0x378] sm:$0xff]
    %v1943 = vld [vmem:[#allocation5 + $0x380] sm:$0xff]
    %v1944 = vld [vmem:[#allocation5 + $0x388] sm:$0xff]
    %v1945 = vld [vmem:[#allocation5 + $0x390] sm:$0xff]
    %v1946 = vld [vmem:[#allocation5 + $0x398] sm:$0xff]
    %v1947 = vld [vmem:[#allocation5 + $0x3a0] sm:$0xff]
    %v1948 = vld [vmem:[#allocation5 + $0x3a8] sm:$0xff]
    %v1949 = vld [vmem:[#allocation5 + $0x3b0] sm:$0xff]
    %v1950 = vld [vmem:[#allocation5 + $0x3b8] sm:$0xff]
    %v1951 = vld [vmem:[#allocation5 + $0x3c0] sm:$0xff]
    %v1952 = vld [vmem:[#allocation5 + $0x3c8] sm:$0xff]
    %v1953 = vld [vmem:[#allocation5 + $0x3d0] sm:$0xff]
    %v1954 = vld [vmem:[#allocation5 + $0x3d8] sm:$0xff]
    %v1955 = vld [vmem:[#allocation5 + $0x3e0] sm:$0xff]
    %v1956 = vld [vmem:[#allocation5 + $0x3e8] sm:$0xff]
    %v1957 = vld [vmem:[#allocation5 + $0x3f0] sm:$0xff]
    %v1958 = vld [vmem:[#allocation5 + $0x3f8] sm:$0xff]
    %s1959 = scalar_lea.vmem [#allocation8], 1
    %v1960 = vld [vmem:[%s1959] ss:$8 sm:$0xf]
    %v1962 = vperm.slane %v1960, 0
    %v1963 = vperm.slane %v1960, 1
    %v1964 = vperm.slane %v1960, 2
    %v1965 = vperm.slane %v1960, 3
    %v2098 = vunpack.c.l.b16 %v1831
    %v2099 = vunpack.c.h.b16 %v1831
    %v2100 = vunpack.c.l.b16 %v1832
    %v2101 = vunpack.c.h.b16 %v1832
    %v2102 = vunpack.c.l.b16 %v1833
    %v2103 = vunpack.c.h.b16 %v1833
    %v2104 = vunpack.c.l.b16 %v1834
    %v2105 = vunpack.c.h.b16 %v1834
    %v2106 = vunpack.c.l.b16 %v1835
    %v2107 = vunpack.c.h.b16 %v1835
    %v2108 = vunpack.c.l.b16 %v1836
    %v2109 = vunpack.c.h.b16 %v1836
    %v2110 = vunpack.c.l.b16 %v1837
    %v2111 = vunpack.c.h.b16 %v1837
    %v2112 = vunpack.c.l.b16 %v1838
    %v2113 = vunpack.c.h.b16 %v1838
    %v2114 = vunpack.c.l.b16 %v1839
    %v2115 = vunpack.c.h.b16 %v1839
    %v2116 = vunpack.c.l.b16 %v1840
    %v2117 = vunpack.c.h.b16 %v1840
    %v2118 = vunpack.c.l.b16 %v1841
    %v2119 = vunpack.c.h.b16 %v1841
    %v2120 = vunpack.c.l.b16 %v1842
    %v2121 = vunpack.c.h.b16 %v1842
    %v2122 = vunpack.c.l.b16 %v1843
    %v2123 = vunpack.c.h.b16 %v1843
    %v2124 = vunpack.c.l.b16 %v1844
    %v2125 = vunpack.c.h.b16 %v1844
    %v2126 = vunpack.c.l.b16 %v1845
    %v2127 = vunpack.c.h.b16 %v1845
    %v2128 = vunpack.c.l.b16 %v1846
    %v2129 = vunpack.c.h.b16 %v1846
    %v2130 = vunpack.c.l.b16 %v1847
    %v2131 = vunpack.c.h.b16 %v1847
    %v2132 = vunpack.c.l.b16 %v1848
    %v2133 = vunpack.c.h.b16 %v1848
    %v2134 = vunpack.c.l.b16 %v1849
    %v2135 = vunpack.c.h.b16 %v1849
    %v2136 = vunpack.c.l.b16 %v1850
    %v2137 = vunpack.c.h.b16 %v1850
    %v2138 = vunpack.c.l.b16 %v1851
    %v2139 = vunpack.c.h.b16 %v1851
    %v2140 = vunpack.c.l.b16 %v1852
    %v2141 = vunpack.c.h.b16 %v1852
    %v2142 = vunpack.c.l.b16 %v1853
    %v2143 = vunpack.c.h.b16 %v1853
    %v2144 = vunpack.c.l.b16 %v1854
    %v2145 = vunpack.c.h.b16 %v1854
    %v2146 = vunpack.c.l.b16 %v1855
    %v2147 = vunpack.c.h.b16 %v1855
    %v2148 = vunpack.c.l.b16 %v1856
    %v2149 = vunpack.c.h.b16 %v1856
    %v2150 = vunpack.c.l.b16 %v1857
    %v2151 = vunpack.c.h.b16 %v1857
    %v2152 = vunpack.c.l.b16 %v1858
    %v2153 = vunpack.c.h.b16 %v1858
    %v2154 = vunpack.c.l.b16 %v1859
    %v2155 = vunpack.c.h.b16 %v1859
    %v2156 = vunpack.c.l.b16 %v1860
    %v2157 = vunpack.c.h.b16 %v1860
    %v2158 = vunpack.c.l.b16 %v1861
    %v2159 = vunpack.c.h.b16 %v1861
    %v2160 = vunpack.c.l.b16 %v1862
    %v2161 = vunpack.c.h.b16 %v1862
    %v2162 = vunpack.c.l.b16 %v1863
    %v2163 = vunpack.c.h.b16 %v1863
    %v2164 = vunpack.c.l.b16 %v1864
    %v2165 = vunpack.c.h.b16 %v1864
    %v2166 = vunpack.c.l.b16 %v1865
    %v2167 = vunpack.c.h.b16 %v1865
    %v2168 = vunpack.c.l.b16 %v1866
    %v2169 = vunpack.c.h.b16 %v1866
    %v2170 = vunpack.c.l.b16 %v1867
    %v2171 = vunpack.c.h.b16 %v1867
    %v2172 = vunpack.c.l.b16 %v1868
    %v2173 = vunpack.c.h.b16 %v1868
    %v2174 = vunpack.c.l.b16 %v1869
    %v2175 = vunpack.c.h.b16 %v1869
    %v2176 = vunpack.c.l.b16 %v1870
    %v2177 = vunpack.c.h.b16 %v1870
    %v2178 = vunpack.c.l.b16 %v1871
    %v2179 = vunpack.c.h.b16 %v1871
    %v2180 = vunpack.c.l.b16 %v1872
    %v2181 = vunpack.c.h.b16 %v1872
    %v2182 = vunpack.c.l.b16 %v1873
    %v2183 = vunpack.c.h.b16 %v1873
    %v2184 = vunpack.c.l.b16 %v1874
    %v2185 = vunpack.c.h.b16 %v1874
    %v2186 = vunpack.c.l.b16 %v1875
    %v2187 = vunpack.c.h.b16 %v1875
    %v2188 = vunpack.c.l.b16 %v1876
    %v2189 = vunpack.c.h.b16 %v1876
    %v2190 = vunpack.c.l.b16 %v1877
    %v2191 = vunpack.c.h.b16 %v1877
    %v2192 = vunpack.c.l.b16 %v1878
    %v2193 = vunpack.c.h.b16 %v1878
    %v2194 = vunpack.c.l.b16 %v1879
    %v2195 = vunpack.c.h.b16 %v1879
    %v2196 = vunpack.c.l.b16 %v1880
    %v2197 = vunpack.c.h.b16 %v1880
    %v2198 = vunpack.c.l.b16 %v1881
    %v2199 = vunpack.c.h.b16 %v1881
    %v2200 = vunpack.c.l.b16 %v1882
    %v2201 = vunpack.c.h.b16 %v1882
    %v2202 = vunpack.c.l.b16 %v1883
    %v2203 = vunpack.c.h.b16 %v1883
    %v2204 = vunpack.c.l.b16 %v1884
    %v2205 = vunpack.c.h.b16 %v1884
    %v2206 = vunpack.c.l.b16 %v1885
    %v2207 = vunpack.c.h.b16 %v1885
    %v2208 = vunpack.c.l.b16 %v1886
    %v2209 = vunpack.c.h.b16 %v1886
    %v2210 = vunpack.c.l.b16 %v1887
    %v2211 = vunpack.c.h.b16 %v1887
    %v2212 = vunpack.c.l.b16 %v1888
    %v2213 = vunpack.c.h.b16 %v1888
    %v2214 = vunpack.c.l.b16 %v1889
    %v2215 = vunpack.c.h.b16 %v1889
    %v2216 = vunpack.c.l.b16 %v1890
    %v2217 = vunpack.c.h.b16 %v1890
    %v2218 = vunpack.c.l.b16 %v1891
    %v2219 = vunpack.c.h.b16 %v1891
    %v2220 = vunpack.c.l.b16 %v1892
    %v2221 = vunpack.c.h.b16 %v1892
    %v2222 = vunpack.c.l.b16 %v1893
    %v2223 = vunpack.c.h.b16 %v1893
    %v2224 = vunpack.c.l.b16 %v1894
    %v2225 = vunpack.c.h.b16 %v1894
    %v2226 = vunpack.c.l.b16 %v1895
    %v2227 = vunpack.c.h.b16 %v1895
    %v2228 = vunpack.c.l.b16 %v1896
    %v2229 = vunpack.c.h.b16 %v1896
    %v2230 = vunpack.c.l.b16 %v1897
    %v2231 = vunpack.c.h.b16 %v1897
    %v2232 = vunpack.c.l.b16 %v1898
    %v2233 = vunpack.c.h.b16 %v1898
    %v2234 = vunpack.c.l.b16 %v1899
    %v2235 = vunpack.c.h.b16 %v1899
    %v2236 = vunpack.c.l.b16 %v1900
    %v2237 = vunpack.c.h.b16 %v1900
    %v2238 = vunpack.c.l.b16 %v1901
    %v2239 = vunpack.c.h.b16 %v1901
    %v2240 = vunpack.c.l.b16 %v1902
    %v2241 = vunpack.c.h.b16 %v1902
    %v2242 = vunpack.c.l.b16 %v1903
    %v2243 = vunpack.c.h.b16 %v1903
    %v2244 = vunpack.c.l.b16 %v1904
    %v2245 = vunpack.c.h.b16 %v1904
    %v2246 = vunpack.c.l.b16 %v1905
    %v2247 = vunpack.c.h.b16 %v1905
    %v2248 = vunpack.c.l.b16 %v1906
    %v2249 = vunpack.c.h.b16 %v1906
    %v2250 = vunpack.c.l.b16 %v1907
    %v2251 = vunpack.c.h.b16 %v1907
    %v2252 = vunpack.c.l.b16 %v1908
    %v2253 = vunpack.c.h.b16 %v1908
    %v2254 = vunpack.c.l.b16 %v1909
    %v2255 = vunpack.c.h.b16 %v1909
    %v2256 = vunpack.c.l.b16 %v1910
    %v2257 = vunpack.c.h.b16 %v1910
    %v2258 = vunpack.c.l.b16 %v1911
    %v2259 = vunpack.c.h.b16 %v1911
    %v2260 = vunpack.c.l.b16 %v1912
    %v2261 = vunpack.c.h.b16 %v1912
    %v2262 = vunpack.c.l.b16 %v1913
    %v2263 = vunpack.c.h.b16 %v1913
    %v2264 = vunpack.c.l.b16 %v1914
    %v2265 = vunpack.c.h.b16 %v1914
    %v2266 = vunpack.c.l.b16 %v1915
    %v2267 = vunpack.c.h.b16 %v1915
    %v2268 = vunpack.c.l.b16 %v1916
    %v2269 = vunpack.c.h.b16 %v1916
    %v2270 = vunpack.c.l.b16 %v1917
    %v2271 = vunpack.c.h.b16 %v1917
    %v2272 = vunpack.c.l.b16 %v1918
    %v2273 = vunpack.c.h.b16 %v1918
    %v2274 = vunpack.c.l.b16 %v1919
    %v2275 = vunpack.c.h.b16 %v1919
    %v2276 = vunpack.c.l.b16 %v1920
    %v2277 = vunpack.c.h.b16 %v1920
    %v2278 = vunpack.c.l.b16 %v1921
    %v2279 = vunpack.c.h.b16 %v1921
    %v2280 = vunpack.c.l.b16 %v1922
    %v2281 = vunpack.c.h.b16 %v1922
    %v2282 = vunpack.c.l.b16 %v1923
    %v2283 = vunpack.c.h.b16 %v1923
    %v2284 = vunpack.c.l.b16 %v1924
    %v2285 = vunpack.c.h.b16 %v1924
    %v2286 = vunpack.c.l.b16 %v1925
    %v2287 = vunpack.c.h.b16 %v1925
    %v2288 = vunpack.c.l.b16 %v1926
    %v2289 = vunpack.c.h.b16 %v1926
    %v2290 = vunpack.c.l.b16 %v1927
    %v2291 = vunpack.c.h.b16 %v1927
    %v2292 = vunpack.c.l.b16 %v1928
    %v2293 = vunpack.c.h.b16 %v1928
    %v2294 = vunpack.c.l.b16 %v1929
    %v2295 = vunpack.c.h.b16 %v1929
    %v2296 = vunpack.c.l.b16 %v1930
    %v2297 = vunpack.c.h.b16 %v1930
    %v2298 = vunpack.c.l.b16 %v1931
    %v2299 = vunpack.c.h.b16 %v1931
    %v2300 = vunpack.c.l.b16 %v1932
    %v2301 = vunpack.c.h.b16 %v1932
    %v2302 = vunpack.c.l.b16 %v1933
    %v2303 = vunpack.c.h.b16 %v1933
    %v2304 = vunpack.c.l.b16 %v1934
    %v2305 = vunpack.c.h.b16 %v1934
    %v2306 = vunpack.c.l.b16 %v1935
    %v2307 = vunpack.c.h.b16 %v1935
    %v2308 = vunpack.c.l.b16 %v1936
    %v2309 = vunpack.c.h.b16 %v1936
    %v2310 = vunpack.c.l.b16 %v1937
    %v2311 = vunpack.c.h.b16 %v1937
    %v2312 = vunpack.c.l.b16 %v1938
    %v2313 = vunpack.c.h.b16 %v1938
    %v2314 = vunpack.c.l.b16 %v1939
    %v2315 = vunpack.c.h.b16 %v1939
    %v2316 = vunpack.c.l.b16 %v1940
    %v2317 = vunpack.c.h.b16 %v1940
    %v2318 = vunpack.c.l.b16 %v1941
    %v2319 = vunpack.c.h.b16 %v1941
    %v2320 = vunpack.c.l.b16 %v1942
    %v2321 = vunpack.c.h.b16 %v1942
    %v2322 = vunpack.c.l.b16 %v1943
    %v2323 = vunpack.c.h.b16 %v1943
    %v2324 = vunpack.c.l.b16 %v1944
    %v2325 = vunpack.c.h.b16 %v1944
    %v2326 = vunpack.c.l.b16 %v1945
    %v2327 = vunpack.c.h.b16 %v1945
    %v2328 = vunpack.c.l.b16 %v1946
    %v2329 = vunpack.c.h.b16 %v1946
    %v2330 = vunpack.c.l.b16 %v1947
    %v2331 = vunpack.c.h.b16 %v1947
    %v2332 = vunpack.c.l.b16 %v1948
    %v2333 = vunpack.c.h.b16 %v1948
    %v2334 = vunpack.c.l.b16 %v1949
    %v2335 = vunpack.c.h.b16 %v1949
    %v2336 = vunpack.c.l.b16 %v1950
    %v2337 = vunpack.c.h.b16 %v1950
    %v2338 = vunpack.c.l.b16 %v1951
    %v2339 = vunpack.c.h.b16 %v1951
    %v2340 = vunpack.c.l.b16 %v1952
    %v2341 = vunpack.c.h.b16 %v1952
    %v2342 = vunpack.c.l.b16 %v1953
    %v2343 = vunpack.c.h.b16 %v1953
    %v2344 = vunpack.c.l.b16 %v1954
    %v2345 = vunpack.c.h.b16 %v1954
    %v2346 = vunpack.c.l.b16 %v1955
    %v2347 = vunpack.c.h.b16 %v1955
    %v2348 = vunpack.c.l.b16 %v1956
    %v2349 = vunpack.c.h.b16 %v1956
    %v2350 = vunpack.c.l.b16 %v1957
    %v2351 = vunpack.c.h.b16 %v1957
    %v2352 = vunpack.c.l.b16 %v1958
    %v2353 = vunpack.c.h.b16 %v1958
    %v2354 = vpack.c.b16 %v2102, %v2098
    %v2355 = vpack.c.b16 %v2103, %v2099
    %v2356 = vpack.c.b16 %v2104, %v2100
    %v2357 = vpack.c.b16 %v2105, %v2101
    %v2358 = vpack.c.b16 %v2110, %v2106
    %v2359 = vpack.c.b16 %v2111, %v2107
    %v2360 = vpack.c.b16 %v2112, %v2108
    %v2361 = vpack.c.b16 %v2113, %v2109
    %v2362 = vpack.c.b16 %v2118, %v2114
    %v2363 = vpack.c.b16 %v2119, %v2115
    %v2364 = vpack.c.b16 %v2120, %v2116
    %v2365 = vpack.c.b16 %v2121, %v2117
    %v2366 = vpack.c.b16 %v2126, %v2122
    %v2367 = vpack.c.b16 %v2127, %v2123
    %v2368 = vpack.c.b16 %v2128, %v2124
    %v2369 = vpack.c.b16 %v2129, %v2125
    %v2370 = vpack.c.b16 %v2134, %v2130
    %v2371 = vpack.c.b16 %v2135, %v2131
    %v2372 = vpack.c.b16 %v2136, %v2132
    %v2373 = vpack.c.b16 %v2137, %v2133
    %v2374 = vpack.c.b16 %v2142, %v2138
    %v2375 = vpack.c.b16 %v2143, %v2139
    %v2376 = vpack.c.b16 %v2144, %v2140
    %v2377 = vpack.c.b16 %v2145, %v2141
    %v2378 = vpack.c.b16 %v2150, %v2146
    %v2379 = vpack.c.b16 %v2151, %v2147
    %v2380 = vpack.c.b16 %v2152, %v2148
    %v2381 = vpack.c.b16 %v2153, %v2149
    %v2382 = vpack.c.b16 %v2158, %v2154
    %v2383 = vpack.c.b16 %v2159, %v2155
    %v2384 = vpack.c.b16 %v2160, %v2156
    %v2385 = vpack.c.b16 %v2161, %v2157
    %v2386 = vpack.c.b16 %v2166, %v2162
    %v2387 = vpack.c.b16 %v2167, %v2163
    %v2388 = vpack.c.b16 %v2168, %v2164
    %v2389 = vpack.c.b16 %v2169, %v2165
    %v2390 = vpack.c.b16 %v2174, %v2170
    %v2391 = vpack.c.b16 %v2175, %v2171
    %v2392 = vpack.c.b16 %v2176, %v2172
    %v2393 = vpack.c.b16 %v2177, %v2173
    %v2394 = vpack.c.b16 %v2182, %v2178
    %v2395 = vpack.c.b16 %v2183, %v2179
    %v2396 = vpack.c.b16 %v2184, %v2180
    %v2397 = vpack.c.b16 %v2185, %v2181
    %v2398 = vpack.c.b16 %v2190, %v2186
    %v2399 = vpack.c.b16 %v2191, %v2187
    %v2400 = vpack.c.b16 %v2192, %v2188
    %v2401 = vpack.c.b16 %v2193, %v2189
    %v2402 = vpack.c.b16 %v2198, %v2194
    %v2403 = vpack.c.b16 %v2199, %v2195
    %v2404 = vpack.c.b16 %v2200, %v2196
    %v2405 = vpack.c.b16 %v2201, %v2197
    %v2406 = vpack.c.b16 %v2206, %v2202
    %v2407 = vpack.c.b16 %v2207, %v2203
    %v2408 = vpack.c.b16 %v2208, %v2204
    %v2409 = vpack.c.b16 %v2209, %v2205
    %v2410 = vpack.c.b16 %v2214, %v2210
    %v2411 = vpack.c.b16 %v2215, %v2211
    %v2412 = vpack.c.b16 %v2216, %v2212
    %v2413 = vpack.c.b16 %v2217, %v2213
    %v2414 = vpack.c.b16 %v2222, %v2218
    %v2415 = vpack.c.b16 %v2223, %v2219
    %v2416 = vpack.c.b16 %v2224, %v2220
    %v2417 = vpack.c.b16 %v2225, %v2221
    %v2418 = vpack.c.b16 %v2230, %v2226
    %v2419 = vpack.c.b16 %v2231, %v2227
    %v2420 = vpack.c.b16 %v2232, %v2228
    %v2421 = vpack.c.b16 %v2233, %v2229
    %v2422 = vpack.c.b16 %v2238, %v2234
    %v2423 = vpack.c.b16 %v2239, %v2235
    %v2424 = vpack.c.b16 %v2240, %v2236
    %v2425 = vpack.c.b16 %v2241, %v2237
    %v2426 = vpack.c.b16 %v2246, %v2242
    %v2427 = vpack.c.b16 %v2247, %v2243
    %v2428 = vpack.c.b16 %v2248, %v2244
    %v2429 = vpack.c.b16 %v2249, %v2245
    %v2430 = vpack.c.b16 %v2254, %v2250
    %v2431 = vpack.c.b16 %v2255, %v2251
    %v2432 = vpack.c.b16 %v2256, %v2252
    %v2433 = vpack.c.b16 %v2257, %v2253
    %v2434 = vpack.c.b16 %v2262, %v2258
    %v2435 = vpack.c.b16 %v2263, %v2259
    %v2436 = vpack.c.b16 %v2264, %v2260
    %v2437 = vpack.c.b16 %v2265, %v2261
    %v2438 = vpack.c.b16 %v2270, %v2266
    %v2439 = vpack.c.b16 %v2271, %v2267
    %v2440 = vpack.c.b16 %v2272, %v2268
    %v2441 = vpack.c.b16 %v2273, %v2269
    %v2442 = vpack.c.b16 %v2278, %v2274
    %v2443 = vpack.c.b16 %v2279, %v2275
    %v2444 = vpack.c.b16 %v2280, %v2276
    %v2445 = vpack.c.b16 %v2281, %v2277
    %v2446 = vpack.c.b16 %v2286, %v2282
    %v2447 = vpack.c.b16 %v2287, %v2283
    %v2448 = vpack.c.b16 %v2288, %v2284
    %v2449 = vpack.c.b16 %v2289, %v2285
    %v2450 = vpack.c.b16 %v2294, %v2290
    %v2451 = vpack.c.b16 %v2295, %v2291
    %v2452 = vpack.c.b16 %v2296, %v2292
    %v2453 = vpack.c.b16 %v2297, %v2293
    %v2454 = vpack.c.b16 %v2302, %v2298
    %v2455 = vpack.c.b16 %v2303, %v2299
    %v2456 = vpack.c.b16 %v2304, %v2300
    %v2457 = vpack.c.b16 %v2305, %v2301
    %v2458 = vpack.c.b16 %v2310, %v2306
    %v2459 = vpack.c.b16 %v2311, %v2307
    %v2460 = vpack.c.b16 %v2312, %v2308
    %v2461 = vpack.c.b16 %v2313, %v2309
    %v2462 = vpack.c.b16 %v2318, %v2314
    %v2463 = vpack.c.b16 %v2319, %v2315
    %v2464 = vpack.c.b16 %v2320, %v2316
    %v2465 = vpack.c.b16 %v2321, %v2317
    %v2466 = vpack.c.b16 %v2326, %v2322
    %v2467 = vpack.c.b16 %v2327, %v2323
    %v2468 = vpack.c.b16 %v2328, %v2324
    %v2469 = vpack.c.b16 %v2329, %v2325
    %v2470 = vpack.c.b16 %v2334, %v2330
    %v2471 = vpack.c.b16 %v2335, %v2331
    %v2472 = vpack.c.b16 %v2336, %v2332
    %v2473 = vpack.c.b16 %v2337, %v2333
    %v2474 = vpack.c.b16 %v2342, %v2338
    %v2475 = vpack.c.b16 %v2343, %v2339
    %v2476 = vpack.c.b16 %v2344, %v2340
    %v2477 = vpack.c.b16 %v2345, %v2341
    %v2478 = vpack.c.b16 %v2350, %v2346
    %v2479 = vpack.c.b16 %v2351, %v2347
    %v2480 = vpack.c.b16 %v2352, %v2348
    %v2481 = vpack.c.b16 %v2353, %v2349
    %2610 = vmatpush.bf16.msra.mxu0 %v2382
    %2611 = vmatpush.bf16.msra.mxu0 %v2378
    %2612 = vmatpush.bf16.msra.mxu0 %v2374
    %2613 = vmatpush.bf16.msra.mxu0 %v2370
    %2614 = vmatpush.bf16.msra.mxu0 %v2366
    %2615 = vmatpush.bf16.msra.mxu0 %v2362
    %2616 = vmatpush.bf16.msra.mxu0 %v2358
    %2617 = vmatpush.bf16.msra.mxu0 %v2354
    %2618 = vmatmul.bf16.gmra.mxu0 %v1827
    %v2619 = vpop.f32.mrf.mxu0
    %v2620 = vadd.f32 %v1962, %v2619
    %v2621 = vpop.f32.mrf.mxu0
    %2622 = vdwg.mxu0
    %2623 = vmatpush.bf16.msra.mxu0 %v2414
    %2624 = vmatpush.bf16.msra.mxu0 %v2410
    %2625 = vmatpush.bf16.msra.mxu0 %v2406
    %2626 = vmatpush.bf16.msra.mxu0 %v2402
    %2627 = vmatpush.bf16.msra.mxu0 %v2398
    %2628 = vmatpush.bf16.msra.mxu0 %v2394
    %2629 = vmatpush.bf16.msra.mxu0 %v2390
    %2630 = vmatpush.bf16.msra.mxu0 %v2386
    %2631 = vmatmul.bf16.gmra.mxu0 %v1828
    %v2632 = vpop.f32.mrf.mxu0
    %v2633 = vadd.f32 %v2620, %v2632
    %v2634 = vpop.f32.mrf.mxu0
    %2635 = vdwg.mxu0
    %2636 = vmatpush.bf16.msra.mxu0 %v2446
    %2637 = vmatpush.bf16.msra.mxu0 %v2442
    %2638 = vmatpush.bf16.msra.mxu0 %v2438
    %2639 = vmatpush.bf16.msra.mxu0 %v2434
    %2640 = vmatpush.bf16.msra.mxu0 %v2430
    %2641 = vmatpush.bf16.msra.mxu0 %v2426
    %2642 = vmatpush.bf16.msra.mxu0 %v2422
    %2643 = vmatpush.bf16.msra.mxu0 %v2418
    %2644 = vmatmul.bf16.gmra.mxu0 %v1829
    %v2645 = vpop.f32.mrf.mxu0
    %v2646 = vadd.f32 %v2633, %v2645
    %v2647 = vpop.f32.mrf.mxu0
    %2648 = vdwg.mxu0
    %2649 = vmatpush.bf16.msra.mxu0 %v2478
    %2650 = vmatpush.bf16.msra.mxu0 %v2474
    %2651 = vmatpush.bf16.msra.mxu0 %v2470
    %2652 = vmatpush.bf16.msra.mxu0 %v2466
    %2653 = vmatpush.bf16.msra.mxu0 %v2462
    %2654 = vmatpush.bf16.msra.mxu0 %v2458
    %2655 = vmatpush.bf16.msra.mxu0 %v2454
    %2656 = vmatpush.bf16.msra.mxu0 %v2450
    %2657 = vmatmul.bf16.gmra.mxu0 %v1830
    %v2658 = vpop.f32.mrf.mxu0
    %v2659 = vadd.f32 %v2646, %v2658
    %v2660 = vpop.f32.mrf.mxu0
    %2661 = vdwg.mxu0
    %2662 = vmatpush.bf16.msra.mxu0 %v2383
    %2663 = vmatpush.bf16.msra.mxu0 %v2379
    %2664 = vmatpush.bf16.msra.mxu0 %v2375
    %2665 = vmatpush.bf16.msra.mxu0 %v2371
    %2666 = vmatpush.bf16.msra.mxu0 %v2367
    %2667 = vmatpush.bf16.msra.mxu0 %v2363
    %2668 = vmatpush.bf16.msra.mxu0 %v2359
    %2669 = vmatpush.bf16.msra.mxu0 %v2355
    %2670 = vmatmul.bf16.gmra.mxu0 %v1827
    %v2671 = vpop.f32.mrf.mxu0
    %v2672 = vadd.f32 %v1963, %v2671
    %v2673 = vpop.f32.mrf.mxu0
    %2674 = vdwg.mxu0
    %2675 = vmatpush.bf16.msra.mxu0 %v2415
    %2676 = vmatpush.bf16.msra.mxu0 %v2411
    %2677 = vmatpush.bf16.msra.mxu0 %v2407
    %2678 = vmatpush.bf16.msra.mxu0 %v2403
    %2679 = vmatpush.bf16.msra.mxu0 %v2399
    %2680 = vmatpush.bf16.msra.mxu0 %v2395
    %2681 = vmatpush.bf16.msra.mxu0 %v2391
    %2682 = vmatpush.bf16.msra.mxu0 %v2387
    %2683 = vmatmul.bf16.gmra.mxu0 %v1828
    %v2684 = vpop.f32.mrf.mxu0
    %v2685 = vadd.f32 %v2672, %v2684
    %v2686 = vpop.f32.mrf.mxu0
    %2687 = vdwg.mxu0
    %2688 = vmatpush.bf16.msra.mxu0 %v2447
    %2689 = vmatpush.bf16.msra.mxu0 %v2443
    %2690 = vmatpush.bf16.msra.mxu0 %v2439
    %2691 = vmatpush.bf16.msra.mxu0 %v2435
    %2692 = vmatpush.bf16.msra.mxu0 %v2431
    %2693 = vmatpush.bf16.msra.mxu0 %v2427
    %2694 = vmatpush.bf16.msra.mxu0 %v2423
    %2695 = vmatpush.bf16.msra.mxu0 %v2419
    %2696 = vmatmul.bf16.gmra.mxu0 %v1829
    %v2697 = vpop.f32.mrf.mxu0
    %v2698 = vadd.f32 %v2685, %v2697
    %v2699 = vpop.f32.mrf.mxu0
    %2700 = vdwg.mxu0
    %2701 = vmatpush.bf16.msra.mxu0 %v2479
    %2702 = vmatpush.bf16.msra.mxu0 %v2475
    %2703 = vmatpush.bf16.msra.mxu0 %v2471
    %2704 = vmatpush.bf16.msra.mxu0 %v2467
    %2705 = vmatpush.bf16.msra.mxu0 %v2463
    %2706 = vmatpush.bf16.msra.mxu0 %v2459
    %2707 = vmatpush.bf16.msra.mxu0 %v2455
    %2708 = vmatpush.bf16.msra.mxu0 %v2451
    %2709 = vmatmul.bf16.gmra.mxu0 %v1830
    %v2710 = vpop.f32.mrf.mxu0
    %v2711 = vadd.f32 %v2698, %v2710
    %v2712 = vpop.f32.mrf.mxu0
    %2713 = vdwg.mxu0
    %2714 = vmatpush.bf16.msra.mxu0 %v2384
    %2715 = vmatpush.bf16.msra.mxu0 %v2380
    %2716 = vmatpush.bf16.msra.mxu0 %v2376
    %2717 = vmatpush.bf16.msra.mxu0 %v2372
    %2718 = vmatpush.bf16.msra.mxu0 %v2368
    %2719 = vmatpush.bf16.msra.mxu0 %v2364
    %2720 = vmatpush.bf16.msra.mxu0 %v2360
    %2721 = vmatpush.bf16.msra.mxu0 %v2356
    %2722 = vmatmul.bf16.gmra.mxu0 %v1827
    %v2723 = vpop.f32.mrf.mxu0
    %v2724 = vadd.f32 %v1964, %v2723
    %v2725 = vpop.f32.mrf.mxu0
    %2726 = vdwg.mxu0
    %2727 = vmatpush.bf16.msra.mxu0 %v2416
    %2728 = vmatpush.bf16.msra.mxu0 %v2412
    %2729 = vmatpush.bf16.msra.mxu0 %v2408
    %2730 = vmatpush.bf16.msra.mxu0 %v2404
    %2731 = vmatpush.bf16.msra.mxu0 %v2400
    %2732 = vmatpush.bf16.msra.mxu0 %v2396
    %2733 = vmatpush.bf16.msra.mxu0 %v2392
    %2734 = vmatpush.bf16.msra.mxu0 %v2388
    %2735 = vmatmul.bf16.gmra.mxu0 %v1828
    %v2736 = vpop.f32.mrf.mxu0
    %v2737 = vadd.f32 %v2724, %v2736
    %v2738 = vpop.f32.mrf.mxu0
    %2739 = vdwg.mxu0
    %2740 = vmatpush.bf16.msra.mxu0 %v2448
    %2741 = vmatpush.bf16.msra.mxu0 %v2444
    %2742 = vmatpush.bf16.msra.mxu0 %v2440
    %2743 = vmatpush.bf16.msra.mxu0 %v2436
    %2744 = vmatpush.bf16.msra.mxu0 %v2432
    %2745 = vmatpush.bf16.msra.mxu0 %v2428
    %2746 = vmatpush.bf16.msra.mxu0 %v2424
    %2747 = vmatpush.bf16.msra.mxu0 %v2420
    %2748 = vmatmul.bf16.gmra.mxu0 %v1829
    %v2749 = vpop.f32.mrf.mxu0
    %v2750 = vadd.f32 %v2737, %v2749
    %v2751 = vpop.f32.mrf.mxu0
    %2752 = vdwg.mxu0
    %2753 = vmatpush.bf16.msra.mxu0 %v2480
    %2754 = vmatpush.bf16.msra.mxu0 %v2476
    %2755 = vmatpush.bf16.msra.mxu0 %v2472
    %2756 = vmatpush.bf16.msra.mxu0 %v2468
    %2757 = vmatpush.bf16.msra.mxu0 %v2464
    %2758 = vmatpush.bf16.msra.mxu0 %v2460
    %2759 = vmatpush.bf16.msra.mxu0 %v2456
    %2760 = vmatpush.bf16.msra.mxu0 %v2452
    %2761 = vmatmul.bf16.gmra.mxu0 %v1830
    %v2762 = vpop.f32.mrf.mxu0
    %v2763 = vadd.f32 %v2750, %v2762
    %v2764 = vpop.f32.mrf.mxu0
    %2765 = vdwg.mxu0
    %2766 = vmatpush.bf16.msra.mxu0 %v2385
    %2767 = vmatpush.bf16.msra.mxu0 %v2381
    %2768 = vmatpush.bf16.msra.mxu0 %v2377
    %2769 = vmatpush.bf16.msra.mxu0 %v2373
    %2770 = vmatpush.bf16.msra.mxu0 %v2369
    %2771 = vmatpush.bf16.msra.mxu0 %v2365
    %2772 = vmatpush.bf16.msra.mxu0 %v2361
    %2773 = vmatpush.bf16.msra.mxu0 %v2357
    %2774 = vmatmul.bf16.gmra.mxu0 %v1827
    %v2775 = vpop.f32.mrf.mxu0
    %v2776 = vadd.f32 %v1965, %v2775
    %v2777 = vpop.f32.mrf.mxu0
    %2778 = vdwg.mxu0
    %2779 = vmatpush.bf16.msra.mxu0 %v2417
    %2780 = vmatpush.bf16.msra.mxu0 %v2413
    %2781 = vmatpush.bf16.msra.mxu0 %v2409
    %2782 = vmatpush.bf16.msra.mxu0 %v2405
    %2783 = vmatpush.bf16.msra.mxu0 %v2401
    %2784 = vmatpush.bf16.msra.mxu0 %v2397
    %2785 = vmatpush.bf16.msra.mxu0 %v2393
    %2786 = vmatpush.bf16.msra.mxu0 %v2389
    %2787 = vmatmul.bf16.gmra.mxu0 %v1828
    %v2788 = vpop.f32.mrf.mxu0
    %v2789 = vadd.f32 %v2776, %v2788
    %v2790 = vpop.f32.mrf.mxu0
    %2791 = vdwg.mxu0
    %2792 = vmatpush.bf16.msra.mxu0 %v2449
    %2793 = vmatpush.bf16.msra.mxu0 %v2445
    %2794 = vmatpush.bf16.msra.mxu0 %v2441
    %2795 = vmatpush.bf16.msra.mxu0 %v2437
    %2796 = vmatpush.bf16.msra.mxu0 %v2433
    %2797 = vmatpush.bf16.msra.mxu0 %v2429
    %2798 = vmatpush.bf16.msra.mxu0 %v2425
    %2799 = vmatpush.bf16.msra.mxu0 %v2421
    %2800 = vmatmul.bf16.gmra.mxu0 %v1829
    %v2801 = vpop.f32.mrf.mxu0
    %v2802 = vadd.f32 %v2789, %v2801
    %v2803 = vpop.f32.mrf.mxu0
    %2804 = vdwg.mxu0
    %2805 = vmatpush.bf16.msra.mxu0 %v2481
    %2806 = vmatpush.bf16.msra.mxu0 %v2477
    %2807 = vmatpush.bf16.msra.mxu0 %v2473
    %2808 = vmatpush.bf16.msra.mxu0 %v2469
    %2809 = vmatpush.bf16.msra.mxu0 %v2465
    %2810 = vmatpush.bf16.msra.mxu0 %v2461
    %2811 = vmatpush.bf16.msra.mxu0 %v2457
    %2812 = vmatpush.bf16.msra.mxu0 %v2453
    %2813 = vmatmul.bf16.gmra.mxu0 %v1830
    %v2814 = vpop.f32.mrf.mxu0
    %v2815 = vadd.f32 %v2802, %v2814
    %v2816 = vpop.f32.mrf.mxu0
    %2817 = vdwg.mxu0
    %v2818 = vmax.f32 %v2659, 0.0
    %v2819 = vmax.f32 %v2711, 0.0
    %v2820 = vmax.f32 %v2763, 0.0
    %v2821 = vmax.f32 %v2815, 0.0
    %v2822 = vpack.c.bf16 %v2818, %v2818
    %v2823 = vpack.c.bf16 %v2819, %v2819
    %v2824 = vpack.c.bf16 %v2820, %v2820
    %v2825 = vpack.c.bf16 %v2821, %v2821
    %v2826 = vld [vmem:[%s3] sm:$0xff]
    %v2827 = vld [vmem:[%s3 + $0x8] sm:$0xff]
    %v2828 = vld [vmem:[%s3 + $0x10] sm:$0xff]
    %v2829 = vld [vmem:[%s3 + $0x18] sm:$0xff]
    %v2830 = vld [vmem:[%s3 + $0x20] sm:$0xff]
    %v2831 = vld [vmem:[%s3 + $0x28] sm:$0xff]
    %v2832 = vld [vmem:[%s3 + $0x30] sm:$0xff]
    %v2833 = vld [vmem:[%s3 + $0x38] sm:$0xff]
    %v2834 = vld [vmem:[%s3 + $0x40] sm:$0xff]
    %v2835 = vld [vmem:[%s3 + $0x48] sm:$0xff]
    %v2836 = vld [vmem:[%s3 + $0x50] sm:$0xff]
    %v2837 = vld [vmem:[%s3 + $0x58] sm:$0xff]
    %v2838 = vld [vmem:[%s3 + $0x60] sm:$0xff]
    %v2839 = vld [vmem:[%s3 + $0x68] sm:$0xff]
    %v2840 = vld [vmem:[%s3 + $0x70] sm:$0xff]
    %v2841 = vld [vmem:[%s3 + $0x78] sm:$0xff]
    %v2842 = vld [vmem:[%s3 + $0x80] sm:$0xff]
    %v2843 = vld [vmem:[%s3 + $0x88] sm:$0xff]
    %v2844 = vld [vmem:[%s3 + $0x90] sm:$0xff]
    %v2845 = vld [vmem:[%s3 + $0x98] sm:$0xff]
    %v2846 = vld [vmem:[%s3 + $0xa0] sm:$0xff]
    %v2847 = vld [vmem:[%s3 + $0xa8] sm:$0xff]
    %v2848 = vld [vmem:[%s3 + $0xb0] sm:$0xff]
    %v2849 = vld [vmem:[%s3 + $0xb8] sm:$0xff]
    %v2850 = vld [vmem:[%s3 + $0xc0] sm:$0xff]
    %v2851 = vld [vmem:[%s3 + $0xc8] sm:$0xff]
    %v2852 = vld [vmem:[%s3 + $0xd0] sm:$0xff]
    %v2853 = vld [vmem:[%s3 + $0xd8] sm:$0xff]
    %v2854 = vld [vmem:[%s3 + $0xe0] sm:$0xff]
    %v2855 = vld [vmem:[%s3 + $0xe8] sm:$0xff]
    %v2856 = vld [vmem:[%s3 + $0xf0] sm:$0xff]
    %v2857 = vld [vmem:[%s3 + $0xf8] sm:$0xff]
    %v2858 = vld [vmem:[%s3 + $0x100] sm:$0xff]
    %v2859 = vld [vmem:[%s3 + $0x108] sm:$0xff]
    %v2860 = vld [vmem:[%s3 + $0x110] sm:$0xff]
    %v2861 = vld [vmem:[%s3 + $0x118] sm:$0xff]
    %v2862 = vld [vmem:[%s3 + $0x120] sm:$0xff]
    %v2863 = vld [vmem:[%s3 + $0x128] sm:$0xff]
    %v2864 = vld [vmem:[%s3 + $0x130] sm:$0xff]
    %v2865 = vld [vmem:[%s3 + $0x138] sm:$0xff]
    %v2866 = vld [vmem:[%s3 + $0x140] sm:$0xff]
    %v2867 = vld [vmem:[%s3 + $0x148] sm:$0xff]
    %v2868 = vld [vmem:[%s3 + $0x150] sm:$0xff]
    %v2869 = vld [vmem:[%s3 + $0x158] sm:$0xff]
    %v2870 = vld [vmem:[%s3 + $0x160] sm:$0xff]
    %v2871 = vld [vmem:[%s3 + $0x168] sm:$0xff]
    %v2872 = vld [vmem:[%s3 + $0x170] sm:$0xff]
    %v2873 = vld [vmem:[%s3 + $0x178] sm:$0xff]
    %v2874 = vld [vmem:[%s3 + $0x180] sm:$0xff]
    %v2875 = vld [vmem:[%s3 + $0x188] sm:$0xff]
    %v2876 = vld [vmem:[%s3 + $0x190] sm:$0xff]
    %v2877 = vld [vmem:[%s3 + $0x198] sm:$0xff]
    %v2878 = vld [vmem:[%s3 + $0x1a0] sm:$0xff]
    %v2879 = vld [vmem:[%s3 + $0x1a8] sm:$0xff]
    %v2880 = vld [vmem:[%s3 + $0x1b0] sm:$0xff]
    %v2881 = vld [vmem:[%s3 + $0x1b8] sm:$0xff]
    %v2882 = vld [vmem:[%s3 + $0x1c0] sm:$0xff]
    %v2883 = vld [vmem:[%s3 + $0x1c8] sm:$0xff]
    %v2884 = vld [vmem:[%s3 + $0x1d0] sm:$0xff]
    %v2885 = vld [vmem:[%s3 + $0x1d8] sm:$0xff]
    %v2886 = vld [vmem:[%s3 + $0x1e0] sm:$0xff]
    %v2887 = vld [vmem:[%s3 + $0x1e8] sm:$0xff]
    %v2888 = vld [vmem:[%s3 + $0x1f0] sm:$0xff]
    %v2889 = vld [vmem:[%s3 + $0x1f8] sm:$0xff]
    %s2890 = scalar_lea.vmem [#allocation8], 2
    %v2891 = vld [vmem:[%s2890] ss:$8 sm:$0x3]
    %v2893 = vperm.slane %v2891, 0
    %v2894 = vperm.slane %v2891, 1
    %v2961 = vunpack.c.l.b16 %v2826
    %v2962 = vunpack.c.h.b16 %v2826
    %v2963 = vunpack.c.l.b16 %v2827
    %v2964 = vunpack.c.h.b16 %v2827
    %v2965 = vunpack.c.l.b16 %v2828
    %v2966 = vunpack.c.h.b16 %v2828
    %v2967 = vunpack.c.l.b16 %v2829
    %v2968 = vunpack.c.h.b16 %v2829
    %v2969 = vunpack.c.l.b16 %v2830
    %v2970 = vunpack.c.h.b16 %v2830
    %v2971 = vunpack.c.l.b16 %v2831
    %v2972 = vunpack.c.h.b16 %v2831
    %v2973 = vunpack.c.l.b16 %v2832
    %v2974 = vunpack.c.h.b16 %v2832
    %v2975 = vunpack.c.l.b16 %v2833
    %v2976 = vunpack.c.h.b16 %v2833
    %v2977 = vunpack.c.l.b16 %v2834
    %v2978 = vunpack.c.h.b16 %v2834
    %v2979 = vunpack.c.l.b16 %v2835
    %v2980 = vunpack.c.h.b16 %v2835
    %v2981 = vunpack.c.l.b16 %v2836
    %v2982 = vunpack.c.h.b16 %v2836
    %v2983 = vunpack.c.l.b16 %v2837
    %v2984 = vunpack.c.h.b16 %v2837
    %v2985 = vunpack.c.l.b16 %v2838
    %v2986 = vunpack.c.h.b16 %v2838
    %v2987 = vunpack.c.l.b16 %v2839
    %v2988 = vunpack.c.h.b16 %v2839
    %v2989 = vunpack.c.l.b16 %v2840
    %v2990 = vunpack.c.h.b16 %v2840
    %v2991 = vunpack.c.l.b16 %v2841
    %v2992 = vunpack.c.h.b16 %v2841
    %v2993 = vunpack.c.l.b16 %v2842
    %v2994 = vunpack.c.h.b16 %v2842
    %v2995 = vunpack.c.l.b16 %v2843
    %v2996 = vunpack.c.h.b16 %v2843
    %v2997 = vunpack.c.l.b16 %v2844
    %v2998 = vunpack.c.h.b16 %v2844
    %v2999 = vunpack.c.l.b16 %v2845
    %v3000 = vunpack.c.h.b16 %v2845
    %v3001 = vunpack.c.l.b16 %v2846
    %v3002 = vunpack.c.h.b16 %v2846
    %v3003 = vunpack.c.l.b16 %v2847
    %v3004 = vunpack.c.h.b16 %v2847
    %v3005 = vunpack.c.l.b16 %v2848
    %v3006 = vunpack.c.h.b16 %v2848
    %v3007 = vunpack.c.l.b16 %v2849
    %v3008 = vunpack.c.h.b16 %v2849
    %v3009 = vunpack.c.l.b16 %v2850
    %v3010 = vunpack.c.h.b16 %v2850
    %v3011 = vunpack.c.l.b16 %v2851
    %v3012 = vunpack.c.h.b16 %v2851
    %v3013 = vunpack.c.l.b16 %v2852
    %v3014 = vunpack.c.h.b16 %v2852
    %v3015 = vunpack.c.l.b16 %v2853
    %v3016 = vunpack.c.h.b16 %v2853
    %v3017 = vunpack.c.l.b16 %v2854
    %v3018 = vunpack.c.h.b16 %v2854
    %v3019 = vunpack.c.l.b16 %v2855
    %v3020 = vunpack.c.h.b16 %v2855
    %v3021 = vunpack.c.l.b16 %v2856
    %v3022 = vunpack.c.h.b16 %v2856
    %v3023 = vunpack.c.l.b16 %v2857
    %v3024 = vunpack.c.h.b16 %v2857
    %v3025 = vunpack.c.l.b16 %v2858
    %v3026 = vunpack.c.h.b16 %v2858
    %v3027 = vunpack.c.l.b16 %v2859
    %v3028 = vunpack.c.h.b16 %v2859
    %v3029 = vunpack.c.l.b16 %v2860
    %v3030 = vunpack.c.h.b16 %v2860
    %v3031 = vunpack.c.l.b16 %v2861
    %v3032 = vunpack.c.h.b16 %v2861
    %v3033 = vunpack.c.l.b16 %v2862
    %v3034 = vunpack.c.h.b16 %v2862
    %v3035 = vunpack.c.l.b16 %v2863
    %v3036 = vunpack.c.h.b16 %v2863
    %v3037 = vunpack.c.l.b16 %v2864
    %v3038 = vunpack.c.h.b16 %v2864
    %v3039 = vunpack.c.l.b16 %v2865
    %v3040 = vunpack.c.h.b16 %v2865
    %v3041 = vunpack.c.l.b16 %v2866
    %v3042 = vunpack.c.h.b16 %v2866
    %v3043 = vunpack.c.l.b16 %v2867
    %v3044 = vunpack.c.h.b16 %v2867
    %v3045 = vunpack.c.l.b16 %v2868
    %v3046 = vunpack.c.h.b16 %v2868
    %v3047 = vunpack.c.l.b16 %v2869
    %v3048 = vunpack.c.h.b16 %v2869
    %v3049 = vunpack.c.l.b16 %v2870
    %v3050 = vunpack.c.h.b16 %v2870
    %v3051 = vunpack.c.l.b16 %v2871
    %v3052 = vunpack.c.h.b16 %v2871
    %v3053 = vunpack.c.l.b16 %v2872
    %v3054 = vunpack.c.h.b16 %v2872
    %v3055 = vunpack.c.l.b16 %v2873
    %v3056 = vunpack.c.h.b16 %v2873
    %v3057 = vunpack.c.l.b16 %v2874
    %v3058 = vunpack.c.h.b16 %v2874
    %v3059 = vunpack.c.l.b16 %v2875
    %v3060 = vunpack.c.h.b16 %v2875
    %v3061 = vunpack.c.l.b16 %v2876
    %v3062 = vunpack.c.h.b16 %v2876
    %v3063 = vunpack.c.l.b16 %v2877
    %v3064 = vunpack.c.h.b16 %v2877
    %v3065 = vunpack.c.l.b16 %v2878
    %v3066 = vunpack.c.h.b16 %v2878
    %v3067 = vunpack.c.l.b16 %v2879
    %v3068 = vunpack.c.h.b16 %v2879
    %v3069 = vunpack.c.l.b16 %v2880
    %v3070 = vunpack.c.h.b16 %v2880
    %v3071 = vunpack.c.l.b16 %v2881
    %v3072 = vunpack.c.h.b16 %v2881
    %v3073 = vunpack.c.l.b16 %v2882
    %v3074 = vunpack.c.h.b16 %v2882
    %v3075 = vunpack.c.l.b16 %v2883
    %v3076 = vunpack.c.h.b16 %v2883
    %v3077 = vunpack.c.l.b16 %v2884
    %v3078 = vunpack.c.h.b16 %v2884
    %v3079 = vunpack.c.l.b16 %v2885
    %v3080 = vunpack.c.h.b16 %v2885
    %v3081 = vunpack.c.l.b16 %v2886
    %v3082 = vunpack.c.h.b16 %v2886
    %v3083 = vunpack.c.l.b16 %v2887
    %v3084 = vunpack.c.h.b16 %v2887
    %v3085 = vunpack.c.l.b16 %v2888
    %v3086 = vunpack.c.h.b16 %v2888
    %v3087 = vunpack.c.l.b16 %v2889
    %v3088 = vunpack.c.h.b16 %v2889
    %v3089 = vpack.c.b16 %v2963, %v2961
    %v3090 = vpack.c.b16 %v2964, %v2962
    %v3091 = vpack.c.b16 %v2967, %v2965
    %v3092 = vpack.c.b16 %v2968, %v2966
    %v3093 = vpack.c.b16 %v2971, %v2969
    %v3094 = vpack.c.b16 %v2972, %v2970
    %v3095 = vpack.c.b16 %v2975, %v2973
    %v3096 = vpack.c.b16 %v2976, %v2974
    %v3097 = vpack.c.b16 %v2979, %v2977
    %v3098 = vpack.c.b16 %v2980, %v2978
    %v3099 = vpack.c.b16 %v2983, %v2981
    %v3100 = vpack.c.b16 %v2984, %v2982
    %v3101 = vpack.c.b16 %v2987, %v2985
    %v3102 = vpack.c.b16 %v2988, %v2986
    %v3103 = vpack.c.b16 %v2991, %v2989
    %v3104 = vpack.c.b16 %v2992, %v2990
    %v3105 = vpack.c.b16 %v2995, %v2993
    %v3106 = vpack.c.b16 %v2996, %v2994
    %v3107 = vpack.c.b16 %v2999, %v2997
    %v3108 = vpack.c.b16 %v3000, %v2998
    %v3109 = vpack.c.b16 %v3003, %v3001
    %v3110 = vpack.c.b16 %v3004, %v3002
    %v3111 = vpack.c.b16 %v3007, %v3005
    %v3112 = vpack.c.b16 %v3008, %v3006
    %v3113 = vpack.c.b16 %v3011, %v3009
    %v3114 = vpack.c.b16 %v3012, %v3010
    %v3115 = vpack.c.b16 %v3015, %v3013
    %v3116 = vpack.c.b16 %v3016, %v3014
    %v3117 = vpack.c.b16 %v3019, %v3017
    %v3118 = vpack.c.b16 %v3020, %v3018
    %v3119 = vpack.c.b16 %v3023, %v3021
    %v3120 = vpack.c.b16 %v3024, %v3022
    %v3121 = vpack.c.b16 %v3027, %v3025
    %v3122 = vpack.c.b16 %v3028, %v3026
    %v3123 = vpack.c.b16 %v3031, %v3029
    %v3124 = vpack.c.b16 %v3032, %v3030
    %v3125 = vpack.c.b16 %v3035, %v3033
    %v3126 = vpack.c.b16 %v3036, %v3034
    %v3127 = vpack.c.b16 %v3039, %v3037
    %v3128 = vpack.c.b16 %v3040, %v3038
    %v3129 = vpack.c.b16 %v3043, %v3041
    %v3130 = vpack.c.b16 %v3044, %v3042
    %v3131 = vpack.c.b16 %v3047, %v3045
    %v3132 = vpack.c.b16 %v3048, %v3046
    %v3133 = vpack.c.b16 %v3051, %v3049
    %v3134 = vpack.c.b16 %v3052, %v3050
    %v3135 = vpack.c.b16 %v3055, %v3053
    %v3136 = vpack.c.b16 %v3056, %v3054
    %v3137 = vpack.c.b16 %v3059, %v3057
    %v3138 = vpack.c.b16 %v3060, %v3058
    %v3139 = vpack.c.b16 %v3063, %v3061
    %v3140 = vpack.c.b16 %v3064, %v3062
    %v3141 = vpack.c.b16 %v3067, %v3065
    %v3142 = vpack.c.b16 %v3068, %v3066
    %v3143 = vpack.c.b16 %v3071, %v3069
    %v3144 = vpack.c.b16 %v3072, %v3070
    %v3145 = vpack.c.b16 %v3075, %v3073
    %v3146 = vpack.c.b16 %v3076, %v3074
    %v3147 = vpack.c.b16 %v3079, %v3077
    %v3148 = vpack.c.b16 %v3080, %v3078
    %v3149 = vpack.c.b16 %v3083, %v3081
    %v3150 = vpack.c.b16 %v3084, %v3082
    %v3151 = vpack.c.b16 %v3087, %v3085
    %v3152 = vpack.c.b16 %v3088, %v3086
    %3217 = vmatpush.bf16.msra.mxu0 %v3103
    %3218 = vmatpush.bf16.msra.mxu0 %v3101
    %3219 = vmatpush.bf16.msra.mxu0 %v3099
    %3220 = vmatpush.bf16.msra.mxu0 %v3097
    %3221 = vmatpush.bf16.msra.mxu0 %v3095
    %3222 = vmatpush.bf16.msra.mxu0 %v3093
    %3223 = vmatpush.bf16.msra.mxu0 %v3091
    %3224 = vmatpush.bf16.msra.mxu0 %v3089
    %3225 = vmatmul.bf16.gmra.mxu0 %v2822
    %v3226 = vpop.f32.mrf.mxu0
    %v3227 = vadd.f32 %v2893, %v3226
    %v3228 = vpop.f32.mrf.mxu0
    %3229 = vdwg.mxu0
    %3230 = vmatpush.bf16.msra.mxu0 %v3119
    %3231 = vmatpush.bf16.msra.mxu0 %v3117
    %3232 = vmatpush.bf16.msra.mxu0 %v3115
    %3233 = vmatpush.bf16.msra.mxu0 %v3113
    %3234 = vmatpush.bf16.msra.mxu0 %v3111
    %3235 = vmatpush.bf16.msra.mxu0 %v3109
    %3236 = vmatpush.bf16.msra.mxu0 %v3107
    %3237 = vmatpush.bf16.msra.mxu0 %v3105
    %3238 = vmatmul.bf16.gmra.mxu0 %v2823
    %v3239 = vpop.f32.mrf.mxu0
    %v3240 = vadd.f32 %v3227, %v3239
    %v3241 = vpop.f32.mrf.mxu0
    %3242 = vdwg.mxu0
    %3243 = vmatpush.bf16.msra.mxu0 %v3135
    %3244 = vmatpush.bf16.msra.mxu0 %v3133
    %3245 = vmatpush.bf16.msra.mxu0 %v3131
    %3246 = vmatpush.bf16.msra.mxu0 %v3129
    %3247 = vmatpush.bf16.msra.mxu0 %v3127
    %3248 = vmatpush.bf16.msra.mxu0 %v3125
    %3249 = vmatpush.bf16.msra.mxu0 %v3123
    %3250 = vmatpush.bf16.msra.mxu0 %v3121
    %3251 = vmatmul.bf16.gmra.mxu0 %v2824
    %v3252 = vpop.f32.mrf.mxu0
    %v3253 = vadd.f32 %v3240, %v3252
    %v3254 = vpop.f32.mrf.mxu0
    %3255 = vdwg.mxu0
    %3256 = vmatpush.bf16.msra.mxu0 %v3151
    %3257 = vmatpush.bf16.msra.mxu0 %v3149
    %3258 = vmatpush.bf16.msra.mxu0 %v3147
    %3259 = vmatpush.bf16.msra.mxu0 %v3145
    %3260 = vmatpush.bf16.msra.mxu0 %v3143
    %3261 = vmatpush.bf16.msra.mxu0 %v3141
    %3262 = vmatpush.bf16.msra.mxu0 %v3139
    %3263 = vmatpush.bf16.msra.mxu0 %v3137
    %3264 = vmatmul.bf16.gmra.mxu0 %v2825
    %v3265 = vpop.f32.mrf.mxu0
    %v3266 = vadd.f32 %v3253, %v3265
    %v3267 = vpop.f32.mrf.mxu0
    %3268 = vdwg.mxu0
    %3269 = vmatpush.bf16.msra.mxu0 %v3104
    %3270 = vmatpush.bf16.msra.mxu0 %v3102
    %3271 = vmatpush.bf16.msra.mxu0 %v3100
    %3272 = vmatpush.bf16.msra.mxu0 %v3098
    %3273 = vmatpush.bf16.msra.mxu0 %v3096
    %3274 = vmatpush.bf16.msra.mxu0 %v3094
    %3275 = vmatpush.bf16.msra.mxu0 %v3092
    %3276 = vmatpush.bf16.msra.mxu0 %v3090
    %3277 = vmatmul.bf16.gmra.mxu0 %v2822
    %v3278 = vpop.f32.mrf.mxu0
    %v3279 = vadd.f32 %v2894, %v3278
    %v3280 = vpop.f32.mrf.mxu0
    %3281 = vdwg.mxu0
    %3282 = vmatpush.bf16.msra.mxu0 %v3120
    %3283 = vmatpush.bf16.msra.mxu0 %v3118
    %3284 = vmatpush.bf16.msra.mxu0 %v3116
    %3285 = vmatpush.bf16.msra.mxu0 %v3114
    %3286 = vmatpush.bf16.msra.mxu0 %v3112
    %3287 = vmatpush.bf16.msra.mxu0 %v3110
    %3288 = vmatpush.bf16.msra.mxu0 %v3108
    %3289 = vmatpush.bf16.msra.mxu0 %v3106
    %3290 = vmatmul.bf16.gmra.mxu0 %v2823
    %v3291 = vpop.f32.mrf.mxu0
    %v3292 = vadd.f32 %v3279, %v3291
    %v3293 = vpop.f32.mrf.mxu0
    %3294 = vdwg.mxu0
    %3295 = vmatpush.bf16.msra.mxu0 %v3136
    %3296 = vmatpush.bf16.msra.mxu0 %v3134
    %3297 = vmatpush.bf16.msra.mxu0 %v3132
    %3298 = vmatpush.bf16.msra.mxu0 %v3130
    %3299 = vmatpush.bf16.msra.mxu0 %v3128
    %3300 = vmatpush.bf16.msra.mxu0 %v3126
    %3301 = vmatpush.bf16.msra.mxu0 %v3124
    %3302 = vmatpush.bf16.msra.mxu0 %v3122
    %3303 = vmatmul.bf16.gmra.mxu0 %v2824
    %v3304 = vpop.f32.mrf.mxu0
    %v3305 = vadd.f32 %v3292, %v3304
    %v3306 = vpop.f32.mrf.mxu0
    %3307 = vdwg.mxu0
    %3308 = vmatpush.bf16.msra.mxu0 %v3152
    %3309 = vmatpush.bf16.msra.mxu0 %v3150
    %3310 = vmatpush.bf16.msra.mxu0 %v3148
    %3311 = vmatpush.bf16.msra.mxu0 %v3146
    %3312 = vmatpush.bf16.msra.mxu0 %v3144
    %3313 = vmatpush.bf16.msra.mxu0 %v3142
    %3314 = vmatpush.bf16.msra.mxu0 %v3140
    %3315 = vmatpush.bf16.msra.mxu0 %v3138
    %3316 = vmatmul.bf16.gmra.mxu0 %v2825
    %v3317 = vpop.f32.mrf.mxu0
    %v3318 = vadd.f32 %v3305, %v3317
    %v3319 = vpop.f32.mrf.mxu0
    %3320 = vdwg.mxu0
    %v3321 = vmax.f32 %v3266, 0.0
    %v3322 = vmax.f32 %v3318, 0.0
    %v3323 = vpack.c.bf16 %v3321, %v3321
    %v3324 = vpack.c.bf16 %v3322, %v3322
    %v3325 = vld [vmem:[%s4] sm:$0xff]
    %v3326 = vld [vmem:[%s4 + $0x8] sm:$0xff]
    %v3327 = vld [vmem:[%s4 + $0x10] sm:$0xff]
    %v3328 = vld [vmem:[%s4 + $0x18] sm:$0xff]
    %v3329 = vld [vmem:[%s4 + $0x20] sm:$0xff]
    %v3330 = vld [vmem:[%s4 + $0x28] sm:$0xff]
    %v3331 = vld [vmem:[%s4 + $0x30] sm:$0xff]
    %v3332 = vld [vmem:[%s4 + $0x38] sm:$0xff]
    %v3333 = vld [vmem:[%s4 + $0x40] sm:$0xff]
    %v3334 = vld [vmem:[%s4 + $0x48] sm:$0xff]
    %v3335 = vld [vmem:[%s4 + $0x50] sm:$0xff]
    %v3336 = vld [vmem:[%s4 + $0x58] sm:$0xff]
    %v3337 = vld [vmem:[%s4 + $0x60] sm:$0xff]
    %v3338 = vld [vmem:[%s4 + $0x68] sm:$0xff]
    %v3339 = vld [vmem:[%s4 + $0x70] sm:$0xff]
    %v3340 = vld [vmem:[%s4 + $0x78] sm:$0xff]
    %v3341 = vld [vmem:[%s4 + $0x80] sm:$0xff]
    %v3342 = vld [vmem:[%s4 + $0x88] sm:$0xff]
    %v3343 = vld [vmem:[%s4 + $0x90] sm:$0xff]
    %v3344 = vld [vmem:[%s4 + $0x98] sm:$0xff]
    %v3345 = vld [vmem:[%s4 + $0xa0] sm:$0xff]
    %v3346 = vld [vmem:[%s4 + $0xa8] sm:$0xff]
    %v3347 = vld [vmem:[%s4 + $0xb0] sm:$0xff]
    %v3348 = vld [vmem:[%s4 + $0xb8] sm:$0xff]
    %v3349 = vld [vmem:[%s4 + $0xc0] sm:$0xff]
    %v3350 = vld [vmem:[%s4 + $0xc8] sm:$0xff]
    %v3351 = vld [vmem:[%s4 + $0xd0] sm:$0xff]
    %v3352 = vld [vmem:[%s4 + $0xd8] sm:$0xff]
    %v3353 = vld [vmem:[%s4 + $0xe0] sm:$0xff]
    %v3354 = vld [vmem:[%s4 + $0xe8] sm:$0xff]
    %v3355 = vld [vmem:[%s4 + $0xf0] sm:$0xff]
    %v3356 = vld [vmem:[%s4 + $0xf8] sm:$0xff]
    %s3357 = scalar_lea.vmem [#allocation8], 3
    %v3358 = vld [vmem:[%s3357] ss:$8 sm:$0x3]
    %v3360 = vperm.slane %v3358, 0
    %v3361 = vperm.slane %v3358, 1
    %v3396 = vunpack.c.l.b16 %v3325
    %v3397 = vunpack.c.h.b16 %v3325
    %v3398 = vunpack.c.l.b16 %v3326
    %v3399 = vunpack.c.h.b16 %v3326
    %v3400 = vunpack.c.l.b16 %v3327
    %v3401 = vunpack.c.h.b16 %v3327
    %v3402 = vunpack.c.l.b16 %v3328
    %v3403 = vunpack.c.h.b16 %v3328
    %v3404 = vunpack.c.l.b16 %v3329
    %v3405 = vunpack.c.h.b16 %v3329
    %v3406 = vunpack.c.l.b16 %v3330
    %v3407 = vunpack.c.h.b16 %v3330
    %v3408 = vunpack.c.l.b16 %v3331
    %v3409 = vunpack.c.h.b16 %v3331
    %v3410 = vunpack.c.l.b16 %v3332
    %v3411 = vunpack.c.h.b16 %v3332
    %v3412 = vunpack.c.l.b16 %v3333
    %v3413 = vunpack.c.h.b16 %v3333
    %v3414 = vunpack.c.l.b16 %v3334
    %v3415 = vunpack.c.h.b16 %v3334
    %v3416 = vunpack.c.l.b16 %v3335
    %v3417 = vunpack.c.h.b16 %v3335
    %v3418 = vunpack.c.l.b16 %v3336
    %v3419 = vunpack.c.h.b16 %v3336
    %v3420 = vunpack.c.l.b16 %v3337
    %v3421 = vunpack.c.h.b16 %v3337
    %v3422 = vunpack.c.l.b16 %v3338
    %v3423 = vunpack.c.h.b16 %v3338
    %v3424 = vunpack.c.l.b16 %v3339
    %v3425 = vunpack.c.h.b16 %v3339
    %v3426 = vunpack.c.l.b16 %v3340
    %v3427 = vunpack.c.h.b16 %v3340
    %v3428 = vunpack.c.l.b16 %v3341
    %v3429 = vunpack.c.h.b16 %v3341
    %v3430 = vunpack.c.l.b16 %v3342
    %v3431 = vunpack.c.h.b16 %v3342
    %v3432 = vunpack.c.l.b16 %v3343
    %v3433 = vunpack.c.h.b16 %v3343
    %v3434 = vunpack.c.l.b16 %v3344
    %v3435 = vunpack.c.h.b16 %v3344
    %v3436 = vunpack.c.l.b16 %v3345
    %v3437 = vunpack.c.h.b16 %v3345
    %v3438 = vunpack.c.l.b16 %v3346
    %v3439 = vunpack.c.h.b16 %v3346
    %v3440 = vunpack.c.l.b16 %v3347
    %v3441 = vunpack.c.h.b16 %v3347
    %v3442 = vunpack.c.l.b16 %v3348
    %v3443 = vunpack.c.h.b16 %v3348
    %v3444 = vunpack.c.l.b16 %v3349
    %v3445 = vunpack.c.h.b16 %v3349
    %v3446 = vunpack.c.l.b16 %v3350
    %v3447 = vunpack.c.h.b16 %v3350
    %v3448 = vunpack.c.l.b16 %v3351
    %v3449 = vunpack.c.h.b16 %v3351
    %v3450 = vunpack.c.l.b16 %v3352
    %v3451 = vunpack.c.h.b16 %v3352
    %v3452 = vunpack.c.l.b16 %v3353
    %v3453 = vunpack.c.h.b16 %v3353
    %v3454 = vunpack.c.l.b16 %v3354
    %v3455 = vunpack.c.h.b16 %v3354
    %v3456 = vunpack.c.l.b16 %v3355
    %v3457 = vunpack.c.h.b16 %v3355
    %v3458 = vunpack.c.l.b16 %v3356
    %v3459 = vunpack.c.h.b16 %v3356
    %v3460 = vpack.c.b16 %v3398, %v3396
    %v3461 = vpack.c.b16 %v3399, %v3397
    %v3462 = vpack.c.b16 %v3402, %v3400
    %v3463 = vpack.c.b16 %v3403, %v3401
    %v3464 = vpack.c.b16 %v3406, %v3404
    %v3465 = vpack.c.b16 %v3407, %v3405
    %v3466 = vpack.c.b16 %v3410, %v3408
    %v3467 = vpack.c.b16 %v3411, %v3409
    %v3468 = vpack.c.b16 %v3414, %v3412
    %v3469 = vpack.c.b16 %v3415, %v3413
    %v3470 = vpack.c.b16 %v3418, %v3416
    %v3471 = vpack.c.b16 %v3419, %v3417
    %v3472 = vpack.c.b16 %v3422, %v3420
    %v3473 = vpack.c.b16 %v3423, %v3421
    %v3474 = vpack.c.b16 %v3426, %v3424
    %v3475 = vpack.c.b16 %v3427, %v3425
    %v3476 = vpack.c.b16 %v3430, %v3428
    %v3477 = vpack.c.b16 %v3431, %v3429
    %v3478 = vpack.c.b16 %v3434, %v3432
    %v3479 = vpack.c.b16 %v3435, %v3433
    %v3480 = vpack.c.b16 %v3438, %v3436
    %v3481 = vpack.c.b16 %v3439, %v3437
    %v3482 = vpack.c.b16 %v3442, %v3440
    %v3483 = vpack.c.b16 %v3443, %v3441
    %v3484 = vpack.c.b16 %v3446, %v3444
    %v3485 = vpack.c.b16 %v3447, %v3445
    %v3486 = vpack.c.b16 %v3450, %v3448
    %v3487 = vpack.c.b16 %v3451, %v3449
    %v3488 = vpack.c.b16 %v3454, %v3452
    %v3489 = vpack.c.b16 %v3455, %v3453
    %v3490 = vpack.c.b16 %v3458, %v3456
    %v3491 = vpack.c.b16 %v3459, %v3457
    %3524 = vmatpush.bf16.msra.mxu0 %v3474
    %3525 = vmatpush.bf16.msra.mxu0 %v3472
    %3526 = vmatpush.bf16.msra.mxu0 %v3470
    %3527 = vmatpush.bf16.msra.mxu0 %v3468
    %3528 = vmatpush.bf16.msra.mxu0 %v3466
    %3529 = vmatpush.bf16.msra.mxu0 %v3464
    %3530 = vmatpush.bf16.msra.mxu0 %v3462
    %3531 = vmatpush.bf16.msra.mxu0 %v3460
    %3532 = vmatmul.bf16.gmra.mxu0 %v3323
    %v3533 = vpop.f32.mrf.mxu0
    %v3534 = vadd.f32 %v3360, %v3533
    %v3535 = vpop.f32.mrf.mxu0
    %3536 = vdwg.mxu0
    %3537 = vmatpush.bf16.msra.mxu0 %v3490
    %3538 = vmatpush.bf16.msra.mxu0 %v3488
    %3539 = vmatpush.bf16.msra.mxu0 %v3486
    %3540 = vmatpush.bf16.msra.mxu0 %v3484
    %3541 = vmatpush.bf16.msra.mxu0 %v3482
    %3542 = vmatpush.bf16.msra.mxu0 %v3480
    %3543 = vmatpush.bf16.msra.mxu0 %v3478
    %3544 = vmatpush.bf16.msra.mxu0 %v3476
    %3545 = vmatmul.bf16.gmra.mxu0 %v3324
    %v3546 = vpop.f32.mrf.mxu0
    %v3547 = vadd.f32 %v3534, %v3546
    %v3548 = vpop.f32.mrf.mxu0
    %3549 = vdwg.mxu0
    %3550 = vmatpush.bf16.msra.mxu0 %v3475
    %3551 = vmatpush.bf16.msra.mxu0 %v3473
    %3552 = vmatpush.bf16.msra.mxu0 %v3471
    %3553 = vmatpush.bf16.msra.mxu0 %v3469
    %3554 = vmatpush.bf16.msra.mxu0 %v3467
    %3555 = vmatpush.bf16.msra.mxu0 %v3465
    %3556 = vmatpush.bf16.msra.mxu0 %v3463
    %3557 = vmatpush.bf16.msra.mxu0 %v3461
    %3558 = vmatmul.bf16.gmra.mxu0 %v3323
    %v3559 = vpop.f32.mrf.mxu0
    %v3560 = vadd.f32 %v3361, %v3559
    %v3561 = vpop.f32.mrf.mxu0
    %3562 = vdwg.mxu0
    %3563 = vmatpush.bf16.msra.mxu0 %v3491
    %3564 = vmatpush.bf16.msra.mxu0 %v3489
    %3565 = vmatpush.bf16.msra.mxu0 %v3487
    %3566 = vmatpush.bf16.msra.mxu0 %v3485
    %3567 = vmatpush.bf16.msra.mxu0 %v3483
    %3568 = vmatpush.bf16.msra.mxu0 %v3481
    %3569 = vmatpush.bf16.msra.mxu0 %v3479
    %3570 = vmatpush.bf16.msra.mxu0 %v3477
    %3571 = vmatmul.bf16.gmra.mxu0 %v3324
    %v3572 = vpop.f32.mrf.mxu0
    %v3573 = vadd.f32 %v3560, %v3572
    %v3574 = vpop.f32.mrf.mxu0
    %3575 = vdwg.mxu0
    %v3576 = vmax.f32 %v3547, 0.0
    %v3577 = vmax.f32 %v3573, 0.0
    %v3578 = vpack.c.bf16 %v3576, %v3576
    %v3579 = vpack.c.bf16 %v3577, %v3577
    %v3580 = vld [vmem:[%s5] sm:$0xf]
    %v3581 = vld [vmem:[%s5 + $0x4] sm:$0xf]
    %v3582 = vld [vmem:[%s5 + $0x8] sm:$0xf]
    %v3583 = vld [vmem:[%s5 + $0xc] sm:$0xf]
    %v3584 = vld [vmem:[%s5 + $0x10] sm:$0xf]
    %v3585 = vld [vmem:[%s5 + $0x14] sm:$0xf]
    %v3586 = vld [vmem:[%s5 + $0x18] sm:$0xf]
    %v3587 = vld [vmem:[%s5 + $0x1c] sm:$0xf]
    %v3588 = vld [vmem:[%s5 + $0x20] sm:$0xf]
    %v3589 = vld [vmem:[%s5 + $0x24] sm:$0xf]
    %v3590 = vld [vmem:[%s5 + $0x28] sm:$0xf]
    %v3591 = vld [vmem:[%s5 + $0x2c] sm:$0xf]
    %v3592 = vld [vmem:[%s5 + $0x30] sm:$0xf]
    %v3593 = vld [vmem:[%s5 + $0x34] sm:$0xf]
    %v3594 = vld [vmem:[%s5 + $0x38] sm:$0xf]
    %v3595 = vld [vmem:[%s5 + $0x3c] sm:$0xf]
    %v3596 = vld [vmem:[%s5 + $0x40] sm:$0xf]
    %v3597 = vld [vmem:[%s5 + $0x44] sm:$0xf]
    %v3598 = vld [vmem:[%s5 + $0x48] sm:$0xf]
    %v3599 = vld [vmem:[%s5 + $0x4c] sm:$0xf]
    %v3600 = vld [vmem:[%s5 + $0x50] sm:$0xf]
    %v3601 = vld [vmem:[%s5 + $0x54] sm:$0xf]
    %v3602 = vld [vmem:[%s5 + $0x58] sm:$0xf]
    %v3603 = vld [vmem:[%s5 + $0x5c] sm:$0xf]
    %v3604 = vld [vmem:[%s5 + $0x60] sm:$0xf]
    %v3605 = vld [vmem:[%s5 + $0x64] sm:$0xf]
    %v3606 = vld [vmem:[%s5 + $0x68] sm:$0xf]
    %v3607 = vld [vmem:[%s5 + $0x6c] sm:$0xf]
    %v3608 = vld [vmem:[%s5 + $0x70] sm:$0xf]
    %v3609 = vld [vmem:[%s5 + $0x74] sm:$0xf]
    %v3610 = vld [vmem:[%s5 + $0x78] sm:$0xf]
    %v3611 = vld [vmem:[%s5 + $0x7c] sm:$0xf]
    %v3612 = vld [vmem:[#allocation8 + $0x4] ss:$0 sm:$0xff]
    %v3645 = vunpack.c.l.b16 %v3580
    %v3646 = vunpack.c.l.b16 %v3581
    %v3647 = vunpack.c.l.b16 %v3582
    %v3648 = vunpack.c.l.b16 %v3583
    %v3649 = vunpack.c.l.b16 %v3584
    %v3650 = vunpack.c.l.b16 %v3585
    %v3651 = vunpack.c.l.b16 %v3586
    %v3652 = vunpack.c.l.b16 %v3587
    %v3653 = vunpack.c.l.b16 %v3588
    %v3654 = vunpack.c.l.b16 %v3589
    %v3655 = vunpack.c.l.b16 %v3590
    %v3656 = vunpack.c.l.b16 %v3591
    %v3657 = vunpack.c.l.b16 %v3592
    %v3658 = vunpack.c.l.b16 %v3593
    %v3659 = vunpack.c.l.b16 %v3594
    %v3660 = vunpack.c.l.b16 %v3595
    %v3661 = vunpack.c.l.b16 %v3596
    %v3662 = vunpack.c.l.b16 %v3597
    %v3663 = vunpack.c.l.b16 %v3598
    %v3664 = vunpack.c.l.b16 %v3599
    %v3665 = vunpack.c.l.b16 %v3600
    %v3666 = vunpack.c.l.b16 %v3601
    %v3667 = vunpack.c.l.b16 %v3602
    %v3668 = vunpack.c.l.b16 %v3603
    %v3669 = vunpack.c.l.b16 %v3604
    %v3670 = vunpack.c.l.b16 %v3605
    %v3671 = vunpack.c.l.b16 %v3606
    %v3672 = vunpack.c.l.b16 %v3607
    %v3673 = vunpack.c.l.b16 %v3608
    %v3674 = vunpack.c.l.b16 %v3609
    %v3675 = vunpack.c.l.b16 %v3610
    %v3676 = vunpack.c.l.b16 %v3611
    %v3677 = vpack.c.b16 %v3646, %v3645
    %v3678 = vpack.c.b16 %v3648, %v3647
    %v3679 = vpack.c.b16 %v3650, %v3649
    %v3680 = vpack.c.b16 %v3652, %v3651
    %v3681 = vpack.c.b16 %v3654, %v3653
    %v3682 = vpack.c.b16 %v3656, %v3655
    %v3683 = vpack.c.b16 %v3658, %v3657
    %v3684 = vpack.c.b16 %v3660, %v3659
    %v3685 = vpack.c.b16 %v3662, %v3661
    %v3686 = vpack.c.b16 %v3664, %v3663
    %v3687 = vpack.c.b16 %v3666, %v3665
    %v3688 = vpack.c.b16 %v3668, %v3667
    %v3689 = vpack.c.b16 %v3670, %v3669
    %v3690 = vpack.c.b16 %v3672, %v3671
    %v3691 = vpack.c.b16 %v3674, %v3673
    %v3692 = vpack.c.b16 %v3676, %v3675
    %3709 = vmatpush.bf16.msra.mxu0 %v3684
    %3710 = vmatpush.bf16.msra.mxu0 %v3683
    %3711 = vmatpush.bf16.msra.mxu0 %v3682
    %3712 = vmatpush.bf16.msra.mxu0 %v3681
    %3713 = vmatpush.bf16.msra.mxu0 %v3680
    %3714 = vmatpush.bf16.msra.mxu0 %v3679
    %3715 = vmatpush.bf16.msra.mxu0 %v3678
    %3716 = vmatpush.bf16.msra.mxu0 %v3677
    %3717 = vmatmul.bf16.gmra.mxu0 %v3578
    %v3718 = vpop.f32.mrf.mxu0
    %v3719 = vadd.f32 %v3612, %v3718
    %v3720 = vpop.f32.mrf.mxu0
    %3721 = vdwg.mxu0
    %3722 = vmatpush.bf16.msra.mxu0 %v3692
    %3723 = vmatpush.bf16.msra.mxu0 %v3691
    %3724 = vmatpush.bf16.msra.mxu0 %v3690
    %3725 = vmatpush.bf16.msra.mxu0 %v3689
    %3726 = vmatpush.bf16.msra.mxu0 %v3688
    %3727 = vmatpush.bf16.msra.mxu0 %v3687
    %3728 = vmatpush.bf16.msra.mxu0 %v3686
    %3729 = vmatpush.bf16.msra.mxu0 %v3685
    %3730 = vmatmul.bf16.gmra.mxu0 %v3579
    %v3731 = vpop.f32.mrf.mxu0
    %v3732 = vadd.f32 %v3719, %v3731
    %v3733 = vpop.f32.mrf.mxu0
    %3734 = vdwg.mxu0
    %v3735 = vmax.f32 %v3732, 0.0
    %v3736 = vpack.c.bf16 %v3735, %v3735
    %v3737 = vld [vmem:[#allocation7] sm:$0xf]
    %v3738 = vld [vmem:[#allocation7 + $0x4] sm:$0xf]
    %v3739 = vld [vmem:[#allocation7 + $0x8] sm:$0xf]
    %v3740 = vld [vmem:[#allocation7 + $0xc] sm:$0xf]
    %v3741 = vld [vmem:[#allocation7 + $0x10] sm:$0xf]
    %v3742 = vld [vmem:[#allocation7 + $0x14] sm:$0xf]
    %v3743 = vld [vmem:[#allocation7 + $0x18] sm:$0xf]
    %v3744 = vld [vmem:[#allocation7 + $0x1c] sm:$0xf]
    %v3745 = vld [vmem:[#allocation7 + $0x20] sm:$0xf]
    %v3746 = vld [vmem:[#allocation7 + $0x24] sm:$0xf]
    %v3747 = vld [vmem:[#allocation7 + $0x28] sm:$0xf]
    %v3748 = vld [vmem:[#allocation7 + $0x2c] sm:$0xf]
    %v3749 = vld [vmem:[#allocation7 + $0x30] sm:$0xf]
    %v3750 = vld [vmem:[#allocation7 + $0x34] sm:$0xf]
    %v3751 = vld [vmem:[#allocation7 + $0x38] sm:$0xf]
    %v3752 = vld [vmem:[#allocation7 + $0x3c] sm:$0xf]
    %v3753 = vld [vmem:[#allocation8 + $0x5] ss:$0 sm:$0xff]
    %v3770 = vunpack.c.l.b16 %v3737
    %v3771 = vunpack.c.l.b16 %v3738
    %v3772 = vunpack.c.l.b16 %v3739
    %v3773 = vunpack.c.l.b16 %v3740
    %v3774 = vunpack.c.l.b16 %v3741
    %v3775 = vunpack.c.l.b16 %v3742
    %v3776 = vunpack.c.l.b16 %v3743
    %v3777 = vunpack.c.l.b16 %v3744
    %v3778 = vunpack.c.l.b16 %v3745
    %v3779 = vunpack.c.l.b16 %v3746
    %v3780 = vunpack.c.l.b16 %v3747
    %v3781 = vunpack.c.l.b16 %v3748
    %v3782 = vunpack.c.l.b16 %v3749
    %v3783 = vunpack.c.l.b16 %v3750
    %v3784 = vunpack.c.l.b16 %v3751
    %v3785 = vunpack.c.l.b16 %v3752
    %v3786 = vpack.c.b16 %v3771, %v3770
    %v3787 = vpack.c.b16 %v3773, %v3772
    %v3788 = vpack.c.b16 %v3775, %v3774
    %v3789 = vpack.c.b16 %v3777, %v3776
    %v3790 = vpack.c.b16 %v3779, %v3778
    %v3791 = vpack.c.b16 %v3781, %v3780
    %v3792 = vpack.c.b16 %v3783, %v3782
    %v3793 = vpack.c.b16 %v3785, %v3784
    %3802 = vmatpush.bf16.msra.mxu0 %v3793
    %3803 = vmatpush.bf16.msra.mxu0 %v3792
    %3804 = vmatpush.bf16.msra.mxu0 %v3791
    %3805 = vmatpush.bf16.msra.mxu0 %v3790
    %3806 = vmatpush.bf16.msra.mxu0 %v3789
    %3807 = vmatpush.bf16.msra.mxu0 %v3788
    %3808 = vmatpush.bf16.msra.mxu0 %v3787
    %3809 = vmatpush.bf16.msra.mxu0 %v3786
    %3810 = vmatmul.bf16.gmra.mxu0 %v3736
    %v3811 = vpop.f32.mrf.mxu0
    %v3812 = vadd.f32 %v3753, %v3811
    %v3813 = vpop.f32.mrf.mxu0
    %3814 = vdwg.mxu0
    %3815 = vst [vmem:[#allocation10] sm:$0xff] %v3812
    // Predicated region
    $region50: #{fc_forward.1} parent=1 // pred_check
      _
    $region51: #{fc_forward.1} parent=1 // pred_check_branch
      %3817 = sbr.rel (0) target = $region53
    $region52: #{fc_forward.1} parent=1 // pred_region
      %3819 = vsyncadd [#allocation4], 0
      %s3821 = sshll.u32 [#allocation10], 4
      %s3822 = int_to_ptr.vmem [resolvable:$true] %s3821
      %s3823 = sshll.u32 %s8, 4
      %s3824 = int_to_ptr.hbm [resolvable:$true] %s3823
      %3826 = dma.vmem_to_hbm [thread:$0]  %s3822, 128, %s3824, [#allocation4]
    $region53: #{fc_forward.1} parent=1 // pred_fallthru
      _
    // Predicated region
    $region54: #{fc_forward.1} parent=1 // pred_check
      _
    $region55: #{fc_forward.1} parent=1 // pred_check_branch
      %3828 = sbr.rel (0) target = $region57
    $region56: #{fc_forward.1} parent=1 // pred_region
      %3830 = dma.done [#allocation4], 128
    $region57: #{fc_forward.1} parent=1 // pred_fallthru
      _
    %3831 = vsyncpa [#allocation3], 1
    %3832 = vsyncpa [#allocation6], 1
    %3833 = vsyncpa [#allocation9], 1
    %3834 = vsyncpa [#allocation4], 1

</llo_original>
